<compile_context>
chip_gen: v7x
topology: tpu7x:2x2x1
jax: 0.10.0
libtpu: 0.0.40
codegen_flags: <defaults>
</compile_context>

<pallas_src>
import functools
import math

import jax
import jax.numpy as jnp
from jax.experimental import pallas as pl
from jax.experimental.pallas import tpu as pltpu


# ----------------------------------------------------------------------------
# Fused kernel: one batch element per grid program.
# ----------------------------------------------------------------------------
def vit_fused_kernel(patches_ref, pos_ref,
                     w_patch_ref, b_patch_ref,
                     g1_ref, be1_ref,
                     wq_ref, bq_ref, wk_ref, bk_ref, wv_ref, bv_ref,
                     wo_ref, bo_ref,
                     g2_ref, be2_ref,
                     w1_ref, b1_ref, w2_ref, b2_ref,
                     w_head_ref, b_head_ref,
                     o_ref,
                     *, n_heads, n_layers):
    n_tokens, d_model = pos_ref.shape
    d_head = d_model // n_heads
    eps = 1e-5
    scale = 1.0 / math.sqrt(d_head)

    def bf16(v):
        return v.astype(jnp.bfloat16)

    def layernorm(v, g, b):                       # f32 throughout
        mu = jnp.mean(v, axis=-1, keepdims=True)
        var = jnp.mean((v - mu) ** 2, axis=-1, keepdims=True)
        return (v - mu) * jax.lax.rsqrt(var + eps) * g + b

    def split_heads(t):                           # (N, D) -> (H, N, d_head)
        return jnp.transpose(t.reshape(n_tokens, n_heads, d_head), (1, 0, 2))

    # --- Patch linear projection + positional encoding ------------------------
    tokens = (jnp.dot(bf16(patches_ref[0]), w_patch_ref[...],
                      preferred_element_type=jnp.float32)
              + b_patch_ref[...] + pos_ref[...])            # (N, D) f32
    # Dropout: identity (deterministic / eval-mode forward).

    def encoder_block(x):
        # --- multi-head self-attention (pre-LN), all heads batched -----------
        h = bf16(layernorm(x, g1_ref[...], be1_ref[...]))
        q = jnp.dot(h, wq_ref[...], preferred_element_type=jnp.float32) + bq_ref[...]
        k = jnp.dot(h, wk_ref[...], preferred_element_type=jnp.float32) + bk_ref[...]
        v = jnp.dot(h, wv_ref[...], preferred_element_type=jnp.float32) + bv_ref[...]

        qh = split_heads(bf16(q))
        kh = split_heads(bf16(k))
        vh = split_heads(bf16(v))
        s = jnp.einsum("hqd,hkd->hqk", qh, kh,
                       preferred_element_type=jnp.float32) * scale   # (H, N, N)
        s = s - jnp.max(s, axis=-1, keepdims=True)
        p = jnp.exp(s)
        p = p * pl.reciprocal(jnp.sum(p, axis=-1, keepdims=True), approx=True)
        ctx = jnp.einsum("hqk,hkd->hqd", bf16(p), vh,
                         preferred_element_type=jnp.float32)         # (H, N, dh)
        ctx = jnp.transpose(ctx, (1, 0, 2)).reshape(n_tokens, d_model)

        attn = (jnp.dot(bf16(ctx), wo_ref[...],
                        preferred_element_type=jnp.float32) + bo_ref[...])
        x1 = x + attn                                        # residual 1

        # --- MLP (pre-LN) ------------------------------------------------------
        h2 = layernorm(x1, g2_ref[...], be2_ref[...])
        m = (jnp.dot(bf16(h2), w1_ref[...],
                     preferred_element_type=jnp.float32) + b1_ref[...])
        # TODO(synk): PyTorch nn.GELU defaults to exact erf; tanh approximation used.
        m = jax.nn.gelu(m, approximate=True)
        m = (jnp.dot(bf16(m), w2_ref[...],
                     preferred_element_type=jnp.float32) + b2_ref[...])
        return x1 + m                                        # residual 2

    # --- Shared-weight encoder applied n_layers times (non-unrolled loop) ----
    x_final = jax.lax.fori_loop(0, n_layers, lambda _, x: encoder_block(x),
                                tokens)                      # (N, D) f32

    # --- Mean-pool over tokens + classification head (lane-dense, padded) ----
    pooled = jnp.mean(x_final, axis=0, keepdims=True)        # (1, D)
    o_ref[0] = (jnp.dot(bf16(pooled), w_head_ref[...],
                        preferred_element_type=jnp.float32) + b_head_ref[...])


# ----------------------------------------------------------------------------
# Parameters / helpers
# ----------------------------------------------------------------------------
def sinusoidal_pos(n, d):
    pos = jnp.arange(n, dtype=jnp.float32)[:, None]
    i = jnp.arange(d // 2, dtype=jnp.float32)[None, :]
    angle = pos / jnp.power(10000.0, 2.0 * i / d)
    pe = jnp.zeros((n, d), jnp.float32)
    pe = pe.at[:, 0::2].set(jnp.sin(angle))
    pe = pe.at[:, 1::2].set(jnp.cos(angle))
    return pe


def init_params(key, *, patch_size, d_model, mlp_size, n_channels, n_classes):
    cpp = n_channels * patch_size * patch_size
    ks = jax.random.split(key, 9)

    def dense(k, fan_in, shape):
        return (jax.random.normal(k, shape, jnp.float32)
                * (1.0 / math.sqrt(fan_in))).astype(jnp.float32)

    return {
        "w_patch": dense(ks[0], cpp, (cpp, d_model)),
        "b_patch": jnp.zeros((1, d_model), jnp.float32),
        "ln1_g": jnp.ones((1, d_model), jnp.float32),
        "ln1_b": jnp.zeros((1, d_model), jnp.float32),
        "wq": dense(ks[1], d_model, (d_model, d_model)),
        "bq": jnp.zeros((1, d_model), jnp.float32),
        "wk": dense(ks[2], d_model, (d_model, d_model)),
        "bk": jnp.zeros((1, d_model), jnp.float32),
        "wv": dense(ks[3], d_model, (d_model, d_model)),
        "bv": jnp.zeros((1, d_model), jnp.float32),
        "wo": dense(ks[4], d_model, (d_model, d_model)),
        "bo": jnp.zeros((1, d_model), jnp.float32),
        "ln2_g": jnp.ones((1, d_model), jnp.float32),
        "ln2_b": jnp.zeros((1, d_model), jnp.float32),
        "w1": dense(ks[5], d_model, (d_model, mlp_size)),
        "b1": jnp.zeros((1, mlp_size), jnp.float32),
        "w2": dense(ks[6], mlp_size, (mlp_size, d_model)),
        "b2": jnp.zeros((1, d_model), jnp.float32),
        "w_head": dense(ks[7], d_model, (d_model, n_classes)),
        "b_head": jnp.zeros((1, n_classes), jnp.float32),
    }


# ----------------------------------------------------------------------------
# Forward pass (single fused Pallas call, batch on a parallel grid)
# ----------------------------------------------------------------------------
@functools.partial(jax.jit,
                   static_argnames=("patch_size", "n_heads", "n_layers",
                                    "n_classes"))
def vision_transformer_forward(x, params, *, patch_size, n_heads, n_layers,
                               n_classes):
    B, C, H, W = x.shape
    p = patch_size
    nh, nw = H // p, W // p
    N = nh * nw
    Cpp = C * p * p
    D = params["w_patch"].shape[1]
    PAD_C = ((n_classes + 127) // 128) * 128      # lane-dense head output

    # Patchify (glue): NCHW -> [B, N, C*p*p], same ordering as Conv2d(k=p, s=p).
    patches = (x.reshape(B, C, nh, p, nw, p)
                 .transpose(0, 2, 4, 1, 3, 5)
                 .reshape(B, N, Cpp).astype(jnp.float32))
    pos = sinusoidal_pos(N, D)                    # (N, D), shared across batch

    # Pad the head to >=128 output lanes; logits sliced back after the kernel.
    w_head_pad = jnp.zeros((D, PAD_C), jnp.float32).at[:, :n_classes].set(
        params["w_head"])
    b_head_pad = jnp.zeros((1, PAD_C), jnp.float32).at[:, :n_classes].set(
        params["b_head"])

    def bf(a):                   # matmul weights in bf16 (f32 MXU accumulation)
        return a.astype(jnp.bfloat16)

    def resident(a):             # full-array block, constant index_map
        nd = a.ndim
        return pl.BlockSpec(a.shape, lambda b, nd=nd: (0,) * nd)

    weight_ops = [
        bf(params["w_patch"]), params["b_patch"],
        params["ln1_g"], params["ln1_b"],
        bf(params["wq"]), params["bq"],
        bf(params["wk"]), params["bk"],
        bf(params["wv"]), params["bv"],
        bf(params["wo"]), params["bo"],
        params["ln2_g"], params["ln2_b"],
        bf(params["w1"]), params["b1"],
        bf(params["w2"]), params["b2"],
        bf(w_head_pad), b_head_pad,
    ]

    in_specs = ([pl.BlockSpec((1, N, Cpp), lambda b: (b, 0, 0)),   # patches/batch
                 pl.BlockSpec((N, D), lambda b: (0, 0))]           # shared pos
                + [resident(w) for w in weight_ops])

    kernel = functools.partial(vit_fused_kernel, n_heads=n_heads,
                               n_layers=n_layers)

    out = pl.pallas_call(
        kernel,
        grid=(B,),
        in_specs=in_specs,
        out_specs=pl.BlockSpec((1, 1, PAD_C), lambda b: (b, 0, 0)),
        out_shape=jax.ShapeDtypeStruct((B, 1, PAD_C), jnp.float32),
        compiler_params=pltpu.CompilerParams(
            dimension_semantics=("parallel",),
            vmem_limit_bytes=32 * 1024 * 1024),
    )(patches, pos, *weight_ops)

    return out[:, 0, :n_classes]


# ----------------------------------------------------------------------------
if __name__ == "__main__":
    patch_size = 4
    d_model = 32
    mlp_size = 64
    n_heads = 4
    dropout_ratio = 0.1        # unused: deterministic forward (eval mode)
    n_layers = 2
    n_classes = 10
    n_channels = 4
    batch_size = 2
    H = W = 16

    key = jax.random.PRNGKey(0)
    kx, kp = jax.random.split(key)
    x = jax.random.normal(kx, (batch_size, n_channels, H, W), jnp.float32)
    params = init_params(kp, patch_size=patch_size, d_model=d_model,
                         mlp_size=mlp_size, n_channels=n_channels,
                         n_classes=n_classes)

    logits = vision_transformer_forward(
        x, params, patch_size=patch_size, n_heads=n_heads,
        n_layers=n_layers, n_classes=n_classes)
    logits = jax.block_until_ready(logits)

    assert logits.shape == (batch_size, n_classes)
    assert bool(jnp.all(jnp.isfinite(logits)))
    print("KERNEL_OK")
</pallas_src>

<mosaic_0001>
module attributes {stable_mosaic.version = 11 : i64} {
  func.func @vit_fused_kernel(%arg0: i32, %arg1: memref<1x16x64xf32, #tpu.memory_space<vmem>>, %arg2: memref<16x32xf32, #tpu.memory_space<vmem>>, %arg3: memref<64x32xbf16, #tpu.memory_space<vmem>>, %arg4: memref<1x32xf32, #tpu.memory_space<vmem>>, %arg5: memref<1x32xf32, #tpu.memory_space<vmem>>, %arg6: memref<1x32xf32, #tpu.memory_space<vmem>>, %arg7: memref<32x32xbf16, #tpu.memory_space<vmem>>, %arg8: memref<1x32xf32, #tpu.memory_space<vmem>>, %arg9: memref<32x32xbf16, #tpu.memory_space<vmem>>, %arg10: memref<1x32xf32, #tpu.memory_space<vmem>>, %arg11: memref<32x32xbf16, #tpu.memory_space<vmem>>, %arg12: memref<1x32xf32, #tpu.memory_space<vmem>>, %arg13: memref<32x32xbf16, #tpu.memory_space<vmem>>, %arg14: memref<1x32xf32, #tpu.memory_space<vmem>>, %arg15: memref<1x32xf32, #tpu.memory_space<vmem>>, %arg16: memref<1x32xf32, #tpu.memory_space<vmem>>, %arg17: memref<32x64xbf16, #tpu.memory_space<vmem>>, %arg18: memref<1x64xf32, #tpu.memory_space<vmem>>, %arg19: memref<64x32xbf16, #tpu.memory_space<vmem>>, %arg20: memref<1x32xf32, #tpu.memory_space<vmem>>, %arg21: memref<32x128xbf16, #tpu.memory_space<vmem>>, %arg22: memref<1x128xf32, #tpu.memory_space<vmem>>, %arg23: memref<1x1x128xf32, #tpu.memory_space<vmem>>) attributes {dimension_semantics = [#tpu.dimension_semantics<parallel>], iteration_bounds = array<i64: 2>, scalar_prefetch = 0 : i64, scratch_operands = 0 : i64, tpu.core_type = #tpu.core_type<tc>, window_params = [{transform_indices = @transform_0, window_bounds = array<i64: 1, 16, 64>}, {pipeline_mode = #tpu.pipeline_mode<synchronous>, transform_indices = @transform_1, window_bounds = array<i64: 16, 32>}, {pipeline_mode = #tpu.pipeline_mode<synchronous>, transform_indices = @transform_2, window_bounds = array<i64: 64, 32>}, {pipeline_mode = #tpu.pipeline_mode<synchronous>, transform_indices = @transform_3, window_bounds = array<i64: 1, 32>}, {pipeline_mode = #tpu.pipeline_mode<synchronous>, transform_indices = @transform_4, window_bounds = array<i64: 1, 32>}, {pipeline_mode = #tpu.pipeline_mode<synchronous>, transform_indices = @transform_5, window_bounds = array<i64: 1, 32>}, {pipeline_mode = #tpu.pipeline_mode<synchronous>, transform_indices = @transform_6, window_bounds = array<i64: 32, 32>}, {pipeline_mode = #tpu.pipeline_mode<synchronous>, transform_indices = @transform_7, window_bounds = array<i64: 1, 32>}, {pipeline_mode = #tpu.pipeline_mode<synchronous>, transform_indices = @transform_8, window_bounds = array<i64: 32, 32>}, {pipeline_mode = #tpu.pipeline_mode<synchronous>, transform_indices = @transform_9, window_bounds = array<i64: 1, 32>}, {pipeline_mode = #tpu.pipeline_mode<synchronous>, transform_indices = @transform_10, window_bounds = array<i64: 32, 32>}, {pipeline_mode = #tpu.pipeline_mode<synchronous>, transform_indices = @transform_11, window_bounds = array<i64: 1, 32>}, {pipeline_mode = #tpu.pipeline_mode<synchronous>, transform_indices = @transform_12, window_bounds = array<i64: 32, 32>}, {pipeline_mode = #tpu.pipeline_mode<synchronous>, transform_indices = @transform_13, window_bounds = array<i64: 1, 32>}, {pipeline_mode = #tpu.pipeline_mode<synchronous>, transform_indices = @transform_14, window_bounds = array<i64: 1, 32>}, {pipeline_mode = #tpu.pipeline_mode<synchronous>, transform_indices = @transform_15, window_bounds = array<i64: 1, 32>}, {pipeline_mode = #tpu.pipeline_mode<synchronous>, transform_indices = @transform_16, window_bounds = array<i64: 32, 64>}, {pipeline_mode = #tpu.pipeline_mode<synchronous>, transform_indices = @transform_17, window_bounds = array<i64: 1, 64>}, {pipeline_mode = #tpu.pipeline_mode<synchronous>, transform_indices = @transform_18, window_bounds = array<i64: 64, 32>}, {pipeline_mode = #tpu.pipeline_mode<synchronous>, transform_indices = @transform_19, window_bounds = array<i64: 1, 32>}, {pipeline_mode = #tpu.pipeline_mode<synchronous>, transform_indices = @transform_20, window_bounds = array<i64: 32, 128>}, {pipeline_mode = #tpu.pipeline_mode<synchronous>, transform_indices = @transform_21, window_bounds = array<i64: 1, 128>}, {transform_indices = @transform_22, window_bounds = array<i64: 1, 1, 128>}]} {
    %c0 = arith.constant 0 : index
    %c0_0 = arith.constant 0 : index
    %c0_1 = arith.constant 0 : index
    %0 = vector.load %arg1[%c0, %c0_0, %c0_1] : memref<1x16x64xf32, #tpu.memory_space<vmem>>, vector<1x16x64xf32>
    %1 = vector.shape_cast %0 : vector<1x16x64xf32> to vector<16x64xf32>
    %2 = arith.truncf %1 : vector<16x64xf32> to vector<16x64xbf16>
    %c0_2 = arith.constant 0 : index
    %c0_3 = arith.constant 0 : index
    %3 = vector.load %arg3[%c0_2, %c0_3] : memref<64x32xbf16, #tpu.memory_space<vmem>>, vector<64x32xbf16>
    %cst = arith.constant dense<0.000000e+00> : vector<16x32xf32>
    %4 = tpu.matmul %2, %3, %cst {dimension_numbers = #tpu.dot_dimension_numbers<[1], [0], [0], [1], [0, 0, 1, 1], [], []>} : vector<16x64xbf16>, vector<64x32xbf16>, vector<16x32xf32> -> vector<16x32xf32>
    %c0_4 = arith.constant 0 : index
    %c0_5 = arith.constant 0 : index
    %5 = vector.load %arg4[%c0_4, %c0_5] : memref<1x32xf32, #tpu.memory_space<vmem>>, vector<1x32xf32>
    %6 = vector.broadcast %5 : vector<1x32xf32> to vector<16x32xf32>
    %7 = arith.addf %4, %6 : vector<16x32xf32>
    %c0_6 = arith.constant 0 : index
    %c0_7 = arith.constant 0 : index
    %8 = vector.load %arg2[%c0_6, %c0_7] : memref<16x32xf32, #tpu.memory_space<vmem>>, vector<16x32xf32>
    %9 = arith.addf %7, %8 : vector<16x32xf32>
    %c0_i32 = arith.constant 0 : i32
    %c2_i32 = arith.constant 2 : i32
    %10 = arith.addi %c0_i32, %c2_i32 : i32
    %c1_i32 = arith.constant 1 : i32
    %11 = scf.for %arg24 = %c0_i32 to %10 step %c1_i32 iter_args(%arg25 = %9) -> (vector<16x32xf32>)  : i32 {
      %c0_18 = arith.constant 0 : index
      %c0_19 = arith.constant 0 : index
      %24 = vector.load %arg5[%c0_18, %c0_19] : memref<1x32xf32, #tpu.memory_space<vmem>>, vector<1x32xf32>
      %c0_20 = arith.constant 0 : index
      %c0_21 = arith.constant 0 : index
      %25 = vector.load %arg6[%c0_20, %c0_21] : memref<1x32xf32, #tpu.memory_space<vmem>>, vector<1x32xf32>
      %cst_22 = arith.constant dense<0.000000e+00> : vector<16xf32>
      %26 = vector.multi_reduction <add>, %arg25, %cst_22 [1] : vector<16x32xf32> to vector<16xf32>
      %27 = vector.shape_cast %26 : vector<16xf32> to vector<16x1xf32>
      %cst_23 = arith.constant 3.200000e+01 : f32
      %28 = vector.broadcast %cst_23 : f32 to vector<16x1xf32>
      %29 = arith.divf %27, %28 : vector<16x1xf32>
      %30 = vector.broadcast %29 : vector<16x1xf32> to vector<16x32xf32>
      %31 = arith.subf %arg25, %30 : vector<16x32xf32>
      %32 = arith.mulf %31, %31 : vector<16x32xf32>
      %cst_24 = arith.constant dense<0.000000e+00> : vector<16xf32>
      %33 = vector.multi_reduction <add>, %32, %cst_24 [1] : vector<16x32xf32> to vector<16xf32>
      %34 = vector.shape_cast %33 : vector<16xf32> to vector<16x1xf32>
      %cst_25 = arith.constant 3.200000e+01 : f32
      %35 = vector.broadcast %cst_25 : f32 to vector<16x1xf32>
      %36 = arith.divf %34, %35 : vector<16x1xf32>
      %37 = vector.broadcast %29 : vector<16x1xf32> to vector<16x32xf32>
      %38 = arith.subf %arg25, %37 : vector<16x32xf32>
      %cst_26 = arith.constant 9.99999974E-6 : f32
      %39 = vector.broadcast %cst_26 : f32 to vector<16x1xf32>
      %40 = arith.addf %36, %39 : vector<16x1xf32>
      %41 = math.rsqrt %40 : vector<16x1xf32>
      %42 = vector.broadcast %41 : vector<16x1xf32> to vector<16x32xf32>
      %43 = arith.mulf %38, %42 : vector<16x32xf32>
      %44 = vector.broadcast %24 : vector<1x32xf32> to vector<16x32xf32>
      %45 = arith.mulf %43, %44 : vector<16x32xf32>
      %46 = vector.broadcast %25 : vector<1x32xf32> to vector<16x32xf32>
      %47 = arith.addf %45, %46 : vector<16x32xf32>
      %48 = arith.truncf %47 : vector<16x32xf32> to vector<16x32xbf16>
      %c0_27 = arith.constant 0 : index
      %c0_28 = arith.constant 0 : index
      %49 = vector.load %arg7[%c0_27, %c0_28] : memref<32x32xbf16, #tpu.memory_space<vmem>>, vector<32x32xbf16>
      %cst_29 = arith.constant dense<0.000000e+00> : vector<16x32xf32>
      %50 = tpu.matmul %48, %49, %cst_29 {dimension_numbers = #tpu.dot_dimension_numbers<[1], [0], [0], [1], [0, 0, 1, 1], [], []>} : vector<16x32xbf16>, vector<32x32xbf16>, vector<16x32xf32> -> vector<16x32xf32>
      %c0_30 = arith.constant 0 : index
      %c0_31 = arith.constant 0 : index
      %51 = vector.load %arg8[%c0_30, %c0_31] : memref<1x32xf32, #tpu.memory_space<vmem>>, vector<1x32xf32>
      %52 = vector.broadcast %51 : vector<1x32xf32> to vector<16x32xf32>
      %53 = arith.addf %50, %52 : vector<16x32xf32>
      %c0_32 = arith.constant 0 : index
      %c0_33 = arith.constant 0 : index
      %54 = vector.load %arg9[%c0_32, %c0_33] : memref<32x32xbf16, #tpu.memory_space<vmem>>, vector<32x32xbf16>
      %cst_34 = arith.constant dense<0.000000e+00> : vector<16x32xf32>
      %55 = tpu.matmul %48, %54, %cst_34 {dimension_numbers = #tpu.dot_dimension_numbers<[1], [0], [0], [1], [0, 0, 1, 1], [], []>} : vector<16x32xbf16>, vector<32x32xbf16>, vector<16x32xf32> -> vector<16x32xf32>
      %c0_35 = arith.constant 0 : index
      %c0_36 = arith.constant 0 : index
      %56 = vector.load %arg10[%c0_35, %c0_36] : memref<1x32xf32, #tpu.memory_space<vmem>>, vector<1x32xf32>
      %57 = vector.broadcast %56 : vector<1x32xf32> to vector<16x32xf32>
      %58 = arith.addf %55, %57 : vector<16x32xf32>
      %c0_37 = arith.constant 0 : index
      %c0_38 = arith.constant 0 : index
      %59 = vector.load %arg11[%c0_37, %c0_38] : memref<32x32xbf16, #tpu.memory_space<vmem>>, vector<32x32xbf16>
      %cst_39 = arith.constant dense<0.000000e+00> : vector<16x32xf32>
      %60 = tpu.matmul %48, %59, %cst_39 {dimension_numbers = #tpu.dot_dimension_numbers<[1], [0], [0], [1], [0, 0, 1, 1], [], []>} : vector<16x32xbf16>, vector<32x32xbf16>, vector<16x32xf32> -> vector<16x32xf32>
      %c0_40 = arith.constant 0 : index
      %c0_41 = arith.constant 0 : index
      %61 = vector.load %arg12[%c0_40, %c0_41] : memref<1x32xf32, #tpu.memory_space<vmem>>, vector<1x32xf32>
      %62 = vector.broadcast %61 : vector<1x32xf32> to vector<16x32xf32>
      %63 = arith.addf %60, %62 : vector<16x32xf32>
      %64 = arith.truncf %53 : vector<16x32xf32> to vector<16x32xbf16>
      %65 = vector.shape_cast %64 : vector<16x32xbf16> to vector<16x4x8xbf16>
      %66 = tpu.transpose %65, [1, 0, 2] : vector<16x4x8xbf16> -> vector<4x16x8xbf16>
      %67 = arith.truncf %58 : vector<16x32xf32> to vector<16x32xbf16>
      %68 = vector.shape_cast %67 : vector<16x32xbf16> to vector<16x4x8xbf16>
      %69 = tpu.transpose %68, [1, 0, 2] : vector<16x4x8xbf16> -> vector<4x16x8xbf16>
      %70 = arith.truncf %63 : vector<16x32xf32> to vector<16x32xbf16>
      %71 = vector.shape_cast %70 : vector<16x32xbf16> to vector<16x4x8xbf16>
      %72 = tpu.transpose %71, [1, 0, 2] : vector<16x4x8xbf16> -> vector<4x16x8xbf16>
      "tpu.trace_start"() <{level = 10 : i32, message = "hqd,hkd->hqk"}> : () -> ()
      %cst_42 = arith.constant dense<0.000000e+00> : vector<4x16x16xf32>
      %73 = tpu.matmul %66, %69, %cst_42 {dimension_numbers = #tpu.dot_dimension_numbers<[2], [2], [1], [1], [0, 0, 0, 1, 1, 1], [0], [0]>} : vector<4x16x8xbf16>, vector<4x16x8xbf16>, vector<4x16x16xf32> -> vector<4x16x16xf32>
      "tpu.trace_stop"() : () -> ()
      %cst_43 = arith.constant 0.353553385 : f32
      %74 = vector.broadcast %cst_43 : f32 to vector<4x16x16xf32>
      %75 = arith.mulf %73, %74 : vector<4x16x16xf32>
      %cst_44 = arith.constant dense<0xFF800000> : vector<4x16xf32>
      %76 = vector.multi_reduction <maximumf>, %75, %cst_44 [2] : vector<4x16x16xf32> to vector<4x16xf32>
      %77 = vector.shape_cast %76 : vector<4x16xf32> to vector<4x16x1xf32>
      %78 = vector.broadcast %77 : vector<4x16x1xf32> to vector<4x16x16xf32>
      %79 = arith.subf %75, %78 : vector<4x16x16xf32>
      %80 = math.exp %79 : vector<4x16x16xf32>
      %cst_45 = arith.constant dense<0.000000e+00> : vector<4x16xf32>
      %81 = vector.multi_reduction <add>, %80, %cst_45 [2] : vector<4x16x16xf32> to vector<4x16xf32>
      %82 = vector.shape_cast %81 : vector<4x16xf32> to vector<4x16x1xf32>
      %83 = tpu.reciprocal %82 {approx = true} : vector<4x16x1xf32> -> vector<4x16x1xf32>
      %84 = vector.broadcast %83 : vector<4x16x1xf32> to vector<4x16x16xf32>
      %85 = arith.mulf %80, %84 : vector<4x16x16xf32>
      %86 = arith.truncf %85 : vector<4x16x16xf32> to vector<4x16x16xbf16>
      "tpu.trace_start"() <{level = 10 : i32, message = "hqk,hkd->hqd"}> : () -> ()
      %cst_46 = arith.constant dense<0.000000e+00> : vector<4x16x8xf32>
      %87 = tpu.matmul %86, %72, %cst_46 {dimension_numbers = #tpu.dot_dimension_numbers<[2], [1], [1], [2], [0, 0, 0, 1, 1, 2], [0], [0]>} : vector<4x16x16xbf16>, vector<4x16x8xbf16>, vector<4x16x8xf32> -> vector<4x16x8xf32>
      "tpu.trace_stop"() : () -> ()
      %88 = tpu.transpose %87, [1, 0, 2] : vector<4x16x8xf32> -> vector<16x4x8xf32>
      %89 = vector.shape_cast %88 : vector<16x4x8xf32> to vector<16x32xf32>
      %90 = arith.truncf %89 : vector<16x32xf32> to vector<16x32xbf16>
      %c0_47 = arith.constant 0 : index
      %c0_48 = arith.constant 0 : index
      %91 = vector.load %arg13[%c0_47, %c0_48] : memref<32x32xbf16, #tpu.memory_space<vmem>>, vector<32x32xbf16>
      %cst_49 = arith.constant dense<0.000000e+00> : vector<16x32xf32>
      %92 = tpu.matmul %90, %91, %cst_49 {dimension_numbers = #tpu.dot_dimension_numbers<[1], [0], [0], [1], [0, 0, 1, 1], [], []>} : vector<16x32xbf16>, vector<32x32xbf16>, vector<16x32xf32> -> vector<16x32xf32>
      %c0_50 = arith.constant 0 : index
      %c0_51 = arith.constant 0 : index
      %93 = vector.load %arg14[%c0_50, %c0_51] : memref<1x32xf32, #tpu.memory_space<vmem>>, vector<1x32xf32>
      %94 = vector.broadcast %93 : vector<1x32xf32> to vector<16x32xf32>
      %95 = arith.addf %92, %94 : vector<16x32xf32>
      %96 = arith.addf %arg25, %95 : vector<16x32xf32>
      %c0_52 = arith.constant 0 : index
      %c0_53 = arith.constant 0 : index
      %97 = vector.load %arg15[%c0_52, %c0_53] : memref<1x32xf32, #tpu.memory_space<vmem>>, vector<1x32xf32>
      %c0_54 = arith.constant 0 : index
      %c0_55 = arith.constant 0 : index
      %98 = vector.load %arg16[%c0_54, %c0_55] : memref<1x32xf32, #tpu.memory_space<vmem>>, vector<1x32xf32>
      %cst_56 = arith.constant dense<0.000000e+00> : vector<16xf32>
      %99 = vector.multi_reduction <add>, %96, %cst_56 [1] : vector<16x32xf32> to vector<16xf32>
      %100 = vector.shape_cast %99 : vector<16xf32> to vector<16x1xf32>
      %cst_57 = arith.constant 3.200000e+01 : f32
      %101 = vector.broadcast %cst_57 : f32 to vector<16x1xf32>
      %102 = arith.divf %100, %101 : vector<16x1xf32>
      %103 = vector.broadcast %102 : vector<16x1xf32> to vector<16x32xf32>
      %104 = arith.subf %96, %103 : vector<16x32xf32>
      %105 = arith.mulf %104, %104 : vector<16x32xf32>
      %cst_58 = arith.constant dense<0.000000e+00> : vector<16xf32>
      %106 = vector.multi_reduction <add>, %105, %cst_58 [1] : vector<16x32xf32> to vector<16xf32>
      %107 = vector.shape_cast %106 : vector<16xf32> to vector<16x1xf32>
      %cst_59 = arith.constant 3.200000e+01 : f32
      %108 = vector.broadcast %cst_59 : f32 to vector<16x1xf32>
      %109 = arith.divf %107, %108 : vector<16x1xf32>
      %110 = vector.broadcast %102 : vector<16x1xf32> to vector<16x32xf32>
      %111 = arith.subf %96, %110 : vector<16x32xf32>
      %cst_60 = arith.constant 9.99999974E-6 : f32
      %112 = vector.broadcast %cst_60 : f32 to vector<16x1xf32>
      %113 = arith.addf %109, %112 : vector<16x1xf32>
      %114 = math.rsqrt %113 : vector<16x1xf32>
      %115 = vector.broadcast %114 : vector<16x1xf32> to vector<16x32xf32>
      %116 = arith.mulf %111, %115 : vector<16x32xf32>
      %117 = vector.broadcast %97 : vector<1x32xf32> to vector<16x32xf32>
      %118 = arith.mulf %116, %117 : vector<16x32xf32>
      %119 = vector.broadcast %98 : vector<1x32xf32> to vector<16x32xf32>
      %120 = arith.addf %118, %119 : vector<16x32xf32>
      %121 = arith.truncf %120 : vector<16x32xf32> to vector<16x32xbf16>
      %c0_61 = arith.constant 0 : index
      %c0_62 = arith.constant 0 : index
      %122 = vector.load %arg17[%c0_61, %c0_62] : memref<32x64xbf16, #tpu.memory_space<vmem>>, vector<32x64xbf16>
      %cst_63 = arith.constant dense<0.000000e+00> : vector<16x64xf32>
      %123 = tpu.matmul %121, %122, %cst_63 {dimension_numbers = #tpu.dot_dimension_numbers<[1], [0], [0], [1], [0, 0, 1, 1], [], []>} : vector<16x32xbf16>, vector<32x64xbf16>, vector<16x64xf32> -> vector<16x64xf32>
      %c0_64 = arith.constant 0 : index
      %c0_65 = arith.constant 0 : index
      %124 = vector.load %arg18[%c0_64, %c0_65] : memref<1x64xf32, #tpu.memory_space<vmem>>, vector<1x64xf32>
      %125 = vector.broadcast %124 : vector<1x64xf32> to vector<16x64xf32>
      %126 = arith.addf %123, %125 : vector<16x64xf32>
      %127 = arith.mulf %126, %126 : vector<16x64xf32>
      %128 = arith.mulf %126, %127 : vector<16x64xf32>
      %cst_66 = arith.constant 4.471500e-02 : f32
      %129 = vector.broadcast %cst_66 : f32 to vector<16x64xf32>
      %130 = arith.mulf %129, %128 : vector<16x64xf32>
      %131 = arith.addf %126, %130 : vector<16x64xf32>
      %cst_67 = arith.constant 0.797884583 : f32
      %132 = vector.broadcast %cst_67 : f32 to vector<16x64xf32>
      %133 = arith.mulf %132, %131 : vector<16x64xf32>
      %134 = math.tanh %133 : vector<16x64xf32>
      %cst_68 = arith.constant 1.000000e+00 : f32
      %135 = vector.broadcast %cst_68 : f32 to vector<16x64xf32>
      %136 = arith.addf %135, %134 : vector<16x64xf32>
      %cst_69 = arith.constant 5.000000e-01 : f32
      %137 = vector.broadcast %cst_69 : f32 to vector<16x64xf32>
      %138 = arith.mulf %137, %136 : vector<16x64xf32>
      %139 = arith.mulf %126, %138 : vector<16x64xf32>
      %140 = arith.truncf %139 : vector<16x64xf32> to vector<16x64xbf16>
      %c0_70 = arith.constant 0 : index
      %c0_71 = arith.constant 0 : index
      %141 = vector.load %arg19[%c0_70, %c0_71] : memref<64x32xbf16, #tpu.memory_space<vmem>>, vector<64x32xbf16>
      %cst_72 = arith.constant dense<0.000000e+00> : vector<16x32xf32>
      %142 = tpu.matmul %140, %141, %cst_72 {dimension_numbers = #tpu.dot_dimension_numbers<[1], [0], [0], [1], [0, 0, 1, 1], [], []>} : vector<16x64xbf16>, vector<64x32xbf16>, vector<16x32xf32> -> vector<16x32xf32>
      %c0_73 = arith.constant 0 : index
      %c0_74 = arith.constant 0 : index
      %143 = vector.load %arg20[%c0_73, %c0_74] : memref<1x32xf32, #tpu.memory_space<vmem>>, vector<1x32xf32>
      %144 = vector.broadcast %143 : vector<1x32xf32> to vector<16x32xf32>
      %145 = arith.addf %142, %144 : vector<16x32xf32>
      %146 = arith.addf %96, %145 : vector<16x32xf32>
      scf.yield %146 : vector<16x32xf32>
    }
    %cst_8 = arith.constant dense<0.000000e+00> : vector<32xf32>
    %12 = vector.multi_reduction <add>, %11, %cst_8 [0] : vector<16x32xf32> to vector<32xf32>
    %13 = vector.shape_cast %12 : vector<32xf32> to vector<1x32xf32>
    %cst_9 = arith.constant 1.600000e+01 : f32
    %14 = vector.broadcast %cst_9 : f32 to vector<1x32xf32>
    %15 = arith.divf %13, %14 : vector<1x32xf32>
    %16 = arith.truncf %15 : vector<1x32xf32> to vector<1x32xbf16>
    %c0_10 = arith.constant 0 : index
    %c0_11 = arith.constant 0 : index
    %17 = vector.load %arg21[%c0_10, %c0_11] : memref<32x128xbf16, #tpu.memory_space<vmem>>, vector<32x128xbf16>
    %cst_12 = arith.constant dense<0.000000e+00> : vector<1x128xf32>
    %18 = tpu.matmul %16, %17, %cst_12 {dimension_numbers = #tpu.dot_dimension_numbers<[1], [0], [0], [1], [0, 0, 1, 1], [], []>} : vector<1x32xbf16>, vector<32x128xbf16>, vector<1x128xf32> -> vector<1x128xf32>
    %c0_13 = arith.constant 0 : index
    %c0_14 = arith.constant 0 : index
    %19 = vector.load %arg22[%c0_13, %c0_14] : memref<1x128xf32, #tpu.memory_space<vmem>>, vector<1x128xf32>
    %20 = arith.addf %18, %19 : vector<1x128xf32>
    %c0_15 = arith.constant 0 : index
    %c0_16 = arith.constant 0 : index
    %c0_17 = arith.constant 0 : index
    %21 = vector.load %arg23[%c0_15, %c0_16, %c0_17] : memref<1x1x128xf32, #tpu.memory_space<vmem>>, vector<1x1x128xf32>
    %22 = vector.shape_cast %21 : vector<1x1x128xf32> to vector<1x128xf32>
    %23 = vector.shape_cast %20 : vector<1x128xf32> to vector<1x1x128xf32>
    tpu.vector_store %arg23[%c0_15, %c0_16, %c0_17], %23 {strides = array<i32>} : memref<1x1x128xf32, #tpu.memory_space<vmem>>, vector<1x1x128xf32>,
    return
  }
  func.func @transform_0(%arg0: i32) -> (i32, i32, i32) {
    %c0_i32 = arith.constant 0 : i32
    %c0_i32_0 = arith.constant 0 : i32
    %c0_i32_1 = arith.constant 0 : i32
    return %arg0, %c0_i32, %c0_i32_0 : i32, i32, i32
  }
  func.func @transform_1(%arg0: i32) -> (i32, i32) {
    %c0_i32 = arith.constant 0 : i32
    %c0_i32_0 = arith.constant 0 : i32
    %c0_i32_1 = arith.constant 0 : i32
    return %c0_i32, %c0_i32_0 : i32, i32
  }
  func.func @transform_2(%arg0: i32) -> (i32, i32) {
    %c0_i32 = arith.constant 0 : i32
    %c0_i32_0 = arith.constant 0 : i32
    %c0_i32_1 = arith.constant 0 : i32
    return %c0_i32, %c0_i32_0 : i32, i32
  }
  func.func @transform_3(%arg0: i32) -> (i32, i32) {
    %c0_i32 = arith.constant 0 : i32
    %c0_i32_0 = arith.constant 0 : i32
    %c0_i32_1 = arith.constant 0 : i32
    return %c0_i32, %c0_i32_0 : i32, i32
  }
  func.func @transform_4(%arg0: i32) -> (i32, i32) {
    %c0_i32 = arith.constant 0 : i32
    %c0_i32_0 = arith.constant 0 : i32
    %c0_i32_1 = arith.constant 0 : i32
    return %c0_i32, %c0_i32_0 : i32, i32
  }
  func.func @transform_5(%arg0: i32) -> (i32, i32) {
    %c0_i32 = arith.constant 0 : i32
    %c0_i32_0 = arith.constant 0 : i32
    %c0_i32_1 = arith.constant 0 : i32
    return %c0_i32, %c0_i32_0 : i32, i32
  }
  func.func @transform_6(%arg0: i32) -> (i32, i32) {
    %c0_i32 = arith.constant 0 : i32
    %c0_i32_0 = arith.constant 0 : i32
    %c0_i32_1 = arith.constant 0 : i32
    return %c0_i32, %c0_i32_0 : i32, i32
  }
  func.func @transform_7(%arg0: i32) -> (i32, i32) {
    %c0_i32 = arith.constant 0 : i32
    %c0_i32_0 = arith.constant 0 : i32
    %c0_i32_1 = arith.constant 0 : i32
    return %c0_i32, %c0_i32_0 : i32, i32
  }
  func.func @transform_8(%arg0: i32) -> (i32, i32) {
    %c0_i32 = arith.constant 0 : i32
    %c0_i32_0 = arith.constant 0 : i32
    %c0_i32_1 = arith.constant 0 : i32
    return %c0_i32, %c0_i32_0 : i32, i32
  }
  func.func @transform_9(%arg0: i32) -> (i32, i32) {
    %c0_i32 = arith.constant 0 : i32
    %c0_i32_0 = arith.constant 0 : i32
    %c0_i32_1 = arith.constant 0 : i32
    return %c0_i32, %c0_i32_0 : i32, i32
  }
  func.func @transform_10(%arg0: i32) -> (i32, i32) {
    %c0_i32 = arith.constant 0 : i32
    %c0_i32_0 = arith.constant 0 : i32
    %c0_i32_1 = arith.constant 0 : i32
    return %c0_i32, %c0_i32_0 : i32, i32
  }
  func.func @transform_11(%arg0: i32) -> (i32, i32) {
    %c0_i32 = arith.constant 0 : i32
    %c0_i32_0 = arith.constant 0 : i32
    %c0_i32_1 = arith.constant 0 : i32
    return %c0_i32, %c0_i32_0 : i32, i32
  }
  func.func @transform_12(%arg0: i32) -> (i32, i32) {
    %c0_i32 = arith.constant 0 : i32
    %c0_i32_0 = arith.constant 0 : i32
    %c0_i32_1 = arith.constant 0 : i32
    return %c0_i32, %c0_i32_0 : i32, i32
  }
  func.func @transform_13(%arg0: i32) -> (i32, i32) {
    %c0_i32 = arith.constant 0 : i32
    %c0_i32_0 = arith.constant 0 : i32
    %c0_i32_1 = arith.constant 0 : i32
    return %c0_i32, %c0_i32_0 : i32, i32
  }
  func.func @transform_14(%arg0: i32) -> (i32, i32) {
    %c0_i32 = arith.constant 0 : i32
    %c0_i32_0 = arith.constant 0 : i32
    %c0_i32_1 = arith.constant 0 : i32
    return %c0_i32, %c0_i32_0 : i32, i32
  }
  func.func @transform_15(%arg0: i32) -> (i32, i32) {
    %c0_i32 = arith.constant 0 : i32
    %c0_i32_0 = arith.constant 0 : i32
    %c0_i32_1 = arith.constant 0 : i32
    return %c0_i32, %c0_i32_0 : i32, i32
  }
  func.func @transform_16(%arg0: i32) -> (i32, i32) {
    %c0_i32 = arith.constant 0 : i32
    %c0_i32_0 = arith.constant 0 : i32
    %c0_i32_1 = arith.constant 0 : i32
    return %c0_i32, %c0_i32_0 : i32, i32
  }
  func.func @transform_17(%arg0: i32) -> (i32, i32) {
    %c0_i32 = arith.constant 0 : i32
    %c0_i32_0 = arith.constant 0 : i32
    %c0_i32_1 = arith.constant 0 : i32
    return %c0_i32, %c0_i32_0 : i32, i32
  }
  func.func @transform_18(%arg0: i32) -> (i32, i32) {
    %c0_i32 = arith.constant 0 : i32
    %c0_i32_0 = arith.constant 0 : i32
    %c0_i32_1 = arith.constant 0 : i32
    return %c0_i32, %c0_i32_0 : i32, i32
  }
  func.func @transform_19(%arg0: i32) -> (i32, i32) {
    %c0_i32 = arith.constant 0 : i32
    %c0_i32_0 = arith.constant 0 : i32
    %c0_i32_1 = arith.constant 0 : i32
    return %c0_i32, %c0_i32_0 : i32, i32
  }
  func.func @transform_20(%arg0: i32) -> (i32, i32) {
    %c0_i32 = arith.constant 0 : i32
    %c0_i32_0 = arith.constant 0 : i32
    %c0_i32_1 = arith.constant 0 : i32
    return %c0_i32, %c0_i32_0 : i32, i32
  }
  func.func @transform_21(%arg0: i32) -> (i32, i32) {
    %c0_i32 = arith.constant 0 : i32
    %c0_i32_0 = arith.constant 0 : i32
    %c0_i32_1 = arith.constant 0 : i32
    return %c0_i32, %c0_i32_0 : i32, i32
  }
  func.func @transform_22(%arg0: i32) -> (i32, i32, i32) {
    %c0_i32 = arith.constant 0 : i32
    %c0_i32_0 = arith.constant 0 : i32
    %c0_i32_1 = arith.constant 0 : i32
    return %arg0, %c0_i32, %c0_i32_0 : i32, i32, i32
  }
}

</mosaic_0001>

<llo_original>
// kernel: vision_transformer_forward.1
$region0: #{vision_transformer_forward.1}
  #allocation0 [shape = 'u32[]', space=smem, size = 0x4, offset = 0x4, fixed_abs, tag = 'smem constant byte address 0x4 - core index']
  #allocation1 [shape = 'u32[144,128]{1,0:T(1,128)}', space=vmem, size = 0x12000, scoped, tag = 'internal scratch']
  %s0 = inlined_call_operand.vmem [shape: f32[2,16,64], index: 0, kind: input, shape index: {}]
  %s1 = inlined_call_operand.vmem [shape: f32[16,32], index: 1, kind: input, shape index: {}]
  %s2 = inlined_call_operand.vmem [shape: bf16[64,32], index: 2, kind: input, shape index: {}]
  %s3 = inlined_call_operand.vmem [shape: f32[1,32], index: 3, kind: input, shape index: {}]
  %s4 = inlined_call_operand.vmem [shape: f32[1,32], index: 4, kind: input, shape index: {}]
  %s5 = inlined_call_operand.vmem [shape: f32[1,32], index: 5, kind: input, shape index: {}]
  %s6 = inlined_call_operand.vmem [shape: bf16[32,32], index: 6, kind: input, shape index: {}]
  %s7 = inlined_call_operand.vmem [shape: f32[1,32], index: 7, kind: input, shape index: {}]
  %s8 = inlined_call_operand.vmem [shape: bf16[32,32], index: 8, kind: input, shape index: {}]
  %s9 = inlined_call_operand.vmem [shape: f32[1,32], index: 9, kind: input, shape index: {}]
  %s10 = inlined_call_operand.vmem [shape: bf16[32,32], index: 10, kind: input, shape index: {}]
  %s11 = inlined_call_operand.vmem [shape: f32[1,32], index: 11, kind: input, shape index: {}]
  %s12 = inlined_call_operand.vmem [shape: bf16[32,32], index: 12, kind: input, shape index: {}]
  %s13 = inlined_call_operand.vmem [shape: f32[1,32], index: 13, kind: input, shape index: {}]
  %s14 = inlined_call_operand.vmem [shape: f32[1,32], index: 14, kind: input, shape index: {}]
  %s15 = inlined_call_operand.vmem [shape: f32[1,32], index: 15, kind: input, shape index: {}]
  %s16 = inlined_call_operand.vmem [shape: bf16[32,64], index: 16, kind: input, shape index: {}]
  %s17 = inlined_call_operand.vmem [shape: f32[1,64], index: 17, kind: input, shape index: {}]
  %s18 = inlined_call_operand.vmem [shape: bf16[64,32], index: 18, kind: input, shape index: {}]
  %s19 = inlined_call_operand.vmem [shape: f32[1,32], index: 19, kind: input, shape index: {}]
  %s20 = inlined_call_operand.vmem [shape: bf16[32,128], index: 20, kind: input, shape index: {}]
  %s21 = inlined_call_operand.vmem [shape: f32[1,128], index: 21, kind: input, shape index: {}]
  %s22 = inlined_call_operand.hbm [shape: f32[2,1,128], index: 22, kind: output, shape index: {}]
  %s23 = sld [smem:[#allocation0]]
  $region128: #{vision_transformer_forward.1} parent=0
    _
  %s25 = ssub.s32 1, %s23
  %s26 = scalar_select 0, %s25, %s23
  $region1: #{vision_transformer_forward.1} parent=0
    #allocation2 [shape = 'u8[1024]{0}', space=vmem, size = 0x400, scoped, tag = 'output window, operand 0']
    #allocation3 [shape = 's32[2]{0}', space=sflag, size = 0x8, scoped, tag = 'scoped memory for vision_transformer_forward.1']
    %27 = vsyncpa [#allocation3], 0
    %s28 = scalar_lea.sflag [#allocation3], 1
    %29 = vsyncpa %s28, 0
    loop: start=0, step=1, limit=4
    $region2: #{vision_transformer_forward.1} parent=1 // loop_pre_header
      _
    $region3: #{vision_transformer_forward.1} parent=1 // loop_header
      %s31 = sphi 0, %s35
      %p32 = scmp.ge.s32.totalorder %s31, 4
      %s41 = sphi 0, %s43
      %s44 = sphi 0, %s41
      %s45 = sphi 0, %s44
      %s61 = sphi 0, %s45
      %s65 = sphi 0, %s65
      %s67 = sphi 0, %s65
      %s68 = sphi 0, %s67
      %s82 = sphi 0, %s68
      %s86 = sphi 0, %s86
      %s88 = sphi 0, %s86
      %s89 = sphi 0, %s88
      %s103 = sphi 0, %s89
      %s107 = sphi 0, %s107
      %s109 = sphi 0, %s107
      %s110 = sphi 0, %s109
      %s124 = sphi 0, %s110
      %s128 = sphi 0, %s128
      %s130 = sphi 0, %s128
      %s131 = sphi 0, %s130
      %s145 = sphi 0, %s131
      %s149 = sphi 0, %s149
      %s151 = sphi 0, %s149
      %s152 = sphi 0, %s151
      %s166 = sphi 0, %s152
      %s170 = sphi 0, %s170
      %s172 = sphi 0, %s170
      %s173 = sphi 0, %s172
      %s187 = sphi 0, %s173
      %s191 = sphi 0, %s191
      %s193 = sphi 0, %s191
      %s194 = sphi 0, %s193
      %s208 = sphi 0, %s194
      %s212 = sphi 0, %s212
      %s214 = sphi 0, %s212
      %s215 = sphi 0, %s214
      %s229 = sphi 0, %s215
      %s233 = sphi 0, %s233
      %s235 = sphi 0, %s233
      %s236 = sphi 0, %s235
      %s250 = sphi 0, %s236
      %s254 = sphi 0, %s254
      %s256 = sphi 0, %s254
      %s257 = sphi 0, %s256
      %s271 = sphi 0, %s257
      %s275 = sphi 0, %s275
      %s277 = sphi 0, %s275
      %s278 = sphi 0, %s277
      %s292 = sphi 0, %s278
      %s296 = sphi 0, %s296
      %s298 = sphi 0, %s296
      %s299 = sphi 0, %s298
      %s313 = sphi 0, %s299
      %s317 = sphi 0, %s317
      %s319 = sphi 0, %s317
      %s320 = sphi 0, %s319
      %s334 = sphi 0, %s320
      %s338 = sphi 0, %s338
      %s340 = sphi 0, %s338
      %s341 = sphi 0, %s340
      %s355 = sphi 0, %s341
      %s359 = sphi 0, %s359
      %s361 = sphi 0, %s359
      %s362 = sphi 0, %s361
      %s376 = sphi 0, %s362
      %s380 = sphi 0, %s380
      %s382 = sphi 0, %s380
      %s383 = sphi 0, %s382
      %s397 = sphi 0, %s383
      %s401 = sphi 0, %s401
      %s403 = sphi 0, %s401
      %s404 = sphi 0, %s403
      %s418 = sphi 0, %s404
      %s422 = sphi 0, %s422
      %s424 = sphi 0, %s422
      %s425 = sphi 0, %s424
      %s439 = sphi 0, %s425
      %s443 = sphi 0, %s443
      %s445 = sphi 0, %s443
      %s446 = sphi 0, %s445
      %s460 = sphi 0, %s446
      %s464 = sphi 0, %s464
      %s466 = sphi 0, %s464
      %s467 = sphi 0, %s466
      %s481 = sphi 0, %s467
      %s485 = sphi 0, %s485
      %s487 = sphi 0, %s485
      %s488 = sphi 0, %s487
      %s502 = sphi 0, %s488
      %s508 = sphi 0, %s510
      %s511 = sphi 0, %s508
      %s512 = sphi 0, %s511
      %s528 = sphi 0, %s512
    $region4: #{vision_transformer_forward.1} parent=1 // loop_header_branch
      %34 = sbr.rel (%p32) target = $region8
    $region5: #{vision_transformer_forward.1} parent=1 // loop_body
      %s36 = ssub.s32 %s31, 1
      %s37 = ssub.s32 %s31, 2
      %s38 = sadd.s32 %s31, 1
      %s39 = ssub.s32 %s31, %s38
      %p40 = scmp.eq.s32.totalorder %s39, 0
      %s42 = sadd.s32 %s41, 1
      %s43 = scalar_select %p40, %s41, %s42
      %p46 = pneg %p40
      %p47 = scmp.eq.s32.totalorder %s31, 1
      %p48 = por %p46, %p47
      %p49 = scmp.ne.s32.totalorder %s41, %s44
      %p50 = scmp.eq.s32.totalorder %s31, 0
      %p51 = por %p49, %p50
      %p52 = scmp.ne.s32.totalorder %s41, %s44
      %p53 = scmp.eq.s32.totalorder %s36, 1
      %p54 = por %p52, %p53
      %p55 = scmp.ne.s32.totalorder %s44, %s45
      %p56 = scmp.eq.s32.totalorder %s36, 0
      %p57 = por %p55, %p56
      %p58 = scmp.ne.s32.totalorder %s44, %s45
      %p59 = scmp.eq.s32.totalorder %s37, 1
      %p60 = por %p58, %p59
      %p62 = scmp.ne.s32.totalorder %s45, %s61
      %p63 = scmp.eq.s32.totalorder %s37, 0
      %p64 = por %p62, %p63
      %s66 = sadd.s32 %s65, 1
      %p69 = scmp.eq.s32.totalorder %s31, 1
      %p70 = scmp.ne.s32.totalorder %s65, %s67
      %p71 = scmp.eq.s32.totalorder %s31, 0
      %p72 = por %p70, %p71
      %p73 = scmp.ne.s32.totalorder %s65, %s67
      %p74 = scmp.eq.s32.totalorder %s36, 1
      %p75 = por %p73, %p74
      %p76 = scmp.ne.s32.totalorder %s67, %s68
      %p77 = scmp.eq.s32.totalorder %s36, 0
      %p78 = por %p76, %p77
      %p79 = scmp.ne.s32.totalorder %s67, %s68
      %p80 = scmp.eq.s32.totalorder %s37, 1
      %p81 = por %p79, %p80
      %p83 = scmp.ne.s32.totalorder %s68, %s82
      %p84 = scmp.eq.s32.totalorder %s37, 0
      %p85 = por %p83, %p84
      %s87 = sadd.s32 %s86, 1
      %p90 = scmp.eq.s32.totalorder %s31, 1
      %p91 = scmp.ne.s32.totalorder %s86, %s88
      %p92 = scmp.eq.s32.totalorder %s31, 0
      %p93 = por %p91, %p92
      %p94 = scmp.ne.s32.totalorder %s86, %s88
      %p95 = scmp.eq.s32.totalorder %s36, 1
      %p96 = por %p94, %p95
      %p97 = scmp.ne.s32.totalorder %s88, %s89
      %p98 = scmp.eq.s32.totalorder %s36, 0
      %p99 = por %p97, %p98
      %p100 = scmp.ne.s32.totalorder %s88, %s89
      %p101 = scmp.eq.s32.totalorder %s37, 1
      %p102 = por %p100, %p101
      %p104 = scmp.ne.s32.totalorder %s89, %s103
      %p105 = scmp.eq.s32.totalorder %s37, 0
      %p106 = por %p104, %p105
      %s108 = sadd.s32 %s107, 1
      %p111 = scmp.eq.s32.totalorder %s31, 1
      %p112 = scmp.ne.s32.totalorder %s107, %s109
      %p113 = scmp.eq.s32.totalorder %s31, 0
      %p114 = por %p112, %p113
      %p115 = scmp.ne.s32.totalorder %s107, %s109
      %p116 = scmp.eq.s32.totalorder %s36, 1
      %p117 = por %p115, %p116
      %p118 = scmp.ne.s32.totalorder %s109, %s110
      %p119 = scmp.eq.s32.totalorder %s36, 0
      %p120 = por %p118, %p119
      %p121 = scmp.ne.s32.totalorder %s109, %s110
      %p122 = scmp.eq.s32.totalorder %s37, 1
      %p123 = por %p121, %p122
      %p125 = scmp.ne.s32.totalorder %s110, %s124
      %p126 = scmp.eq.s32.totalorder %s37, 0
      %p127 = por %p125, %p126
      %s129 = sadd.s32 %s128, 1
      %p132 = scmp.eq.s32.totalorder %s31, 1
      %p133 = scmp.ne.s32.totalorder %s128, %s130
      %p134 = scmp.eq.s32.totalorder %s31, 0
      %p135 = por %p133, %p134
      %p136 = scmp.ne.s32.totalorder %s128, %s130
      %p137 = scmp.eq.s32.totalorder %s36, 1
      %p138 = por %p136, %p137
      %p139 = scmp.ne.s32.totalorder %s130, %s131
      %p140 = scmp.eq.s32.totalorder %s36, 0
      %p141 = por %p139, %p140
      %p142 = scmp.ne.s32.totalorder %s130, %s131
      %p143 = scmp.eq.s32.totalorder %s37, 1
      %p144 = por %p142, %p143
      %p146 = scmp.ne.s32.totalorder %s131, %s145
      %p147 = scmp.eq.s32.totalorder %s37, 0
      %p148 = por %p146, %p147
      %s150 = sadd.s32 %s149, 1
      %p153 = scmp.eq.s32.totalorder %s31, 1
      %p154 = scmp.ne.s32.totalorder %s149, %s151
      %p155 = scmp.eq.s32.totalorder %s31, 0
      %p156 = por %p154, %p155
      %p157 = scmp.ne.s32.totalorder %s149, %s151
      %p158 = scmp.eq.s32.totalorder %s36, 1
      %p159 = por %p157, %p158
      %p160 = scmp.ne.s32.totalorder %s151, %s152
      %p161 = scmp.eq.s32.totalorder %s36, 0
      %p162 = por %p160, %p161
      %p163 = scmp.ne.s32.totalorder %s151, %s152
      %p164 = scmp.eq.s32.totalorder %s37, 1
      %p165 = por %p163, %p164
      %p167 = scmp.ne.s32.totalorder %s152, %s166
      %p168 = scmp.eq.s32.totalorder %s37, 0
      %p169 = por %p167, %p168
      %s171 = sadd.s32 %s170, 1
      %p174 = scmp.eq.s32.totalorder %s31, 1
      %p175 = scmp.ne.s32.totalorder %s170, %s172
      %p176 = scmp.eq.s32.totalorder %s31, 0
      %p177 = por %p175, %p176
      %p178 = scmp.ne.s32.totalorder %s170, %s172
      %p179 = scmp.eq.s32.totalorder %s36, 1
      %p180 = por %p178, %p179
      %p181 = scmp.ne.s32.totalorder %s172, %s173
      %p182 = scmp.eq.s32.totalorder %s36, 0
      %p183 = por %p181, %p182
      %p184 = scmp.ne.s32.totalorder %s172, %s173
      %p185 = scmp.eq.s32.totalorder %s37, 1
      %p186 = por %p184, %p185
      %p188 = scmp.ne.s32.totalorder %s173, %s187
      %p189 = scmp.eq.s32.totalorder %s37, 0
      %p190 = por %p188, %p189
      %s192 = sadd.s32 %s191, 1
      %p195 = scmp.eq.s32.totalorder %s31, 1
      %p196 = scmp.ne.s32.totalorder %s191, %s193
      %p197 = scmp.eq.s32.totalorder %s31, 0
      %p198 = por %p196, %p197
      %p199 = scmp.ne.s32.totalorder %s191, %s193
      %p200 = scmp.eq.s32.totalorder %s36, 1
      %p201 = por %p199, %p200
      %p202 = scmp.ne.s32.totalorder %s193, %s194
      %p203 = scmp.eq.s32.totalorder %s36, 0
      %p204 = por %p202, %p203
      %p205 = scmp.ne.s32.totalorder %s193, %s194
      %p206 = scmp.eq.s32.totalorder %s37, 1
      %p207 = por %p205, %p206
      %p209 = scmp.ne.s32.totalorder %s194, %s208
      %p210 = scmp.eq.s32.totalorder %s37, 0
      %p211 = por %p209, %p210
      %s213 = sadd.s32 %s212, 1
      %p216 = scmp.eq.s32.totalorder %s31, 1
      %p217 = scmp.ne.s32.totalorder %s212, %s214
      %p218 = scmp.eq.s32.totalorder %s31, 0
      %p219 = por %p217, %p218
      %p220 = scmp.ne.s32.totalorder %s212, %s214
      %p221 = scmp.eq.s32.totalorder %s36, 1
      %p222 = por %p220, %p221
      %p223 = scmp.ne.s32.totalorder %s214, %s215
      %p224 = scmp.eq.s32.totalorder %s36, 0
      %p225 = por %p223, %p224
      %p226 = scmp.ne.s32.totalorder %s214, %s215
      %p227 = scmp.eq.s32.totalorder %s37, 1
      %p228 = por %p226, %p227
      %p230 = scmp.ne.s32.totalorder %s215, %s229
      %p231 = scmp.eq.s32.totalorder %s37, 0
      %p232 = por %p230, %p231
      %s234 = sadd.s32 %s233, 1
      %p237 = scmp.eq.s32.totalorder %s31, 1
      %p238 = scmp.ne.s32.totalorder %s233, %s235
      %p239 = scmp.eq.s32.totalorder %s31, 0
      %p240 = por %p238, %p239
      %p241 = scmp.ne.s32.totalorder %s233, %s235
      %p242 = scmp.eq.s32.totalorder %s36, 1
      %p243 = por %p241, %p242
      %p244 = scmp.ne.s32.totalorder %s235, %s236
      %p245 = scmp.eq.s32.totalorder %s36, 0
      %p246 = por %p244, %p245
      %p247 = scmp.ne.s32.totalorder %s235, %s236
      %p248 = scmp.eq.s32.totalorder %s37, 1
      %p249 = por %p247, %p248
      %p251 = scmp.ne.s32.totalorder %s236, %s250
      %p252 = scmp.eq.s32.totalorder %s37, 0
      %p253 = por %p251, %p252
      %s255 = sadd.s32 %s254, 1
      %p258 = scmp.eq.s32.totalorder %s31, 1
      %p259 = scmp.ne.s32.totalorder %s254, %s256
      %p260 = scmp.eq.s32.totalorder %s31, 0
      %p261 = por %p259, %p260
      %p262 = scmp.ne.s32.totalorder %s254, %s256
      %p263 = scmp.eq.s32.totalorder %s36, 1
      %p264 = por %p262, %p263
      %p265 = scmp.ne.s32.totalorder %s256, %s257
      %p266 = scmp.eq.s32.totalorder %s36, 0
      %p267 = por %p265, %p266
      %p268 = scmp.ne.s32.totalorder %s256, %s257
      %p269 = scmp.eq.s32.totalorder %s37, 1
      %p270 = por %p268, %p269
      %p272 = scmp.ne.s32.totalorder %s257, %s271
      %p273 = scmp.eq.s32.totalorder %s37, 0
      %p274 = por %p272, %p273
      %s276 = sadd.s32 %s275, 1
      %p279 = scmp.eq.s32.totalorder %s31, 1
      %p280 = scmp.ne.s32.totalorder %s275, %s277
      %p281 = scmp.eq.s32.totalorder %s31, 0
      %p282 = por %p280, %p281
      %p283 = scmp.ne.s32.totalorder %s275, %s277
      %p284 = scmp.eq.s32.totalorder %s36, 1
      %p285 = por %p283, %p284
      %p286 = scmp.ne.s32.totalorder %s277, %s278
      %p287 = scmp.eq.s32.totalorder %s36, 0
      %p288 = por %p286, %p287
      %p289 = scmp.ne.s32.totalorder %s277, %s278
      %p290 = scmp.eq.s32.totalorder %s37, 1
      %p291 = por %p289, %p290
      %p293 = scmp.ne.s32.totalorder %s278, %s292
      %p294 = scmp.eq.s32.totalorder %s37, 0
      %p295 = por %p293, %p294
      %s297 = sadd.s32 %s296, 1
      %p300 = scmp.eq.s32.totalorder %s31, 1
      %p301 = scmp.ne.s32.totalorder %s296, %s298
      %p302 = scmp.eq.s32.totalorder %s31, 0
      %p303 = por %p301, %p302
      %p304 = scmp.ne.s32.totalorder %s296, %s298
      %p305 = scmp.eq.s32.totalorder %s36, 1
      %p306 = por %p304, %p305
      %p307 = scmp.ne.s32.totalorder %s298, %s299
      %p308 = scmp.eq.s32.totalorder %s36, 0
      %p309 = por %p307, %p308
      %p310 = scmp.ne.s32.totalorder %s298, %s299
      %p311 = scmp.eq.s32.totalorder %s37, 1
      %p312 = por %p310, %p311
      %p314 = scmp.ne.s32.totalorder %s299, %s313
      %p315 = scmp.eq.s32.totalorder %s37, 0
      %p316 = por %p314, %p315
      %s318 = sadd.s32 %s317, 1
      %p321 = scmp.eq.s32.totalorder %s31, 1
      %p322 = scmp.ne.s32.totalorder %s317, %s319
      %p323 = scmp.eq.s32.totalorder %s31, 0
      %p324 = por %p322, %p323
      %p325 = scmp.ne.s32.totalorder %s317, %s319
      %p326 = scmp.eq.s32.totalorder %s36, 1
      %p327 = por %p325, %p326
      %p328 = scmp.ne.s32.totalorder %s319, %s320
      %p329 = scmp.eq.s32.totalorder %s36, 0
      %p330 = por %p328, %p329
      %p331 = scmp.ne.s32.totalorder %s319, %s320
      %p332 = scmp.eq.s32.totalorder %s37, 1
      %p333 = por %p331, %p332
      %p335 = scmp.ne.s32.totalorder %s320, %s334
      %p336 = scmp.eq.s32.totalorder %s37, 0
      %p337 = por %p335, %p336
      %s339 = sadd.s32 %s338, 1
      %p342 = scmp.eq.s32.totalorder %s31, 1
      %p343 = scmp.ne.s32.totalorder %s338, %s340
      %p344 = scmp.eq.s32.totalorder %s31, 0
      %p345 = por %p343, %p344
      %p346 = scmp.ne.s32.totalorder %s338, %s340
      %p347 = scmp.eq.s32.totalorder %s36, 1
      %p348 = por %p346, %p347
      %p349 = scmp.ne.s32.totalorder %s340, %s341
      %p350 = scmp.eq.s32.totalorder %s36, 0
      %p351 = por %p349, %p350
      %p352 = scmp.ne.s32.totalorder %s340, %s341
      %p353 = scmp.eq.s32.totalorder %s37, 1
      %p354 = por %p352, %p353
      %p356 = scmp.ne.s32.totalorder %s341, %s355
      %p357 = scmp.eq.s32.totalorder %s37, 0
      %p358 = por %p356, %p357
      %s360 = sadd.s32 %s359, 1
      %p363 = scmp.eq.s32.totalorder %s31, 1
      %p364 = scmp.ne.s32.totalorder %s359, %s361
      %p365 = scmp.eq.s32.totalorder %s31, 0
      %p366 = por %p364, %p365
      %p367 = scmp.ne.s32.totalorder %s359, %s361
      %p368 = scmp.eq.s32.totalorder %s36, 1
      %p369 = por %p367, %p368
      %p370 = scmp.ne.s32.totalorder %s361, %s362
      %p371 = scmp.eq.s32.totalorder %s36, 0
      %p372 = por %p370, %p371
      %p373 = scmp.ne.s32.totalorder %s361, %s362
      %p374 = scmp.eq.s32.totalorder %s37, 1
      %p375 = por %p373, %p374
      %p377 = scmp.ne.s32.totalorder %s362, %s376
      %p378 = scmp.eq.s32.totalorder %s37, 0
      %p379 = por %p377, %p378
      %s381 = sadd.s32 %s380, 1
      %p384 = scmp.eq.s32.totalorder %s31, 1
      %p385 = scmp.ne.s32.totalorder %s380, %s382
      %p386 = scmp.eq.s32.totalorder %s31, 0
      %p387 = por %p385, %p386
      %p388 = scmp.ne.s32.totalorder %s380, %s382
      %p389 = scmp.eq.s32.totalorder %s36, 1
      %p390 = por %p388, %p389
      %p391 = scmp.ne.s32.totalorder %s382, %s383
      %p392 = scmp.eq.s32.totalorder %s36, 0
      %p393 = por %p391, %p392
      %p394 = scmp.ne.s32.totalorder %s382, %s383
      %p395 = scmp.eq.s32.totalorder %s37, 1
      %p396 = por %p394, %p395
      %p398 = scmp.ne.s32.totalorder %s383, %s397
      %p399 = scmp.eq.s32.totalorder %s37, 0
      %p400 = por %p398, %p399
      %s402 = sadd.s32 %s401, 1
      %p405 = scmp.eq.s32.totalorder %s31, 1
      %p406 = scmp.ne.s32.totalorder %s401, %s403
      %p407 = scmp.eq.s32.totalorder %s31, 0
      %p408 = por %p406, %p407
      %p409 = scmp.ne.s32.totalorder %s401, %s403
      %p410 = scmp.eq.s32.totalorder %s36, 1
      %p411 = por %p409, %p410
      %p412 = scmp.ne.s32.totalorder %s403, %s404
      %p413 = scmp.eq.s32.totalorder %s36, 0
      %p414 = por %p412, %p413
      %p415 = scmp.ne.s32.totalorder %s403, %s404
      %p416 = scmp.eq.s32.totalorder %s37, 1
      %p417 = por %p415, %p416
      %p419 = scmp.ne.s32.totalorder %s404, %s418
      %p420 = scmp.eq.s32.totalorder %s37, 0
      %p421 = por %p419, %p420
      %s423 = sadd.s32 %s422, 1
      %p426 = scmp.eq.s32.totalorder %s31, 1
      %p427 = scmp.ne.s32.totalorder %s422, %s424
      %p428 = scmp.eq.s32.totalorder %s31, 0
      %p429 = por %p427, %p428
      %p430 = scmp.ne.s32.totalorder %s422, %s424
      %p431 = scmp.eq.s32.totalorder %s36, 1
      %p432 = por %p430, %p431
      %p433 = scmp.ne.s32.totalorder %s424, %s425
      %p434 = scmp.eq.s32.totalorder %s36, 0
      %p435 = por %p433, %p434
      %p436 = scmp.ne.s32.totalorder %s424, %s425
      %p437 = scmp.eq.s32.totalorder %s37, 1
      %p438 = por %p436, %p437
      %p440 = scmp.ne.s32.totalorder %s425, %s439
      %p441 = scmp.eq.s32.totalorder %s37, 0
      %p442 = por %p440, %p441
      %s444 = sadd.s32 %s443, 1
      %p447 = scmp.eq.s32.totalorder %s31, 1
      %p448 = scmp.ne.s32.totalorder %s443, %s445
      %p449 = scmp.eq.s32.totalorder %s31, 0
      %p450 = por %p448, %p449
      %p451 = scmp.ne.s32.totalorder %s443, %s445
      %p452 = scmp.eq.s32.totalorder %s36, 1
      %p453 = por %p451, %p452
      %p454 = scmp.ne.s32.totalorder %s445, %s446
      %p455 = scmp.eq.s32.totalorder %s36, 0
      %p456 = por %p454, %p455
      %p457 = scmp.ne.s32.totalorder %s445, %s446
      %p458 = scmp.eq.s32.totalorder %s37, 1
      %p459 = por %p457, %p458
      %p461 = scmp.ne.s32.totalorder %s446, %s460
      %p462 = scmp.eq.s32.totalorder %s37, 0
      %p463 = por %p461, %p462
      %s465 = sadd.s32 %s464, 1
      %p468 = scmp.eq.s32.totalorder %s31, 1
      %p469 = scmp.ne.s32.totalorder %s464, %s466
      %p470 = scmp.eq.s32.totalorder %s31, 0
      %p471 = por %p469, %p470
      %p472 = scmp.ne.s32.totalorder %s464, %s466
      %p473 = scmp.eq.s32.totalorder %s36, 1
      %p474 = por %p472, %p473
      %p475 = scmp.ne.s32.totalorder %s466, %s467
      %p476 = scmp.eq.s32.totalorder %s36, 0
      %p477 = por %p475, %p476
      %p478 = scmp.ne.s32.totalorder %s466, %s467
      %p479 = scmp.eq.s32.totalorder %s37, 1
      %p480 = por %p478, %p479
      %p482 = scmp.ne.s32.totalorder %s467, %s481
      %p483 = scmp.eq.s32.totalorder %s37, 0
      %p484 = por %p482, %p483
      %s486 = sadd.s32 %s485, 1
      %p489 = scmp.eq.s32.totalorder %s31, 1
      %p490 = scmp.ne.s32.totalorder %s485, %s487
      %p491 = scmp.eq.s32.totalorder %s31, 0
      %p492 = por %p490, %p491
      %p493 = scmp.ne.s32.totalorder %s485, %s487
      %p494 = scmp.eq.s32.totalorder %s36, 1
      %p495 = por %p493, %p494
      %p496 = scmp.ne.s32.totalorder %s487, %s488
      %p497 = scmp.eq.s32.totalorder %s36, 0
      %p498 = por %p496, %p497
      %p499 = scmp.ne.s32.totalorder %s487, %s488
      %p500 = scmp.eq.s32.totalorder %s37, 1
      %p501 = por %p499, %p500
      %p503 = scmp.ne.s32.totalorder %s488, %s502
      %p504 = scmp.eq.s32.totalorder %s37, 0
      %p505 = por %p503, %p504
      %s506 = ssub.s32 %s31, %s38
      %p507 = scmp.eq.s32.totalorder %s506, 0
      %s509 = sadd.s32 %s508, 1
      %s510 = scalar_select %p507, %s508, %s509
      %p513 = pneg %p507
      %p514 = scmp.eq.s32.totalorder %s31, 1
      %p515 = por %p513, %p514
      %p516 = scmp.ne.s32.totalorder %s508, %s511
      %p517 = scmp.eq.s32.totalorder %s31, 0
      %p518 = por %p516, %p517
      %p519 = scmp.ne.s32.totalorder %s508, %s511
      %p520 = scmp.eq.s32.totalorder %s36, 1
      %p521 = por %p519, %p520
      %p522 = scmp.ne.s32.totalorder %s511, %s512
      %p523 = scmp.eq.s32.totalorder %s36, 0
      %p524 = por %p522, %p523
      %p525 = scmp.ne.s32.totalorder %s511, %s512
      %p526 = scmp.eq.s32.totalorder %s37, 1
      %p527 = por %p525, %p526
      %p529 = scmp.ne.s32.totalorder %s512, %s528
      %p530 = scmp.eq.s32.totalorder %s37, 0
      %p531 = por %p529, %p530
      %p532 = scmp.le.s32.totalorder 1, %s31
      %p533 = scmp.lt.s32.totalorder %s31, 3
      %p534 = pnand %p532, %p533
      %p535 = pneg %p534
      // Predicated region
      $region9: #{vision_transformer_forward.1} parent=5 // pred_check
        _
      $region10: #{vision_transformer_forward.1} parent=5 // pred_check_branch
        %537 = sbr.rel (%p534) target = $region12
      $region11: #{vision_transformer_forward.1} parent=5 // pred_region
        %s538 = ssub.s32 %s31, 1
        // Predicated region
        $region13: #{vision_transformer_forward.1} parent=11 // pred_check
          %p539 = pneg %p78
        $region14: #{vision_transformer_forward.1} parent=11 // pred_check_branch
          %541 = sbr.rel (%p539) target = $region16
        $region15: #{vision_transformer_forward.1} parent=11 // pred_region
          _
        $region16: #{vision_transformer_forward.1} parent=11 // pred_fallthru
          _
        // Predicated region
        $region17: #{vision_transformer_forward.1} parent=11 // pred_check
          %p542 = pneg %p99
        $region18: #{vision_transformer_forward.1} parent=11 // pred_check_branch
          %544 = sbr.rel (%p542) target = $region20
        $region19: #{vision_transformer_forward.1} parent=11 // pred_region
          _
        $region20: #{vision_transformer_forward.1} parent=11 // pred_fallthru
          _
        // Predicated region
        $region21: #{vision_transformer_forward.1} parent=11 // pred_check
          %p545 = pneg %p120
        $region22: #{vision_transformer_forward.1} parent=11 // pred_check_branch
          %547 = sbr.rel (%p545) target = $region24
        $region23: #{vision_transformer_forward.1} parent=11 // pred_region
          _
        $region24: #{vision_transformer_forward.1} parent=11 // pred_fallthru
          _
        // Predicated region
        $region25: #{vision_transformer_forward.1} parent=11 // pred_check
          %p548 = pneg %p141
        $region26: #{vision_transformer_forward.1} parent=11 // pred_check_branch
          %550 = sbr.rel (%p548) target = $region28
        $region27: #{vision_transformer_forward.1} parent=11 // pred_region
          _
        $region28: #{vision_transformer_forward.1} parent=11 // pred_fallthru
          _
        // Predicated region
        $region29: #{vision_transformer_forward.1} parent=11 // pred_check
          %p551 = pneg %p162
        $region30: #{vision_transformer_forward.1} parent=11 // pred_check_branch
          %553 = sbr.rel (%p551) target = $region32
        $region31: #{vision_transformer_forward.1} parent=11 // pred_region
          _
        $region32: #{vision_transformer_forward.1} parent=11 // pred_fallthru
          _
        // Predicated region
        $region33: #{vision_transformer_forward.1} parent=11 // pred_check
          %p554 = pneg %p183
        $region34: #{vision_transformer_forward.1} parent=11 // pred_check_branch
          %556 = sbr.rel (%p554) target = $region36
        $region35: #{vision_transformer_forward.1} parent=11 // pred_region
          _
        $region36: #{vision_transformer_forward.1} parent=11 // pred_fallthru
          _
        // Predicated region
        $region37: #{vision_transformer_forward.1} parent=11 // pred_check
          %p557 = pneg %p204
        $region38: #{vision_transformer_forward.1} parent=11 // pred_check_branch
          %559 = sbr.rel (%p557) target = $region40
        $region39: #{vision_transformer_forward.1} parent=11 // pred_region
          _
        $region40: #{vision_transformer_forward.1} parent=11 // pred_fallthru
          _
        // Predicated region
        $region41: #{vision_transformer_forward.1} parent=11 // pred_check
          %p560 = pneg %p225
        $region42: #{vision_transformer_forward.1} parent=11 // pred_check_branch
          %562 = sbr.rel (%p560) target = $region44
        $region43: #{vision_transformer_forward.1} parent=11 // pred_region
          _
        $region44: #{vision_transformer_forward.1} parent=11 // pred_fallthru
          _
        // Predicated region
        $region45: #{vision_transformer_forward.1} parent=11 // pred_check
          %p563 = pneg %p246
        $region46: #{vision_transformer_forward.1} parent=11 // pred_check_branch
          %565 = sbr.rel (%p563) target = $region48
        $region47: #{vision_transformer_forward.1} parent=11 // pred_region
          _
        $region48: #{vision_transformer_forward.1} parent=11 // pred_fallthru
          _
        // Predicated region
        $region49: #{vision_transformer_forward.1} parent=11 // pred_check
          %p566 = pneg %p267
        $region50: #{vision_transformer_forward.1} parent=11 // pred_check_branch
          %568 = sbr.rel (%p566) target = $region52
        $region51: #{vision_transformer_forward.1} parent=11 // pred_region
          _
        $region52: #{vision_transformer_forward.1} parent=11 // pred_fallthru
          _
        // Predicated region
        $region53: #{vision_transformer_forward.1} parent=11 // pred_check
          %p569 = pneg %p288
        $region54: #{vision_transformer_forward.1} parent=11 // pred_check_branch
          %571 = sbr.rel (%p569) target = $region56
        $region55: #{vision_transformer_forward.1} parent=11 // pred_region
          _
        $region56: #{vision_transformer_forward.1} parent=11 // pred_fallthru
          _
        // Predicated region
        $region57: #{vision_transformer_forward.1} parent=11 // pred_check
          %p572 = pneg %p309
        $region58: #{vision_transformer_forward.1} parent=11 // pred_check_branch
          %574 = sbr.rel (%p572) target = $region60
        $region59: #{vision_transformer_forward.1} parent=11 // pred_region
          _
        $region60: #{vision_transformer_forward.1} parent=11 // pred_fallthru
          _
        // Predicated region
        $region61: #{vision_transformer_forward.1} parent=11 // pred_check
          %p575 = pneg %p330
        $region62: #{vision_transformer_forward.1} parent=11 // pred_check_branch
          %577 = sbr.rel (%p575) target = $region64
        $region63: #{vision_transformer_forward.1} parent=11 // pred_region
          _
        $region64: #{vision_transformer_forward.1} parent=11 // pred_fallthru
          _
        // Predicated region
        $region65: #{vision_transformer_forward.1} parent=11 // pred_check
          %p578 = pneg %p351
        $region66: #{vision_transformer_forward.1} parent=11 // pred_check_branch
          %580 = sbr.rel (%p578) target = $region68
        $region67: #{vision_transformer_forward.1} parent=11 // pred_region
          _
        $region68: #{vision_transformer_forward.1} parent=11 // pred_fallthru
          _
        // Predicated region
        $region69: #{vision_transformer_forward.1} parent=11 // pred_check
          %p581 = pneg %p372
        $region70: #{vision_transformer_forward.1} parent=11 // pred_check_branch
          %583 = sbr.rel (%p581) target = $region72
        $region71: #{vision_transformer_forward.1} parent=11 // pred_region
          _
        $region72: #{vision_transformer_forward.1} parent=11 // pred_fallthru
          _
        // Predicated region
        $region73: #{vision_transformer_forward.1} parent=11 // pred_check
          %p584 = pneg %p393
        $region74: #{vision_transformer_forward.1} parent=11 // pred_check_branch
          %586 = sbr.rel (%p584) target = $region76
        $region75: #{vision_transformer_forward.1} parent=11 // pred_region
          _
        $region76: #{vision_transformer_forward.1} parent=11 // pred_fallthru
          _
        // Predicated region
        $region77: #{vision_transformer_forward.1} parent=11 // pred_check
          %p587 = pneg %p414
        $region78: #{vision_transformer_forward.1} parent=11 // pred_check_branch
          %589 = sbr.rel (%p587) target = $region80
        $region79: #{vision_transformer_forward.1} parent=11 // pred_region
          _
        $region80: #{vision_transformer_forward.1} parent=11 // pred_fallthru
          _
        // Predicated region
        $region81: #{vision_transformer_forward.1} parent=11 // pred_check
          %p590 = pneg %p435
        $region82: #{vision_transformer_forward.1} parent=11 // pred_check_branch
          %592 = sbr.rel (%p590) target = $region84
        $region83: #{vision_transformer_forward.1} parent=11 // pred_region
          _
        $region84: #{vision_transformer_forward.1} parent=11 // pred_fallthru
          _
        // Predicated region
        $region85: #{vision_transformer_forward.1} parent=11 // pred_check
          %p593 = pneg %p456
        $region86: #{vision_transformer_forward.1} parent=11 // pred_check_branch
          %595 = sbr.rel (%p593) target = $region88
        $region87: #{vision_transformer_forward.1} parent=11 // pred_region
          _
        $region88: #{vision_transformer_forward.1} parent=11 // pred_fallthru
          _
        // Predicated region
        $region89: #{vision_transformer_forward.1} parent=11 // pred_check
          %p596 = pneg %p477
        $region90: #{vision_transformer_forward.1} parent=11 // pred_check_branch
          %598 = sbr.rel (%p596) target = $region92
        $region91: #{vision_transformer_forward.1} parent=11 // pred_region
          _
        $region92: #{vision_transformer_forward.1} parent=11 // pred_fallthru
          _
        // Predicated region
        $region93: #{vision_transformer_forward.1} parent=11 // pred_check
          %p599 = pneg %p498
        $region94: #{vision_transformer_forward.1} parent=11 // pred_check_branch
          %601 = sbr.rel (%p599) target = $region96
        $region95: #{vision_transformer_forward.1} parent=11 // pred_region
          _
        $region96: #{vision_transformer_forward.1} parent=11 // pred_fallthru
          _
      $region12: #{vision_transformer_forward.1} parent=5 // pred_fallthru
        _
      %p602 = scmp.lt.s32.totalorder %s31, 2
      // Predicated region
      $region97: #{vision_transformer_forward.1} parent=5 // pred_check
        %p603 = pneg %p602
      $region98: #{vision_transformer_forward.1} parent=5 // pred_check_branch
        %605 = sbr.rel (%p603) target = $region100
      $region99: #{vision_transformer_forward.1} parent=5 // pred_region
        // Predicated region
        $region101: #{vision_transformer_forward.1} parent=99 // pred_check
          %p606 = pneg %p51
        $region102: #{vision_transformer_forward.1} parent=99 // pred_check_branch
          %608 = sbr.rel (%p606) target = $region104
        $region103: #{vision_transformer_forward.1} parent=99 // pred_region
          %p609 = scmp.lt.s32.totalorder %s31, 1
          %s610 = scalar_select %p609, %s31, 1
          %s611 = smul.addr %s610, 2
          %s612 = smul.addr %s611, 8
          %s613 = scalar_lea.vmem %s0, %s612
        $region104: #{vision_transformer_forward.1} parent=99 // pred_fallthru
          _
      $region100: #{vision_transformer_forward.1} parent=5 // pred_fallthru
        _
      %p614 = scmp.le.s32.totalorder 1, %s31
      %p615 = scmp.lt.s32.totalorder %s31, 3
      %p616 = pnand %p614, %p615
      %p617 = pneg %p616
      // Predicated region
      $region105: #{vision_transformer_forward.1} parent=5 // pred_check
        _
      $region106: #{vision_transformer_forward.1} parent=5 // pred_check_branch
        %619 = sbr.rel (%p616) target = $region108
      $region107: #{vision_transformer_forward.1} parent=5 // pred_region
        %s620 = ssub.s32 %s31, 1
        %p621 = scmp.lt.s32.totalorder %s36, 1
        %s622 = scalar_select %p621, %s36, 1
        %s623 = smul.addr %s622, 2
        %s624 = smul.addr %s623, 8
        %s625 = scalar_lea.vmem %s0, %s624
        %p626 = pneg %p57
        %p627 = pneg %p54
        %p628 = pneg %p78
        %p629 = pneg %p75
        %p630 = pneg %p99
        %p631 = pneg %p96
        %p632 = pneg %p120
        %p633 = pneg %p117
        %p634 = pneg %p141
        %p635 = pneg %p138
        %p636 = pneg %p162
        %p637 = pneg %p159
        %p638 = pneg %p183
        %p639 = pneg %p180
        %p640 = pneg %p204
        %p641 = pneg %p201
        %p642 = pneg %p225
        %p643 = pneg %p222
        %p644 = pneg %p246
        %p645 = pneg %p243
        %p646 = pneg %p267
        %p647 = pneg %p264
        %p648 = pneg %p288
        %p649 = pneg %p285
        %p650 = pneg %p309
        %p651 = pneg %p306
        %p652 = pneg %p330
        %p653 = pneg %p327
        %p654 = pneg %p351
        %p655 = pneg %p348
        %p656 = pneg %p372
        %p657 = pneg %p369
        %p658 = pneg %p393
        %p659 = pneg %p390
        %p660 = pneg %p414
        %p661 = pneg %p411
        %p662 = pneg %p435
        %p663 = pneg %p432
        %p664 = pneg %p456
        %p665 = pneg %p453
        %p666 = pneg %p477
        %p667 = pneg %p474
        %p668 = pneg %p498
        %p669 = pneg %p495
        %p670 = pneg %p524
        %p671 = pneg %p521
        %s672 = sand.u32 %s511, 1
        %s673 = scalar_lea.sflag [#allocation3], %s672
        %s674 = sand.u32 %s511, 1
        %s675 = scalar_lea.vmem [#allocation2], %s674
        %p676 = scmp.lt.s32.totalorder %s36, 1
        %s677 = scalar_select %p676, %s36, 1
        %s678 = smul.addr %s677, 2
        %s679 = smul.addr %s678, 8
        %s680 = scalar_lea.vmem %s0, %s679
        %v682 = vld [vmem:[%s680] sm:$0xff]
        %v683 = vld [vmem:[%s680 + $0x8] sm:$0xff]
        %v684 = vpack.c.bf16 %v683, %v682
        %v685 = vld [vmem:[%s2] sm:$0xf]
        %v686 = vld [vmem:[%s2 + $0x4] sm:$0xf]
        %v687 = vld [vmem:[%s2 + $0x8] sm:$0xf]
        %v688 = vld [vmem:[%s2 + $0xc] sm:$0xf]
        %v689 = vld [vmem:[%s2 + $0x10] sm:$0xf]
        %v690 = vld [vmem:[%s2 + $0x14] sm:$0xf]
        %v691 = vld [vmem:[%s2 + $0x18] sm:$0xf]
        %v692 = vld [vmem:[%s2 + $0x1c] sm:$0xf]
        %v693 = vld [vmem:[%s3] sm:$0x1]
        %v695 = vlaneseq
        %v696 = vshrl.u32 %v695, 7
        %v697 = vsub.s32 0, %v696
        %v698 = vrot.slane %v693, %v697
        %v708 = vunpack.c.l.b16 %v685
        %v709 = vunpack.c.l.b16 %v686
        %v710 = vunpack.c.l.b16 %v687
        %v711 = vunpack.c.l.b16 %v688
        %v712 = vunpack.c.l.b16 %v689
        %v713 = vunpack.c.l.b16 %v690
        %v714 = vunpack.c.l.b16 %v691
        %v715 = vunpack.c.l.b16 %v692
        %v716 = vpack.c.b16 %v709, %v708
        %v717 = vpack.c.b16 %v711, %v710
        %v718 = vpack.c.b16 %v713, %v712
        %v719 = vpack.c.b16 %v715, %v714
        %vm724 = vcmask 523264
        %v726 = vsel %vm724, %v684, 0
        %728 = vmatprep.subr.bf16.mxu0 0
        %729 = vmatpush1.bf16.msra.mxu0 %v716
        %730 = vmatprep.subr.bf16.mxu0 0
        %731 = vmatpush1.bf16.msra.mxu0 %v717
        %732 = vmatprep.subr.bf16.mxu0 0
        %733 = vmatpush1.bf16.msra.mxu0 %v718
        %734 = vmatprep.subr.bf16.mxu0 0
        %735 = vmatpush1.bf16.msra.mxu0 %v719
        %736 = vmatprep.subr.bf16.mxu0 0
        %737 = vmatpush1.bf16.msra.mxu0 0
        %738 = vmatprep.subr.bf16.mxu0 0
        %739 = vmatpush1.bf16.msra.mxu0 0
        %740 = vmatprep.subr.bf16.mxu0 0
        %741 = vmatpush1.bf16.msra.mxu0 0
        %742 = vmatprep.subr.bf16.mxu0 0
        %743 = vmatpush1.bf16.msra.mxu0 0
        %744 = vmatprep.subr.bf16.mxu0 0
        %745 = vmatpush1.bf16.msra.mxu0 0
        %746 = vmatprep.subr.bf16.mxu0 0
        %747 = vmatpush1.bf16.msra.mxu0 0
        %748 = vmatprep.subr.bf16.mxu0 0
        %749 = vmatpush1.bf16.msra.mxu0 0
        %750 = vmatprep.subr.bf16.mxu0 0
        %751 = vmatpush1.bf16.msra.mxu0 0
        %752 = vmatprep.subr.bf16.mxu0 0
        %753 = vmatpush1.bf16.msra.mxu0 0
        %754 = vmatprep.subr.bf16.mxu0 0
        %755 = vmatpush1.bf16.msra.mxu0 0
        %756 = vmatprep.subr.bf16.mxu0 0
        %757 = vmatpush1.bf16.msra.mxu0 0
        %758 = vmatprep.subr.bf16.mxu0 0
        %759 = vmatpush1.bf16.msra.mxu0 0
        %760 = vmatprep.mubr.bf16.mxu0 0
        %761 = vmatmul.mubr.bf16.gmra.mrb[0].mxu0 %v726
        %v762 = vpop.f32.mrb[0].mxu0
        %v763 = vadd.f32 %v698, %v762
        %v764 = vpop.f32.mrb[0].mxu0
        %v765 = vpop.f32.mrb[0].mxu0
        %v766 = vadd.f32 %v698, %v765
        %v767 = vpop.f32.mrb[0].mxu0
        %768 = vdwg.mxu0
        %v769 = vld [vmem:[%s1] sm:$0xff]
        %v770 = vld [vmem:[%s1 + $0x8] sm:$0xff]
        %v771 = vadd.f32 %v763, %v769
        %v772 = vadd.f32 %v766, %v770
        loop: start=0, step=1, limit=2
        $region109: #{vision_transformer_forward.1} parent=107 // loop_pre_header
          _
        $region110: #{vision_transformer_forward.1} parent=107 // loop_header
          %s774 = sphi 0, %s778
          %p775 = scmp.ge.s32.totalorder %s774, 2
          %v779 = vphi %v771, %v2890
          %v780 = vphi %v772, %v2891
        $region111: #{vision_transformer_forward.1} parent=107 // loop_header_branch
          %777 = sbr.rel (%p775) target = $region115
        $region112: #{vision_transformer_forward.1} parent=107 // loop_body
          %v781 = vld [vmem:[%s4] sm:$0x1]
          %v782 = vld [vmem:[%s5] sm:$0x1]
          %vm783 = vcmask 261120
          %v784 = vsel %vm783, %v779, 0.0
          %785 = vadd.xlane.f32.xlu0 %v784
          %v786 = vpop.xlane.xlu0 %785
          %v787 = vsel %vm783, %v780, 0.0
          %788 = vadd.xlane.f32.xlu0 %v787
          %v789 = vpop.xlane.xlu0 %788
          %v790 = vrcp.pop 32.0
          %v791 = vmul.f32 %v786, %v790
          %v792 = vmul.f32 %v789, %v790
          %v793 = vsub.f32 %v779, %v791
          %v794 = vsub.f32 %v780, %v792
          %v795 = vmul.f32 %v793, %v793
          %v796 = vmul.f32 %v794, %v794
          %v797 = vsel %vm783, %v795, 0.0
          %798 = vadd.xlane.f32.xlu0 %v797
          %v799 = vpop.xlane.xlu0 %798
          %v800 = vsel %vm783, %v796, 0.0
          %801 = vadd.xlane.f32.xlu0 %v800
          %v802 = vpop.xlane.xlu0 %801
          %v803 = vmul.f32 %v799, %v790
          %v804 = vmul.f32 %v802, %v790
          %v805 = vadd.f32 %v803, 1e-05
          %v806 = vadd.f32 %v804, 1e-05
          %v807 = vrsqrt.pop %v805
          %v808 = vrsqrt.pop %v806
          %v809 = vmul.f32 %v793, %v807
          %v810 = vmul.f32 %v794, %v808
          %v812 = vlaneseq
          %v813 = vshrl.u32 %v812, 7
          %v814 = vsub.s32 0, %v813
          %v815 = vrot.slane %v781, %v814
          %v817 = vmul.f32 %v809, %v815
          %v818 = vmul.f32 %v810, %v815
          %v820 = vlaneseq
          %v821 = vshrl.u32 %v820, 7
          %v822 = vsub.s32 0, %v821
          %v823 = vrot.slane %v782, %v822
          %v825 = vadd.f32 %v817, %v823
          %v826 = vadd.f32 %v818, %v823
          %v827 = vpack.c.bf16 %v826, %v825
          %v828 = vld [vmem:[%s6] sm:$0xf]
          %v829 = vld [vmem:[%s6 + $0x4] sm:$0xf]
          %v830 = vld [vmem:[%s6 + $0x8] sm:$0xf]
          %v831 = vld [vmem:[%s6 + $0xc] sm:$0xf]
          %v832 = vld [vmem:[%s7] sm:$0x1]
          %v834 = vlaneseq
          %v835 = vshrl.u32 %v834, 7
          %v836 = vsub.s32 0, %v835
          %v837 = vrot.slane %v832, %v836
          %v843 = vunpack.c.l.b16 %v828
          %v844 = vunpack.c.l.b16 %v829
          %v845 = vunpack.c.l.b16 %v830
          %v846 = vunpack.c.l.b16 %v831
          %v847 = vpack.c.b16 %v844, %v843
          %v848 = vpack.c.b16 %v846, %v845
          %v852 = vsel %vm783, %v827, 0
          %854 = vmatprep.subr.bf16.mxu0 0
          %855 = vmatpush1.bf16.msra.mxu0 %v847
          %856 = vmatprep.subr.bf16.mxu0 0
          %857 = vmatpush1.bf16.msra.mxu0 %v848
          %858 = vmatprep.subr.bf16.mxu0 0
          %859 = vmatpush1.bf16.msra.mxu0 0
          %860 = vmatprep.subr.bf16.mxu0 0
          %861 = vmatpush1.bf16.msra.mxu0 0
          %862 = vmatprep.subr.bf16.mxu0 0
          %863 = vmatpush1.bf16.msra.mxu0 0
          %864 = vmatprep.subr.bf16.mxu0 0
          %865 = vmatpush1.bf16.msra.mxu0 0
          %866 = vmatprep.subr.bf16.mxu0 0
          %867 = vmatpush1.bf16.msra.mxu0 0
          %868 = vmatprep.subr.bf16.mxu0 0
          %869 = vmatpush1.bf16.msra.mxu0 0
          %870 = vmatprep.subr.bf16.mxu0 0
          %871 = vmatpush1.bf16.msra.mxu0 0
          %872 = vmatprep.subr.bf16.mxu0 0
          %873 = vmatpush1.bf16.msra.mxu0 0
          %874 = vmatprep.subr.bf16.mxu0 0
          %875 = vmatpush1.bf16.msra.mxu0 0
          %876 = vmatprep.subr.bf16.mxu0 0
          %877 = vmatpush1.bf16.msra.mxu0 0
          %878 = vmatprep.subr.bf16.mxu0 0
          %879 = vmatpush1.bf16.msra.mxu0 0
          %880 = vmatprep.subr.bf16.mxu0 0
          %881 = vmatpush1.bf16.msra.mxu0 0
          %882 = vmatprep.subr.bf16.mxu0 0
          %883 = vmatpush1.bf16.msra.mxu0 0
          %884 = vmatprep.subr.bf16.mxu0 0
          %885 = vmatpush1.bf16.msra.mxu0 0
          %886 = vmatprep.mubr.bf16.mxu0 0
          %887 = vmatmul.mubr.bf16.gmra.mrb[0].mxu0 %v852
          %v888 = vpop.f32.mrb[0].mxu0
          %v889 = vadd.f32 %v837, %v888
          %v890 = vpop.f32.mrb[0].mxu0
          %v891 = vpop.f32.mrb[0].mxu0
          %v892 = vadd.f32 %v837, %v891
          %v893 = vpop.f32.mrb[0].mxu0
          %894 = vdwg.mxu0
          %v895 = vld [vmem:[%s8] sm:$0xf]
          %v896 = vld [vmem:[%s8 + $0x4] sm:$0xf]
          %v897 = vld [vmem:[%s8 + $0x8] sm:$0xf]
          %v898 = vld [vmem:[%s8 + $0xc] sm:$0xf]
          %v899 = vld [vmem:[%s9] sm:$0x1]
          %v901 = vlaneseq
          %v902 = vshrl.u32 %v901, 7
          %v903 = vsub.s32 0, %v902
          %v904 = vrot.slane %v899, %v903
          %v910 = vunpack.c.l.b16 %v895
          %v911 = vunpack.c.l.b16 %v896
          %v912 = vunpack.c.l.b16 %v897
          %v913 = vunpack.c.l.b16 %v898
          %v914 = vpack.c.b16 %v911, %v910
          %v915 = vpack.c.b16 %v913, %v912
          %918 = vmatprep.subr.bf16.mxu0 0
          %919 = vmatpush1.bf16.msra.mxu0 %v914
          %920 = vmatprep.subr.bf16.mxu0 0
          %921 = vmatpush1.bf16.msra.mxu0 %v915
          %922 = vmatprep.subr.bf16.mxu0 0
          %923 = vmatpush1.bf16.msra.mxu0 0
          %924 = vmatprep.subr.bf16.mxu0 0
          %925 = vmatpush1.bf16.msra.mxu0 0
          %926 = vmatprep.subr.bf16.mxu0 0
          %927 = vmatpush1.bf16.msra.mxu0 0
          %928 = vmatprep.subr.bf16.mxu0 0
          %929 = vmatpush1.bf16.msra.mxu0 0
          %930 = vmatprep.subr.bf16.mxu0 0
          %931 = vmatpush1.bf16.msra.mxu0 0
          %932 = vmatprep.subr.bf16.mxu0 0
          %933 = vmatpush1.bf16.msra.mxu0 0
          %934 = vmatprep.subr.bf16.mxu0 0
          %935 = vmatpush1.bf16.msra.mxu0 0
          %936 = vmatprep.subr.bf16.mxu0 0
          %937 = vmatpush1.bf16.msra.mxu0 0
          %938 = vmatprep.subr.bf16.mxu0 0
          %939 = vmatpush1.bf16.msra.mxu0 0
          %940 = vmatprep.subr.bf16.mxu0 0
          %941 = vmatpush1.bf16.msra.mxu0 0
          %942 = vmatprep.subr.bf16.mxu0 0
          %943 = vmatpush1.bf16.msra.mxu0 0
          %944 = vmatprep.subr.bf16.mxu0 0
          %945 = vmatpush1.bf16.msra.mxu0 0
          %946 = vmatprep.subr.bf16.mxu0 0
          %947 = vmatpush1.bf16.msra.mxu0 0
          %948 = vmatprep.subr.bf16.mxu0 0
          %949 = vmatpush1.bf16.msra.mxu0 0
          %950 = vmatprep.mubr.bf16.mxu0 0
          %951 = vmatmul.mubr.bf16.gmra.mrb[0].mxu0 %v852
          %v952 = vpop.f32.mrb[0].mxu0
          %v953 = vadd.f32 %v904, %v952
          %v954 = vpop.f32.mrb[0].mxu0
          %v955 = vpop.f32.mrb[0].mxu0
          %v956 = vadd.f32 %v904, %v955
          %v957 = vpop.f32.mrb[0].mxu0
          %958 = vdwg.mxu0
          %v959 = vld [vmem:[%s10] sm:$0xf]
          %v960 = vld [vmem:[%s10 + $0x4] sm:$0xf]
          %v961 = vld [vmem:[%s10 + $0x8] sm:$0xf]
          %v962 = vld [vmem:[%s10 + $0xc] sm:$0xf]
          %v963 = vld [vmem:[%s11] sm:$0x1]
          %v965 = vlaneseq
          %v966 = vshrl.u32 %v965, 7
          %v967 = vsub.s32 0, %v966
          %v968 = vrot.slane %v963, %v967
          %v974 = vunpack.c.l.b16 %v959
          %v975 = vunpack.c.l.b16 %v960
          %v976 = vunpack.c.l.b16 %v961
          %v977 = vunpack.c.l.b16 %v962
          %v978 = vpack.c.b16 %v975, %v974
          %v979 = vpack.c.b16 %v977, %v976
          %982 = vmatprep.subr.bf16.mxu0 0
          %983 = vmatpush1.bf16.msra.mxu0 %v978
          %984 = vmatprep.subr.bf16.mxu0 0
          %985 = vmatpush1.bf16.msra.mxu0 %v979
          %986 = vmatprep.subr.bf16.mxu0 0
          %987 = vmatpush1.bf16.msra.mxu0 0
          %988 = vmatprep.subr.bf16.mxu0 0
          %989 = vmatpush1.bf16.msra.mxu0 0
          %990 = vmatprep.subr.bf16.mxu0 0
          %991 = vmatpush1.bf16.msra.mxu0 0
          %992 = vmatprep.subr.bf16.mxu0 0
          %993 = vmatpush1.bf16.msra.mxu0 0
          %994 = vmatprep.subr.bf16.mxu0 0
          %995 = vmatpush1.bf16.msra.mxu0 0
          %996 = vmatprep.subr.bf16.mxu0 0
          %997 = vmatpush1.bf16.msra.mxu0 0
          %998 = vmatprep.subr.bf16.mxu0 0
          %999 = vmatpush1.bf16.msra.mxu0 0
          %1000 = vmatprep.subr.bf16.mxu0 0
          %1001 = vmatpush1.bf16.msra.mxu0 0
          %1002 = vmatprep.subr.bf16.mxu0 0
          %1003 = vmatpush1.bf16.msra.mxu0 0
          %1004 = vmatprep.subr.bf16.mxu0 0
          %1005 = vmatpush1.bf16.msra.mxu0 0
          %1006 = vmatprep.subr.bf16.mxu0 0
          %1007 = vmatpush1.bf16.msra.mxu0 0
          %1008 = vmatprep.subr.bf16.mxu0 0
          %1009 = vmatpush1.bf16.msra.mxu0 0
          %1010 = vmatprep.subr.bf16.mxu0 0
          %1011 = vmatpush1.bf16.msra.mxu0 0
          %1012 = vmatprep.subr.bf16.mxu0 0
          %1013 = vmatpush1.bf16.msra.mxu0 0
          %1014 = vmatprep.mubr.bf16.mxu0 0
          %1015 = vmatmul.mubr.bf16.gmra.mrb[0].mxu0 %v852
          %v1016 = vpop.f32.mrb[0].mxu0
          %v1017 = vadd.f32 %v968, %v1016
          %v1018 = vpop.f32.mrb[0].mxu0
          %v1019 = vpop.f32.mrb[0].mxu0
          %v1020 = vadd.f32 %v968, %v1019
          %v1021 = vpop.f32.mrb[0].mxu0
          %1022 = vdwg.mxu0
          %v1023 = vpack.c.bf16 %v892, %v889
          %1025 = vrot.lane.b32.xlu0 %v1023, 120
          %v1026 = vpop.permute.xlu0 %1025
          %1027 = vrot.lane.b32.xlu0 %v1023, 112
          %v1028 = vpop.permute.xlu0 %1027
          %1029 = vrot.lane.b32.xlu0 %v1023, 104
          %v1030 = vpop.permute.xlu0 %1029
          %v1033 = vpack.i.b16 %v1026, %v1023
          %v1035 = vshrl.u32 %v1023, 16
          %v1036 = vshrl.u32 %v1026, 16
          %v1037 = vpack.i.b16 %v1036, %v1035
          %v1041 = vpack.i.b16 %v1030, %v1028
          %v1043 = vshrl.u32 %v1028, 16
          %v1044 = vshrl.u32 %v1030, 16
          %v1045 = vpack.i.b16 %v1044, %v1043
          %v1048 = vpack.i.b16 0, 0
          %v1050 = vshrl.u32 0, 16
          %v1051 = vpack.i.b16 %v1050, %v1050
          %v1053 = vcombine.high %v1033, %v1048
          %v1055 = vunpack.c.l.s4 1983009808
          %v1056 = vunpack.c.0.s8 %v1055
          %v1057 = vlaneseq
          %v1058 = vshrl.u32 %v1057, 7
          %v1059 = vsub.s32 %v1056, %v1058
          %v1060 = vrot.slane %v1033, %v1059
          %v1062 = vunpack.c.l.s4 1983009808
          %v1063 = vunpack.c.0.s8 %v1062
          %v1064 = vlaneseq
          %v1065 = vshrl.u32 %v1064, 7
          %v1066 = vsub.s32 %v1063, %v1065
          %v1067 = vrot.slane %v1053, %v1066
          %v1068 = vcombine.high %v1041, %v1048
          %v1070 = vunpack.c.l.s4 1983009808
          %v1071 = vunpack.c.0.s8 %v1070
          %v1072 = vlaneseq
          %v1073 = vshrl.u32 %v1072, 7
          %v1074 = vsub.s32 %v1071, %v1073
          %v1075 = vrot.slane %v1041, %v1074
          %v1077 = vunpack.c.l.s4 1983009808
          %v1078 = vunpack.c.0.s8 %v1077
          %v1079 = vlaneseq
          %v1080 = vshrl.u32 %v1079, 7
          %v1081 = vsub.s32 %v1078, %v1080
          %v1082 = vrot.slane %v1068, %v1081
          %v1083 = vcombine.low %v1060, %v1075
          %v1084 = vcombine.high %v1060, %v1075
          %v1086 = vunpack.c.l.s4 1934713408
          %v1087 = vunpack.c.0.s8 %v1086
          %v1088 = vlaneseq
          %v1089 = vshrl.u32 %v1088, 7
          %v1090 = vsub.s32 %v1087, %v1089
          %v1091 = vrot.slane %v1083, %v1090
          %v1093 = vunpack.c.l.s4 1934713408
          %v1094 = vunpack.c.0.s8 %v1093
          %v1095 = vlaneseq
          %v1096 = vshrl.u32 %v1095, 7
          %v1097 = vsub.s32 %v1094, %v1096
          %v1098 = vrot.slane %v1084, %v1097
          %v1099 = vcombine.low %v1067, %v1082
          %v1100 = vcombine.high %v1067, %v1082
          %v1102 = vunpack.c.l.s4 1934713408
          %v1103 = vunpack.c.0.s8 %v1102
          %v1104 = vlaneseq
          %v1105 = vshrl.u32 %v1104, 7
          %v1106 = vsub.s32 %v1103, %v1105
          %v1107 = vrot.slane %v1099, %v1106
          %v1109 = vunpack.c.l.s4 1934713408
          %v1110 = vunpack.c.0.s8 %v1109
          %v1111 = vlaneseq
          %v1112 = vshrl.u32 %v1111, 7
          %v1113 = vsub.s32 %v1110, %v1112
          %v1114 = vrot.slane %v1100, %v1113
          %v1115 = vcombine.high %v1091, 0
          %v1116 = vcombine.high %v1098, 0
          %v1117 = vcombine.high %v1107, 0
          %v1118 = vcombine.high %v1114, 0
          %v1119 = vcombine.high %v1037, %v1051
          %v1121 = vunpack.c.l.s4 1983009808
          %v1122 = vunpack.c.0.s8 %v1121
          %v1123 = vlaneseq
          %v1124 = vshrl.u32 %v1123, 7
          %v1125 = vsub.s32 %v1122, %v1124
          %v1126 = vrot.slane %v1037, %v1125
          %v1128 = vunpack.c.l.s4 1983009808
          %v1129 = vunpack.c.0.s8 %v1128
          %v1130 = vlaneseq
          %v1131 = vshrl.u32 %v1130, 7
          %v1132 = vsub.s32 %v1129, %v1131
          %v1133 = vrot.slane %v1119, %v1132
          %v1134 = vcombine.high %v1045, %v1051
          %v1136 = vunpack.c.l.s4 1983009808
          %v1137 = vunpack.c.0.s8 %v1136
          %v1138 = vlaneseq
          %v1139 = vshrl.u32 %v1138, 7
          %v1140 = vsub.s32 %v1137, %v1139
          %v1141 = vrot.slane %v1045, %v1140
          %v1143 = vunpack.c.l.s4 1983009808
          %v1144 = vunpack.c.0.s8 %v1143
          %v1145 = vlaneseq
          %v1146 = vshrl.u32 %v1145, 7
          %v1147 = vsub.s32 %v1144, %v1146
          %v1148 = vrot.slane %v1134, %v1147
          %v1149 = vcombine.low %v1126, %v1141
          %v1150 = vcombine.high %v1126, %v1141
          %v1152 = vunpack.c.l.s4 1934713408
          %v1153 = vunpack.c.0.s8 %v1152
          %v1154 = vlaneseq
          %v1155 = vshrl.u32 %v1154, 7
          %v1156 = vsub.s32 %v1153, %v1155
          %v1157 = vrot.slane %v1149, %v1156
          %v1159 = vunpack.c.l.s4 1934713408
          %v1160 = vunpack.c.0.s8 %v1159
          %v1161 = vlaneseq
          %v1162 = vshrl.u32 %v1161, 7
          %v1163 = vsub.s32 %v1160, %v1162
          %v1164 = vrot.slane %v1150, %v1163
          %v1165 = vcombine.low %v1133, %v1148
          %v1166 = vcombine.high %v1133, %v1148
          %v1168 = vunpack.c.l.s4 1934713408
          %v1169 = vunpack.c.0.s8 %v1168
          %v1170 = vlaneseq
          %v1171 = vshrl.u32 %v1170, 7
          %v1172 = vsub.s32 %v1169, %v1171
          %v1173 = vrot.slane %v1165, %v1172
          %v1175 = vunpack.c.l.s4 1934713408
          %v1176 = vunpack.c.0.s8 %v1175
          %v1177 = vlaneseq
          %v1178 = vshrl.u32 %v1177, 7
          %v1179 = vsub.s32 %v1176, %v1178
          %v1180 = vrot.slane %v1166, %v1179
          %v1181 = vcombine.high %v1157, 0
          %v1182 = vcombine.high %v1164, 0
          %v1183 = vcombine.high %v1173, 0
          %v1184 = vcombine.high %v1180, 0
          %v1185 = vcombine.low %v1091, %v1098
          %v1187 = vunpack.c.l.s4 1983009808
          %v1188 = vunpack.c.0.s8 %v1187
          %v1189 = vlaneseq
          %v1190 = vshrl.u32 %v1189, 7
          %v1191 = vsub.s32 %v1188, %v1190
          %v1192 = vrot.slane %v1185, %v1191
          %v1193 = vcombine.low %v1115, %v1116
          %v1195 = vunpack.c.l.s4 1983009808
          %v1196 = vunpack.c.0.s8 %v1195
          %v1197 = vlaneseq
          %v1198 = vshrl.u32 %v1197, 7
          %v1199 = vsub.s32 %v1196, %v1198
          %v1200 = vrot.slane %v1193, %v1199
          %v1201 = vcombine.low %v1107, %v1114
          %v1203 = vunpack.c.l.s4 1983009808
          %v1204 = vunpack.c.0.s8 %v1203
          %v1205 = vlaneseq
          %v1206 = vshrl.u32 %v1205, 7
          %v1207 = vsub.s32 %v1204, %v1206
          %v1208 = vrot.slane %v1201, %v1207
          %v1209 = vcombine.low %v1117, %v1118
          %v1211 = vunpack.c.l.s4 1983009808
          %v1212 = vunpack.c.0.s8 %v1211
          %v1213 = vlaneseq
          %v1214 = vshrl.u32 %v1213, 7
          %v1215 = vsub.s32 %v1212, %v1214
          %v1216 = vrot.slane %v1209, %v1215
          %v1217 = vcombine.low %v1192, %v1200
          %v1219 = vunpack.c.l.s4 1934713408
          %v1220 = vunpack.c.0.s8 %v1219
          %v1221 = vlaneseq
          %v1222 = vshrl.u32 %v1221, 7
          %v1223 = vsub.s32 %v1220, %v1222
          %v1224 = vrot.slane %v1217, %v1223
          %v1225 = vcombine.low %v1208, %v1216
          %v1227 = vunpack.c.l.s4 1934713408
          %v1228 = vunpack.c.0.s8 %v1227
          %v1229 = vlaneseq
          %v1230 = vshrl.u32 %v1229, 7
          %v1231 = vsub.s32 %v1228, %v1230
          %v1232 = vrot.slane %v1225, %v1231
          %v1233 = vcombine.low %v1224, %v1232
          %v1234 = vcombine.high %v1224, %v1232
          %v1235 = vcombine.low %v1157, %v1164
          %v1237 = vunpack.c.l.s4 1983009808
          %v1238 = vunpack.c.0.s8 %v1237
          %v1239 = vlaneseq
          %v1240 = vshrl.u32 %v1239, 7
          %v1241 = vsub.s32 %v1238, %v1240
          %v1242 = vrot.slane %v1235, %v1241
          %v1243 = vcombine.low %v1181, %v1182
          %v1245 = vunpack.c.l.s4 1983009808
          %v1246 = vunpack.c.0.s8 %v1245
          %v1247 = vlaneseq
          %v1248 = vshrl.u32 %v1247, 7
          %v1249 = vsub.s32 %v1246, %v1248
          %v1250 = vrot.slane %v1243, %v1249
          %v1251 = vcombine.low %v1173, %v1180
          %v1253 = vunpack.c.l.s4 1983009808
          %v1254 = vunpack.c.0.s8 %v1253
          %v1255 = vlaneseq
          %v1256 = vshrl.u32 %v1255, 7
          %v1257 = vsub.s32 %v1254, %v1256
          %v1258 = vrot.slane %v1251, %v1257
          %v1259 = vcombine.low %v1183, %v1184
          %v1261 = vunpack.c.l.s4 1983009808
          %v1262 = vunpack.c.0.s8 %v1261
          %v1263 = vlaneseq
          %v1264 = vshrl.u32 %v1263, 7
          %v1265 = vsub.s32 %v1262, %v1264
          %v1266 = vrot.slane %v1259, %v1265
          %v1267 = vcombine.low %v1242, %v1250
          %v1269 = vunpack.c.l.s4 1934713408
          %v1270 = vunpack.c.0.s8 %v1269
          %v1271 = vlaneseq
          %v1272 = vshrl.u32 %v1271, 7
          %v1273 = vsub.s32 %v1270, %v1272
          %v1274 = vrot.slane %v1267, %v1273
          %v1275 = vcombine.low %v1258, %v1266
          %v1277 = vunpack.c.l.s4 1934713408
          %v1278 = vunpack.c.0.s8 %v1277
          %v1279 = vlaneseq
          %v1280 = vshrl.u32 %v1279, 7
          %v1281 = vsub.s32 %v1278, %v1280
          %v1282 = vrot.slane %v1275, %v1281
          %v1283 = vcombine.low %v1274, %v1282
          %v1284 = vcombine.high %v1274, %v1282
          %v1287 = vpack.i.b16 %v1283, %v1233
          %v1288 = vshrl.u32 %v1233, 16
          %v1289 = vshrl.u32 %v1283, 16
          %v1290 = vpack.i.b16 %v1289, %v1288
          %v1293 = vpack.i.b16 %v1284, %v1234
          %v1294 = vshrl.u32 %v1234, 16
          %v1295 = vshrl.u32 %v1284, 16
          %v1296 = vpack.i.b16 %v1295, %v1294
          %v1297 = vpack.c.bf16 %v956, %v953
          %1299 = vrot.lane.b32.xlu0 %v1297, 120
          %v1300 = vpop.permute.xlu0 %1299
          %1301 = vrot.lane.b32.xlu0 %v1297, 112
          %v1302 = vpop.permute.xlu0 %1301
          %1303 = vrot.lane.b32.xlu0 %v1297, 104
          %v1304 = vpop.permute.xlu0 %1303
          %v1307 = vpack.i.b16 %v1300, %v1297
          %v1309 = vshrl.u32 %v1297, 16
          %v1310 = vshrl.u32 %v1300, 16
          %v1311 = vpack.i.b16 %v1310, %v1309
          %v1315 = vpack.i.b16 %v1304, %v1302
          %v1317 = vshrl.u32 %v1302, 16
          %v1318 = vshrl.u32 %v1304, 16
          %v1319 = vpack.i.b16 %v1318, %v1317
          %v1321 = vcombine.high %v1307, %v1048
          %v1323 = vunpack.c.l.s4 1983009808
          %v1324 = vunpack.c.0.s8 %v1323
          %v1325 = vlaneseq
          %v1326 = vshrl.u32 %v1325, 7
          %v1327 = vsub.s32 %v1324, %v1326
          %v1328 = vrot.slane %v1307, %v1327
          %v1330 = vunpack.c.l.s4 1983009808
          %v1331 = vunpack.c.0.s8 %v1330
          %v1332 = vlaneseq
          %v1333 = vshrl.u32 %v1332, 7
          %v1334 = vsub.s32 %v1331, %v1333
          %v1335 = vrot.slane %v1321, %v1334
          %v1336 = vcombine.high %v1315, %v1048
          %v1338 = vunpack.c.l.s4 1983009808
          %v1339 = vunpack.c.0.s8 %v1338
          %v1340 = vlaneseq
          %v1341 = vshrl.u32 %v1340, 7
          %v1342 = vsub.s32 %v1339, %v1341
          %v1343 = vrot.slane %v1315, %v1342
          %v1345 = vunpack.c.l.s4 1983009808
          %v1346 = vunpack.c.0.s8 %v1345
          %v1347 = vlaneseq
          %v1348 = vshrl.u32 %v1347, 7
          %v1349 = vsub.s32 %v1346, %v1348
          %v1350 = vrot.slane %v1336, %v1349
          %v1351 = vcombine.low %v1328, %v1343
          %v1352 = vcombine.high %v1328, %v1343
          %v1354 = vunpack.c.l.s4 1934713408
          %v1355 = vunpack.c.0.s8 %v1354
          %v1356 = vlaneseq
          %v1357 = vshrl.u32 %v1356, 7
          %v1358 = vsub.s32 %v1355, %v1357
          %v1359 = vrot.slane %v1351, %v1358
          %v1361 = vunpack.c.l.s4 1934713408
          %v1362 = vunpack.c.0.s8 %v1361
          %v1363 = vlaneseq
          %v1364 = vshrl.u32 %v1363, 7
          %v1365 = vsub.s32 %v1362, %v1364
          %v1366 = vrot.slane %v1352, %v1365
          %v1367 = vcombine.low %v1335, %v1350
          %v1368 = vcombine.high %v1335, %v1350
          %v1370 = vunpack.c.l.s4 1934713408
          %v1371 = vunpack.c.0.s8 %v1370
          %v1372 = vlaneseq
          %v1373 = vshrl.u32 %v1372, 7
          %v1374 = vsub.s32 %v1371, %v1373
          %v1375 = vrot.slane %v1367, %v1374
          %v1377 = vunpack.c.l.s4 1934713408
          %v1378 = vunpack.c.0.s8 %v1377
          %v1379 = vlaneseq
          %v1380 = vshrl.u32 %v1379, 7
          %v1381 = vsub.s32 %v1378, %v1380
          %v1382 = vrot.slane %v1368, %v1381
          %v1383 = vcombine.high %v1359, 0
          %v1384 = vcombine.high %v1366, 0
          %v1385 = vcombine.high %v1375, 0
          %v1386 = vcombine.high %v1382, 0
          %v1387 = vcombine.high %v1311, %v1051
          %v1389 = vunpack.c.l.s4 1983009808
          %v1390 = vunpack.c.0.s8 %v1389
          %v1391 = vlaneseq
          %v1392 = vshrl.u32 %v1391, 7
          %v1393 = vsub.s32 %v1390, %v1392
          %v1394 = vrot.slane %v1311, %v1393
          %v1396 = vunpack.c.l.s4 1983009808
          %v1397 = vunpack.c.0.s8 %v1396
          %v1398 = vlaneseq
          %v1399 = vshrl.u32 %v1398, 7
          %v1400 = vsub.s32 %v1397, %v1399
          %v1401 = vrot.slane %v1387, %v1400
          %v1402 = vcombine.high %v1319, %v1051
          %v1404 = vunpack.c.l.s4 1983009808
          %v1405 = vunpack.c.0.s8 %v1404
          %v1406 = vlaneseq
          %v1407 = vshrl.u32 %v1406, 7
          %v1408 = vsub.s32 %v1405, %v1407
          %v1409 = vrot.slane %v1319, %v1408
          %v1411 = vunpack.c.l.s4 1983009808
          %v1412 = vunpack.c.0.s8 %v1411
          %v1413 = vlaneseq
          %v1414 = vshrl.u32 %v1413, 7
          %v1415 = vsub.s32 %v1412, %v1414
          %v1416 = vrot.slane %v1402, %v1415
          %v1417 = vcombine.low %v1394, %v1409
          %v1418 = vcombine.high %v1394, %v1409
          %v1420 = vunpack.c.l.s4 1934713408
          %v1421 = vunpack.c.0.s8 %v1420
          %v1422 = vlaneseq
          %v1423 = vshrl.u32 %v1422, 7
          %v1424 = vsub.s32 %v1421, %v1423
          %v1425 = vrot.slane %v1417, %v1424
          %v1427 = vunpack.c.l.s4 1934713408
          %v1428 = vunpack.c.0.s8 %v1427
          %v1429 = vlaneseq
          %v1430 = vshrl.u32 %v1429, 7
          %v1431 = vsub.s32 %v1428, %v1430
          %v1432 = vrot.slane %v1418, %v1431
          %v1433 = vcombine.low %v1401, %v1416
          %v1434 = vcombine.high %v1401, %v1416
          %v1436 = vunpack.c.l.s4 1934713408
          %v1437 = vunpack.c.0.s8 %v1436
          %v1438 = vlaneseq
          %v1439 = vshrl.u32 %v1438, 7
          %v1440 = vsub.s32 %v1437, %v1439
          %v1441 = vrot.slane %v1433, %v1440
          %v1443 = vunpack.c.l.s4 1934713408
          %v1444 = vunpack.c.0.s8 %v1443
          %v1445 = vlaneseq
          %v1446 = vshrl.u32 %v1445, 7
          %v1447 = vsub.s32 %v1444, %v1446
          %v1448 = vrot.slane %v1434, %v1447
          %v1449 = vcombine.high %v1425, 0
          %v1450 = vcombine.high %v1432, 0
          %v1451 = vcombine.high %v1441, 0
          %v1452 = vcombine.high %v1448, 0
          %v1453 = vcombine.low %v1359, %v1366
          %v1455 = vunpack.c.l.s4 1983009808
          %v1456 = vunpack.c.0.s8 %v1455
          %v1457 = vlaneseq
          %v1458 = vshrl.u32 %v1457, 7
          %v1459 = vsub.s32 %v1456, %v1458
          %v1460 = vrot.slane %v1453, %v1459
          %v1461 = vcombine.low %v1383, %v1384
          %v1463 = vunpack.c.l.s4 1983009808
          %v1464 = vunpack.c.0.s8 %v1463
          %v1465 = vlaneseq
          %v1466 = vshrl.u32 %v1465, 7
          %v1467 = vsub.s32 %v1464, %v1466
          %v1468 = vrot.slane %v1461, %v1467
          %v1469 = vcombine.low %v1375, %v1382
          %v1471 = vunpack.c.l.s4 1983009808
          %v1472 = vunpack.c.0.s8 %v1471
          %v1473 = vlaneseq
          %v1474 = vshrl.u32 %v1473, 7
          %v1475 = vsub.s32 %v1472, %v1474
          %v1476 = vrot.slane %v1469, %v1475
          %v1477 = vcombine.low %v1385, %v1386
          %v1479 = vunpack.c.l.s4 1983009808
          %v1480 = vunpack.c.0.s8 %v1479
          %v1481 = vlaneseq
          %v1482 = vshrl.u32 %v1481, 7
          %v1483 = vsub.s32 %v1480, %v1482
          %v1484 = vrot.slane %v1477, %v1483
          %v1485 = vcombine.low %v1460, %v1468
          %v1487 = vunpack.c.l.s4 1934713408
          %v1488 = vunpack.c.0.s8 %v1487
          %v1489 = vlaneseq
          %v1490 = vshrl.u32 %v1489, 7
          %v1491 = vsub.s32 %v1488, %v1490
          %v1492 = vrot.slane %v1485, %v1491
          %v1493 = vcombine.low %v1476, %v1484
          %v1495 = vunpack.c.l.s4 1934713408
          %v1496 = vunpack.c.0.s8 %v1495
          %v1497 = vlaneseq
          %v1498 = vshrl.u32 %v1497, 7
          %v1499 = vsub.s32 %v1496, %v1498
          %v1500 = vrot.slane %v1493, %v1499
          %v1501 = vcombine.low %v1492, %v1500
          %v1502 = vcombine.high %v1492, %v1500
          %v1503 = vcombine.low %v1425, %v1432
          %v1505 = vunpack.c.l.s4 1983009808
          %v1506 = vunpack.c.0.s8 %v1505
          %v1507 = vlaneseq
          %v1508 = vshrl.u32 %v1507, 7
          %v1509 = vsub.s32 %v1506, %v1508
          %v1510 = vrot.slane %v1503, %v1509
          %v1511 = vcombine.low %v1449, %v1450
          %v1513 = vunpack.c.l.s4 1983009808
          %v1514 = vunpack.c.0.s8 %v1513
          %v1515 = vlaneseq
          %v1516 = vshrl.u32 %v1515, 7
          %v1517 = vsub.s32 %v1514, %v1516
          %v1518 = vrot.slane %v1511, %v1517
          %v1519 = vcombine.low %v1441, %v1448
          %v1521 = vunpack.c.l.s4 1983009808
          %v1522 = vunpack.c.0.s8 %v1521
          %v1523 = vlaneseq
          %v1524 = vshrl.u32 %v1523, 7
          %v1525 = vsub.s32 %v1522, %v1524
          %v1526 = vrot.slane %v1519, %v1525
          %v1527 = vcombine.low %v1451, %v1452
          %v1529 = vunpack.c.l.s4 1983009808
          %v1530 = vunpack.c.0.s8 %v1529
          %v1531 = vlaneseq
          %v1532 = vshrl.u32 %v1531, 7
          %v1533 = vsub.s32 %v1530, %v1532
          %v1534 = vrot.slane %v1527, %v1533
          %v1535 = vcombine.low %v1510, %v1518
          %v1537 = vunpack.c.l.s4 1934713408
          %v1538 = vunpack.c.0.s8 %v1537
          %v1539 = vlaneseq
          %v1540 = vshrl.u32 %v1539, 7
          %v1541 = vsub.s32 %v1538, %v1540
          %v1542 = vrot.slane %v1535, %v1541
          %v1543 = vcombine.low %v1526, %v1534
          %v1545 = vunpack.c.l.s4 1934713408
          %v1546 = vunpack.c.0.s8 %v1545
          %v1547 = vlaneseq
          %v1548 = vshrl.u32 %v1547, 7
          %v1549 = vsub.s32 %v1546, %v1548
          %v1550 = vrot.slane %v1543, %v1549
          %v1551 = vcombine.low %v1542, %v1550
          %v1552 = vcombine.high %v1542, %v1550
          %v1555 = vpack.i.b16 %v1551, %v1501
          %v1556 = vshrl.u32 %v1501, 16
          %v1557 = vshrl.u32 %v1551, 16
          %v1558 = vpack.i.b16 %v1557, %v1556
          %v1561 = vpack.i.b16 %v1552, %v1502
          %v1562 = vshrl.u32 %v1502, 16
          %v1563 = vshrl.u32 %v1552, 16
          %v1564 = vpack.i.b16 %v1563, %v1562
          %v1565 = vpack.c.bf16 %v1020, %v1017
          %1567 = vrot.lane.b32.xlu0 %v1565, 120
          %v1568 = vpop.permute.xlu0 %1567
          %1569 = vrot.lane.b32.xlu0 %v1565, 112
          %v1570 = vpop.permute.xlu0 %1569
          %1571 = vrot.lane.b32.xlu0 %v1565, 104
          %v1572 = vpop.permute.xlu0 %1571
          %v1575 = vpack.i.b16 %v1568, %v1565
          %v1577 = vshrl.u32 %v1565, 16
          %v1578 = vshrl.u32 %v1568, 16
          %v1579 = vpack.i.b16 %v1578, %v1577
          %v1583 = vpack.i.b16 %v1572, %v1570
          %v1585 = vshrl.u32 %v1570, 16
          %v1586 = vshrl.u32 %v1572, 16
          %v1587 = vpack.i.b16 %v1586, %v1585
          %v1589 = vcombine.high %v1575, %v1048
          %v1591 = vunpack.c.l.s4 1983009808
          %v1592 = vunpack.c.0.s8 %v1591
          %v1593 = vlaneseq
          %v1594 = vshrl.u32 %v1593, 7
          %v1595 = vsub.s32 %v1592, %v1594
          %v1596 = vrot.slane %v1575, %v1595
          %v1598 = vunpack.c.l.s4 1983009808
          %v1599 = vunpack.c.0.s8 %v1598
          %v1600 = vlaneseq
          %v1601 = vshrl.u32 %v1600, 7
          %v1602 = vsub.s32 %v1599, %v1601
          %v1603 = vrot.slane %v1589, %v1602
          %v1604 = vcombine.high %v1583, %v1048
          %v1606 = vunpack.c.l.s4 1983009808
          %v1607 = vunpack.c.0.s8 %v1606
          %v1608 = vlaneseq
          %v1609 = vshrl.u32 %v1608, 7
          %v1610 = vsub.s32 %v1607, %v1609
          %v1611 = vrot.slane %v1583, %v1610
          %v1613 = vunpack.c.l.s4 1983009808
          %v1614 = vunpack.c.0.s8 %v1613
          %v1615 = vlaneseq
          %v1616 = vshrl.u32 %v1615, 7
          %v1617 = vsub.s32 %v1614, %v1616
          %v1618 = vrot.slane %v1604, %v1617
          %v1619 = vcombine.low %v1596, %v1611
          %v1620 = vcombine.high %v1596, %v1611
          %v1622 = vunpack.c.l.s4 1934713408
          %v1623 = vunpack.c.0.s8 %v1622
          %v1624 = vlaneseq
          %v1625 = vshrl.u32 %v1624, 7
          %v1626 = vsub.s32 %v1623, %v1625
          %v1627 = vrot.slane %v1619, %v1626
          %v1629 = vunpack.c.l.s4 1934713408
          %v1630 = vunpack.c.0.s8 %v1629
          %v1631 = vlaneseq
          %v1632 = vshrl.u32 %v1631, 7
          %v1633 = vsub.s32 %v1630, %v1632
          %v1634 = vrot.slane %v1620, %v1633
          %v1635 = vcombine.low %v1603, %v1618
          %v1636 = vcombine.high %v1603, %v1618
          %v1638 = vunpack.c.l.s4 1934713408
          %v1639 = vunpack.c.0.s8 %v1638
          %v1640 = vlaneseq
          %v1641 = vshrl.u32 %v1640, 7
          %v1642 = vsub.s32 %v1639, %v1641
          %v1643 = vrot.slane %v1635, %v1642
          %v1645 = vunpack.c.l.s4 1934713408
          %v1646 = vunpack.c.0.s8 %v1645
          %v1647 = vlaneseq
          %v1648 = vshrl.u32 %v1647, 7
          %v1649 = vsub.s32 %v1646, %v1648
          %v1650 = vrot.slane %v1636, %v1649
          %v1651 = vcombine.high %v1627, 0
          %v1652 = vcombine.high %v1634, 0
          %v1653 = vcombine.high %v1643, 0
          %v1654 = vcombine.high %v1650, 0
          %v1655 = vcombine.high %v1579, %v1051
          %v1657 = vunpack.c.l.s4 1983009808
          %v1658 = vunpack.c.0.s8 %v1657
          %v1659 = vlaneseq
          %v1660 = vshrl.u32 %v1659, 7
          %v1661 = vsub.s32 %v1658, %v1660
          %v1662 = vrot.slane %v1579, %v1661
          %v1664 = vunpack.c.l.s4 1983009808
          %v1665 = vunpack.c.0.s8 %v1664
          %v1666 = vlaneseq
          %v1667 = vshrl.u32 %v1666, 7
          %v1668 = vsub.s32 %v1665, %v1667
          %v1669 = vrot.slane %v1655, %v1668
          %v1670 = vcombine.high %v1587, %v1051
          %v1672 = vunpack.c.l.s4 1983009808
          %v1673 = vunpack.c.0.s8 %v1672
          %v1674 = vlaneseq
          %v1675 = vshrl.u32 %v1674, 7
          %v1676 = vsub.s32 %v1673, %v1675
          %v1677 = vrot.slane %v1587, %v1676
          %v1679 = vunpack.c.l.s4 1983009808
          %v1680 = vunpack.c.0.s8 %v1679
          %v1681 = vlaneseq
          %v1682 = vshrl.u32 %v1681, 7
          %v1683 = vsub.s32 %v1680, %v1682
          %v1684 = vrot.slane %v1670, %v1683
          %v1685 = vcombine.low %v1662, %v1677
          %v1686 = vcombine.high %v1662, %v1677
          %v1688 = vunpack.c.l.s4 1934713408
          %v1689 = vunpack.c.0.s8 %v1688
          %v1690 = vlaneseq
          %v1691 = vshrl.u32 %v1690, 7
          %v1692 = vsub.s32 %v1689, %v1691
          %v1693 = vrot.slane %v1685, %v1692
          %v1695 = vunpack.c.l.s4 1934713408
          %v1696 = vunpack.c.0.s8 %v1695
          %v1697 = vlaneseq
          %v1698 = vshrl.u32 %v1697, 7
          %v1699 = vsub.s32 %v1696, %v1698
          %v1700 = vrot.slane %v1686, %v1699
          %v1701 = vcombine.low %v1669, %v1684
          %v1702 = vcombine.high %v1669, %v1684
          %v1704 = vunpack.c.l.s4 1934713408
          %v1705 = vunpack.c.0.s8 %v1704
          %v1706 = vlaneseq
          %v1707 = vshrl.u32 %v1706, 7
          %v1708 = vsub.s32 %v1705, %v1707
          %v1709 = vrot.slane %v1701, %v1708
          %v1711 = vunpack.c.l.s4 1934713408
          %v1712 = vunpack.c.0.s8 %v1711
          %v1713 = vlaneseq
          %v1714 = vshrl.u32 %v1713, 7
          %v1715 = vsub.s32 %v1712, %v1714
          %v1716 = vrot.slane %v1702, %v1715
          %v1717 = vcombine.high %v1693, 0
          %v1718 = vcombine.high %v1700, 0
          %v1719 = vcombine.high %v1709, 0
          %v1720 = vcombine.high %v1716, 0
          %v1721 = vcombine.low %v1627, %v1634
          %v1723 = vunpack.c.l.s4 1983009808
          %v1724 = vunpack.c.0.s8 %v1723
          %v1725 = vlaneseq
          %v1726 = vshrl.u32 %v1725, 7
          %v1727 = vsub.s32 %v1724, %v1726
          %v1728 = vrot.slane %v1721, %v1727
          %v1729 = vcombine.low %v1651, %v1652
          %v1731 = vunpack.c.l.s4 1983009808
          %v1732 = vunpack.c.0.s8 %v1731
          %v1733 = vlaneseq
          %v1734 = vshrl.u32 %v1733, 7
          %v1735 = vsub.s32 %v1732, %v1734
          %v1736 = vrot.slane %v1729, %v1735
          %v1737 = vcombine.low %v1643, %v1650
          %v1739 = vunpack.c.l.s4 1983009808
          %v1740 = vunpack.c.0.s8 %v1739
          %v1741 = vlaneseq
          %v1742 = vshrl.u32 %v1741, 7
          %v1743 = vsub.s32 %v1740, %v1742
          %v1744 = vrot.slane %v1737, %v1743
          %v1745 = vcombine.low %v1653, %v1654
          %v1747 = vunpack.c.l.s4 1983009808
          %v1748 = vunpack.c.0.s8 %v1747
          %v1749 = vlaneseq
          %v1750 = vshrl.u32 %v1749, 7
          %v1751 = vsub.s32 %v1748, %v1750
          %v1752 = vrot.slane %v1745, %v1751
          %v1753 = vcombine.low %v1728, %v1736
          %v1755 = vunpack.c.l.s4 1934713408
          %v1756 = vunpack.c.0.s8 %v1755
          %v1757 = vlaneseq
          %v1758 = vshrl.u32 %v1757, 7
          %v1759 = vsub.s32 %v1756, %v1758
          %v1760 = vrot.slane %v1753, %v1759
          %v1761 = vcombine.low %v1744, %v1752
          %v1763 = vunpack.c.l.s4 1934713408
          %v1764 = vunpack.c.0.s8 %v1763
          %v1765 = vlaneseq
          %v1766 = vshrl.u32 %v1765, 7
          %v1767 = vsub.s32 %v1764, %v1766
          %v1768 = vrot.slane %v1761, %v1767
          %v1769 = vcombine.low %v1760, %v1768
          %v1770 = vcombine.high %v1760, %v1768
          %v1771 = vcombine.low %v1693, %v1700
          %v1773 = vunpack.c.l.s4 1983009808
          %v1774 = vunpack.c.0.s8 %v1773
          %v1775 = vlaneseq
          %v1776 = vshrl.u32 %v1775, 7
          %v1777 = vsub.s32 %v1774, %v1776
          %v1778 = vrot.slane %v1771, %v1777
          %v1779 = vcombine.low %v1717, %v1718
          %v1781 = vunpack.c.l.s4 1983009808
          %v1782 = vunpack.c.0.s8 %v1781
          %v1783 = vlaneseq
          %v1784 = vshrl.u32 %v1783, 7
          %v1785 = vsub.s32 %v1782, %v1784
          %v1786 = vrot.slane %v1779, %v1785
          %v1787 = vcombine.low %v1709, %v1716
          %v1789 = vunpack.c.l.s4 1983009808
          %v1790 = vunpack.c.0.s8 %v1789
          %v1791 = vlaneseq
          %v1792 = vshrl.u32 %v1791, 7
          %v1793 = vsub.s32 %v1790, %v1792
          %v1794 = vrot.slane %v1787, %v1793
          %v1795 = vcombine.low %v1719, %v1720
          %v1797 = vunpack.c.l.s4 1983009808
          %v1798 = vunpack.c.0.s8 %v1797
          %v1799 = vlaneseq
          %v1800 = vshrl.u32 %v1799, 7
          %v1801 = vsub.s32 %v1798, %v1800
          %v1802 = vrot.slane %v1795, %v1801
          %v1803 = vcombine.low %v1778, %v1786
          %v1805 = vunpack.c.l.s4 1934713408
          %v1806 = vunpack.c.0.s8 %v1805
          %v1807 = vlaneseq
          %v1808 = vshrl.u32 %v1807, 7
          %v1809 = vsub.s32 %v1806, %v1808
          %v1810 = vrot.slane %v1803, %v1809
          %v1811 = vcombine.low %v1794, %v1802
          %v1813 = vunpack.c.l.s4 1934713408
          %v1814 = vunpack.c.0.s8 %v1813
          %v1815 = vlaneseq
          %v1816 = vshrl.u32 %v1815, 7
          %v1817 = vsub.s32 %v1814, %v1816
          %v1818 = vrot.slane %v1811, %v1817
          %v1819 = vcombine.low %v1810, %v1818
          %v1820 = vcombine.high %v1810, %v1818
          %v1823 = vpack.i.b16 %v1819, %v1769
          %v1825 = vshrl.u32 %v1769, 16
          %v1826 = vshrl.u32 %v1819, 16
          %v1827 = vpack.i.b16 %v1826, %v1825
          %v1831 = vpack.i.b16 %v1820, %v1770
          %v1833 = vshrl.u32 %v1770, 16
          %v1834 = vshrl.u32 %v1820, 16
          %v1835 = vpack.i.b16 %v1834, %v1833
          %vm1837 = vcmask 64512
          %v1839 = vsel %vm1837, %v1287, 0
          %v1842 = vsel %vm1837, %v1555, 0
          %1844 = vmatprep.subr.bf16.mxu0 0
          %1845 = vmatpush1.bf16.xpose.msra.mxu0 %v1842
          %1846 = vmatprep.subr.bf16.mxu0 0
          %1847 = vmatpush1.bf16.xpose.msra.mxu0 0
          %1848 = vmatprep.subr.bf16.mxu0 0
          %1849 = vmatpush1.bf16.xpose.msra.mxu0 0
          %1850 = vmatprep.subr.bf16.mxu0 0
          %1851 = vmatpush1.bf16.xpose.msra.mxu0 0
          %1852 = vmatprep.subr.bf16.mxu0 0
          %1853 = vmatpush1.bf16.xpose.msra.mxu0 0
          %1854 = vmatprep.subr.bf16.mxu0 0
          %1855 = vmatpush1.bf16.xpose.msra.mxu0 0
          %1856 = vmatprep.subr.bf16.mxu0 0
          %1857 = vmatpush1.bf16.xpose.msra.mxu0 0
          %1858 = vmatprep.subr.bf16.mxu0 0
          %1859 = vmatpush1.bf16.xpose.msra.mxu0 0
          %1860 = vmatprep.subr.bf16.mxu0 0
          %1861 = vmatpush1.bf16.xpose.msra.mxu0 0
          %1862 = vmatprep.subr.bf16.mxu0 0
          %1863 = vmatpush1.bf16.xpose.msra.mxu0 0
          %1864 = vmatprep.subr.bf16.mxu0 0
          %1865 = vmatpush1.bf16.xpose.msra.mxu0 0
          %1866 = vmatprep.subr.bf16.mxu0 0
          %1867 = vmatpush1.bf16.xpose.msra.mxu0 0
          %1868 = vmatprep.subr.bf16.mxu0 0
          %1869 = vmatpush1.bf16.xpose.msra.mxu0 0
          %1870 = vmatprep.subr.bf16.mxu0 0
          %1871 = vmatpush1.bf16.xpose.msra.mxu0 0
          %1872 = vmatprep.subr.bf16.mxu0 0
          %1873 = vmatpush1.bf16.xpose.msra.mxu0 0
          %1874 = vmatprep.subr.bf16.mxu0 0
          %1875 = vmatpush1.bf16.xpose.msra.mxu0 0
          %1876 = vmatprep.mubr.bf16.mxu0 0
          %1877 = vmatmul.mubr.bf16.gmra.mrb[0].mxu0 %v1839
          %v1878 = vpop.f32.mrb[0].mxu0
          %v1879 = vadd.f32 0.0, %v1878
          %v1880 = vpop.f32.mrb[0].mxu0
          %v1881 = vpop.f32.mrb[0].mxu0
          %v1882 = vadd.f32 0.0, %v1881
          %v1883 = vpop.f32.mrb[0].mxu0
          %1884 = vdwg.mxu0
          %v1886 = vsel %vm1837, %v1290, 0
          %v1889 = vsel %vm1837, %v1558, 0
          %1891 = vmatprep.subr.bf16.mxu0 0
          %1892 = vmatpush1.bf16.xpose.msra.mxu0 %v1889
          %1893 = vmatprep.subr.bf16.mxu0 0
          %1894 = vmatpush1.bf16.xpose.msra.mxu0 0
          %1895 = vmatprep.subr.bf16.mxu0 0
          %1896 = vmatpush1.bf16.xpose.msra.mxu0 0
          %1897 = vmatprep.subr.bf16.mxu0 0
          %1898 = vmatpush1.bf16.xpose.msra.mxu0 0
          %1899 = vmatprep.subr.bf16.mxu0 0
          %1900 = vmatpush1.bf16.xpose.msra.mxu0 0
          %1901 = vmatprep.subr.bf16.mxu0 0
          %1902 = vmatpush1.bf16.xpose.msra.mxu0 0
          %1903 = vmatprep.subr.bf16.mxu0 0
          %1904 = vmatpush1.bf16.xpose.msra.mxu0 0
          %1905 = vmatprep.subr.bf16.mxu0 0
          %1906 = vmatpush1.bf16.xpose.msra.mxu0 0
          %1907 = vmatprep.subr.bf16.mxu0 0
          %1908 = vmatpush1.bf16.xpose.msra.mxu0 0
          %1909 = vmatprep.subr.bf16.mxu0 0
          %1910 = vmatpush1.bf16.xpose.msra.mxu0 0
          %1911 = vmatprep.subr.bf16.mxu0 0
          %1912 = vmatpush1.bf16.xpose.msra.mxu0 0
          %1913 = vmatprep.subr.bf16.mxu0 0
          %1914 = vmatpush1.bf16.xpose.msra.mxu0 0
          %1915 = vmatprep.subr.bf16.mxu0 0
          %1916 = vmatpush1.bf16.xpose.msra.mxu0 0
          %1917 = vmatprep.subr.bf16.mxu0 0
          %1918 = vmatpush1.bf16.xpose.msra.mxu0 0
          %1919 = vmatprep.subr.bf16.mxu0 0
          %1920 = vmatpush1.bf16.xpose.msra.mxu0 0
          %1921 = vmatprep.subr.bf16.mxu0 0
          %1922 = vmatpush1.bf16.xpose.msra.mxu0 0
          %1923 = vmatprep.mubr.bf16.mxu0 0
          %1924 = vmatmul.mubr.bf16.gmra.mrb[0].mxu0 %v1886
          %v1925 = vpop.f32.mrb[0].mxu0
          %v1926 = vadd.f32 0.0, %v1925
          %v1927 = vpop.f32.mrb[0].mxu0
          %v1928 = vpop.f32.mrb[0].mxu0
          %v1929 = vadd.f32 0.0, %v1928
          %v1930 = vpop.f32.mrb[0].mxu0
          %1931 = vdwg.mxu0
          %v1933 = vsel %vm1837, %v1293, 0
          %v1936 = vsel %vm1837, %v1561, 0
          %1938 = vmatprep.subr.bf16.mxu0 0
          %1939 = vmatpush1.bf16.xpose.msra.mxu0 %v1936
          %1940 = vmatprep.subr.bf16.mxu0 0
          %1941 = vmatpush1.bf16.xpose.msra.mxu0 0
          %1942 = vmatprep.subr.bf16.mxu0 0
          %1943 = vmatpush1.bf16.xpose.msra.mxu0 0
          %1944 = vmatprep.subr.bf16.mxu0 0
          %1945 = vmatpush1.bf16.xpose.msra.mxu0 0
          %1946 = vmatprep.subr.bf16.mxu0 0
          %1947 = vmatpush1.bf16.xpose.msra.mxu0 0
          %1948 = vmatprep.subr.bf16.mxu0 0
          %1949 = vmatpush1.bf16.xpose.msra.mxu0 0
          %1950 = vmatprep.subr.bf16.mxu0 0
          %1951 = vmatpush1.bf16.xpose.msra.mxu0 0
          %1952 = vmatprep.subr.bf16.mxu0 0
          %1953 = vmatpush1.bf16.xpose.msra.mxu0 0
          %1954 = vmatprep.subr.bf16.mxu0 0
          %1955 = vmatpush1.bf16.xpose.msra.mxu0 0
          %1956 = vmatprep.subr.bf16.mxu0 0
          %1957 = vmatpush1.bf16.xpose.msra.mxu0 0
          %1958 = vmatprep.subr.bf16.mxu0 0
          %1959 = vmatpush1.bf16.xpose.msra.mxu0 0
          %1960 = vmatprep.subr.bf16.mxu0 0
          %1961 = vmatpush1.bf16.xpose.msra.mxu0 0
          %1962 = vmatprep.subr.bf16.mxu0 0
          %1963 = vmatpush1.bf16.xpose.msra.mxu0 0
          %1964 = vmatprep.subr.bf16.mxu0 0
          %1965 = vmatpush1.bf16.xpose.msra.mxu0 0
          %1966 = vmatprep.subr.bf16.mxu0 0
          %1967 = vmatpush1.bf16.xpose.msra.mxu0 0
          %1968 = vmatprep.subr.bf16.mxu0 0
          %1969 = vmatpush1.bf16.xpose.msra.mxu0 0
          %1970 = vmatprep.mubr.bf16.mxu0 0
          %1971 = vmatmul.mubr.bf16.gmra.mrb[0].mxu0 %v1933
          %v1972 = vpop.f32.mrb[0].mxu0
          %v1973 = vadd.f32 0.0, %v1972
          %v1974 = vpop.f32.mrb[0].mxu0
          %v1975 = vpop.f32.mrb[0].mxu0
          %v1976 = vadd.f32 0.0, %v1975
          %v1977 = vpop.f32.mrb[0].mxu0
          %1978 = vdwg.mxu0
          %v1980 = vsel %vm1837, %v1296, 0
          %v1983 = vsel %vm1837, %v1564, 0
          %1985 = vmatprep.subr.bf16.mxu0 0
          %1986 = vmatpush1.bf16.xpose.msra.mxu0 %v1983
          %1987 = vmatprep.subr.bf16.mxu0 0
          %1988 = vmatpush1.bf16.xpose.msra.mxu0 0
          %1989 = vmatprep.subr.bf16.mxu0 0
          %1990 = vmatpush1.bf16.xpose.msra.mxu0 0
          %1991 = vmatprep.subr.bf16.mxu0 0
          %1992 = vmatpush1.bf16.xpose.msra.mxu0 0
          %1993 = vmatprep.subr.bf16.mxu0 0
          %1994 = vmatpush1.bf16.xpose.msra.mxu0 0
          %1995 = vmatprep.subr.bf16.mxu0 0
          %1996 = vmatpush1.bf16.xpose.msra.mxu0 0
          %1997 = vmatprep.subr.bf16.mxu0 0
          %1998 = vmatpush1.bf16.xpose.msra.mxu0 0
          %1999 = vmatprep.subr.bf16.mxu0 0
          %2000 = vmatpush1.bf16.xpose.msra.mxu0 0
          %2001 = vmatprep.subr.bf16.mxu0 0
          %2002 = vmatpush1.bf16.xpose.msra.mxu0 0
          %2003 = vmatprep.subr.bf16.mxu0 0
          %2004 = vmatpush1.bf16.xpose.msra.mxu0 0
          %2005 = vmatprep.subr.bf16.mxu0 0
          %2006 = vmatpush1.bf16.xpose.msra.mxu0 0
          %2007 = vmatprep.subr.bf16.mxu0 0
          %2008 = vmatpush1.bf16.xpose.msra.mxu0 0
          %2009 = vmatprep.subr.bf16.mxu0 0
          %2010 = vmatpush1.bf16.xpose.msra.mxu0 0
          %2011 = vmatprep.subr.bf16.mxu0 0
          %2012 = vmatpush1.bf16.xpose.msra.mxu0 0
          %2013 = vmatprep.subr.bf16.mxu0 0
          %2014 = vmatpush1.bf16.xpose.msra.mxu0 0
          %2015 = vmatprep.subr.bf16.mxu0 0
          %2016 = vmatpush1.bf16.xpose.msra.mxu0 0
          %2017 = vmatprep.mubr.bf16.mxu0 0
          %2018 = vmatmul.mubr.bf16.gmra.mrb[0].mxu0 %v1980
          %v2019 = vpop.f32.mrb[0].mxu0
          %v2020 = vadd.f32 0.0, %v2019
          %v2021 = vpop.f32.mrb[0].mxu0
          %v2022 = vpop.f32.mrb[0].mxu0
          %v2023 = vadd.f32 0.0, %v2022
          %v2024 = vpop.f32.mrb[0].mxu0
          %2025 = vdwg.mxu0
          %v2026 = vmul.f32 %v1879, 0.35355338
          %v2027 = vmul.f32 %v1882, 0.35355338
          %v2028 = vmul.f32 %v1926, 0.35355338
          %v2029 = vmul.f32 %v1929, 0.35355338
          %v2030 = vmul.f32 %v1973, 0.35355338
          %v2031 = vmul.f32 %v1976, 0.35355338
          %v2032 = vmul.f32 %v2020, 0.35355338
          %v2033 = vmul.f32 %v2023, 0.35355338
          %vm2034 = vcmask 130048
          %v2035 = vsel %vm2034, %v2026, -inf
          %2036 = vmax.xlane.f32.xlu0 %v2035
          %v2037 = vpop.xlane.xlu0 %2036
          %v2038 = vsel %vm2034, %v2027, -inf
          %2039 = vmax.xlane.f32.xlu0 %v2038
          %v2040 = vpop.xlane.xlu0 %2039
          %v2041 = vsel %vm2034, %v2028, -inf
          %2042 = vmax.xlane.f32.xlu0 %v2041
          %v2043 = vpop.xlane.xlu0 %2042
          %v2044 = vsel %vm2034, %v2029, -inf
          %2045 = vmax.xlane.f32.xlu0 %v2044
          %v2046 = vpop.xlane.xlu0 %2045
          %v2047 = vsel %vm2034, %v2030, -inf
          %2048 = vmax.xlane.f32.xlu0 %v2047
          %v2049 = vpop.xlane.xlu0 %2048
          %v2050 = vsel %vm2034, %v2031, -inf
          %2051 = vmax.xlane.f32.xlu0 %v2050
          %v2052 = vpop.xlane.xlu0 %2051
          %v2053 = vsel %vm2034, %v2032, -inf
          %2054 = vmax.xlane.f32.xlu0 %v2053
          %v2055 = vpop.xlane.xlu0 %2054
          %v2056 = vsel %vm2034, %v2033, -inf
          %2057 = vmax.xlane.f32.xlu0 %v2056
          %v2058 = vpop.xlane.xlu0 %2057
          %v2059 = vsub.f32 %v2026, %v2037
          %v2060 = vsub.f32 %v2027, %v2040
          %v2061 = vsub.f32 %v2028, %v2043
          %v2062 = vsub.f32 %v2029, %v2046
          %v2063 = vsub.f32 %v2030, %v2049
          %v2064 = vsub.f32 %v2031, %v2052
          %v2065 = vsub.f32 %v2032, %v2055
          %v2066 = vsub.f32 %v2033, %v2058
          %v2067 = vmul.f32 %v2059, 1.442695
          %v2068 = vpow.pop %v2067
          %v2069 = vmul.f32 %v2060, 1.442695
          %v2070 = vpow.pop %v2069
          %v2071 = vmul.f32 %v2061, 1.442695
          %v2072 = vpow.pop %v2071
          %v2073 = vmul.f32 %v2062, 1.442695
          %v2074 = vpow.pop %v2073
          %v2075 = vmul.f32 %v2063, 1.442695
          %v2076 = vpow.pop %v2075
          %v2077 = vmul.f32 %v2064, 1.442695
          %v2078 = vpow.pop %v2077
          %v2079 = vmul.f32 %v2065, 1.442695
          %v2080 = vpow.pop %v2079
          %v2081 = vmul.f32 %v2066, 1.442695
          %v2082 = vpow.pop %v2081
          %v2083 = vsel %vm2034, %v2068, 0.0
          %2084 = vadd.xlane.f32.xlu0 %v2083
          %v2085 = vpop.xlane.xlu0 %2084
          %v2086 = vsel %vm2034, %v2070, 0.0
          %2087 = vadd.xlane.f32.xlu0 %v2086
          %v2088 = vpop.xlane.xlu0 %2087
          %v2089 = vsel %vm2034, %v2072, 0.0
          %2090 = vadd.xlane.f32.xlu0 %v2089
          %v2091 = vpop.xlane.xlu0 %2090
          %v2092 = vsel %vm2034, %v2074, 0.0
          %2093 = vadd.xlane.f32.xlu0 %v2092
          %v2094 = vpop.xlane.xlu0 %2093
          %v2095 = vsel %vm2034, %v2076, 0.0
          %2096 = vadd.xlane.f32.xlu0 %v2095
          %v2097 = vpop.xlane.xlu0 %2096
          %v2098 = vsel %vm2034, %v2078, 0.0
          %2099 = vadd.xlane.f32.xlu0 %v2098
          %v2100 = vpop.xlane.xlu0 %2099
          %v2101 = vsel %vm2034, %v2080, 0.0
          %2102 = vadd.xlane.f32.xlu0 %v2101
          %v2103 = vpop.xlane.xlu0 %2102
          %v2104 = vsel %vm2034, %v2082, 0.0
          %2105 = vadd.xlane.f32.xlu0 %v2104
          %v2106 = vpop.xlane.xlu0 %2105
          %v2107 = vrcp.pop %v2085
          %v2108 = vrcp.pop %v2088
          %v2109 = vrcp.pop %v2091
          %v2110 = vrcp.pop %v2094
          %v2111 = vrcp.pop %v2097
          %v2112 = vrcp.pop %v2100
          %v2113 = vrcp.pop %v2103
          %v2114 = vrcp.pop %v2106
          %v2115 = vmul.f32 %v2068, %v2107
          %v2116 = vmul.f32 %v2070, %v2108
          %v2117 = vmul.f32 %v2072, %v2109
          %v2118 = vmul.f32 %v2074, %v2110
          %v2119 = vmul.f32 %v2076, %v2111
          %v2120 = vmul.f32 %v2078, %v2112
          %v2121 = vmul.f32 %v2080, %v2113
          %v2122 = vmul.f32 %v2082, %v2114
          %v2123 = vpack.c.bf16 %v2116, %v2115
          %v2124 = vpack.c.bf16 %v2118, %v2117
          %v2125 = vpack.c.bf16 %v2120, %v2119
          %v2126 = vpack.c.bf16 %v2122, %v2121
          %v2128 = vsel %vm2034, %v2123, 0
          %2130 = vmatprep.subr.bf16.mxu0 0
          %2131 = vmatpush1.bf16.msra.mxu0 %v1823
          %2132 = vmatprep.subr.bf16.mxu0 0
          %2133 = vmatpush1.bf16.msra.mxu0 0
          %2134 = vmatprep.subr.bf16.mxu0 0
          %2135 = vmatpush1.bf16.msra.mxu0 0
          %2136 = vmatprep.subr.bf16.mxu0 0
          %2137 = vmatpush1.bf16.msra.mxu0 0
          %2138 = vmatprep.subr.bf16.mxu0 0
          %2139 = vmatpush1.bf16.msra.mxu0 0
          %2140 = vmatprep.subr.bf16.mxu0 0
          %2141 = vmatpush1.bf16.msra.mxu0 0
          %2142 = vmatprep.subr.bf16.mxu0 0
          %2143 = vmatpush1.bf16.msra.mxu0 0
          %2144 = vmatprep.subr.bf16.mxu0 0
          %2145 = vmatpush1.bf16.msra.mxu0 0
          %2146 = vmatprep.subr.bf16.mxu0 0
          %2147 = vmatpush1.bf16.msra.mxu0 0
          %2148 = vmatprep.subr.bf16.mxu0 0
          %2149 = vmatpush1.bf16.msra.mxu0 0
          %2150 = vmatprep.subr.bf16.mxu0 0
          %2151 = vmatpush1.bf16.msra.mxu0 0
          %2152 = vmatprep.subr.bf16.mxu0 0
          %2153 = vmatpush1.bf16.msra.mxu0 0
          %2154 = vmatprep.subr.bf16.mxu0 0
          %2155 = vmatpush1.bf16.msra.mxu0 0
          %2156 = vmatprep.subr.bf16.mxu0 0
          %2157 = vmatpush1.bf16.msra.mxu0 0
          %2158 = vmatprep.subr.bf16.mxu0 0
          %2159 = vmatpush1.bf16.msra.mxu0 0
          %2160 = vmatprep.subr.bf16.mxu0 0
          %2161 = vmatpush1.bf16.msra.mxu0 0
          %2162 = vmatprep.mubr.bf16.mxu0 0
          %2163 = vmatmul.mubr.bf16.gmra.mrb[0].mxu0 %v2128
          %v2164 = vpop.f32.mrb[0].mxu0
          %v2165 = vadd.f32 0.0, %v2164
          %v2166 = vpop.f32.mrb[0].mxu0
          %v2167 = vpop.f32.mrb[0].mxu0
          %v2168 = vadd.f32 0.0, %v2167
          %v2169 = vpop.f32.mrb[0].mxu0
          %2170 = vdwg.mxu0
          %v2172 = vsel %vm2034, %v2124, 0
          %2174 = vmatprep.subr.bf16.mxu0 0
          %2175 = vmatpush1.bf16.msra.mxu0 %v1827
          %2176 = vmatprep.subr.bf16.mxu0 0
          %2177 = vmatpush1.bf16.msra.mxu0 0
          %2178 = vmatprep.subr.bf16.mxu0 0
          %2179 = vmatpush1.bf16.msra.mxu0 0
          %2180 = vmatprep.subr.bf16.mxu0 0
          %2181 = vmatpush1.bf16.msra.mxu0 0
          %2182 = vmatprep.subr.bf16.mxu0 0
          %2183 = vmatpush1.bf16.msra.mxu0 0
          %2184 = vmatprep.subr.bf16.mxu0 0
          %2185 = vmatpush1.bf16.msra.mxu0 0
          %2186 = vmatprep.subr.bf16.mxu0 0
          %2187 = vmatpush1.bf16.msra.mxu0 0
          %2188 = vmatprep.subr.bf16.mxu0 0
          %2189 = vmatpush1.bf16.msra.mxu0 0
          %2190 = vmatprep.subr.bf16.mxu0 0
          %2191 = vmatpush1.bf16.msra.mxu0 0
          %2192 = vmatprep.subr.bf16.mxu0 0
          %2193 = vmatpush1.bf16.msra.mxu0 0
          %2194 = vmatprep.subr.bf16.mxu0 0
          %2195 = vmatpush1.bf16.msra.mxu0 0
          %2196 = vmatprep.subr.bf16.mxu0 0
          %2197 = vmatpush1.bf16.msra.mxu0 0
          %2198 = vmatprep.subr.bf16.mxu0 0
          %2199 = vmatpush1.bf16.msra.mxu0 0
          %2200 = vmatprep.subr.bf16.mxu0 0
          %2201 = vmatpush1.bf16.msra.mxu0 0
          %2202 = vmatprep.subr.bf16.mxu0 0
          %2203 = vmatpush1.bf16.msra.mxu0 0
          %2204 = vmatprep.subr.bf16.mxu0 0
          %2205 = vmatpush1.bf16.msra.mxu0 0
          %2206 = vmatprep.mubr.bf16.mxu0 0
          %2207 = vmatmul.mubr.bf16.gmra.mrb[0].mxu0 %v2172
          %v2208 = vpop.f32.mrb[0].mxu0
          %v2209 = vadd.f32 0.0, %v2208
          %v2210 = vpop.f32.mrb[0].mxu0
          %v2211 = vpop.f32.mrb[0].mxu0
          %v2212 = vadd.f32 0.0, %v2211
          %v2213 = vpop.f32.mrb[0].mxu0
          %2214 = vdwg.mxu0
          %v2216 = vsel %vm2034, %v2125, 0
          %2218 = vmatprep.subr.bf16.mxu0 0
          %2219 = vmatpush1.bf16.msra.mxu0 %v1831
          %2220 = vmatprep.subr.bf16.mxu0 0
          %2221 = vmatpush1.bf16.msra.mxu0 0
          %2222 = vmatprep.subr.bf16.mxu0 0
          %2223 = vmatpush1.bf16.msra.mxu0 0
          %2224 = vmatprep.subr.bf16.mxu0 0
          %2225 = vmatpush1.bf16.msra.mxu0 0
          %2226 = vmatprep.subr.bf16.mxu0 0
          %2227 = vmatpush1.bf16.msra.mxu0 0
          %2228 = vmatprep.subr.bf16.mxu0 0
          %2229 = vmatpush1.bf16.msra.mxu0 0
          %2230 = vmatprep.subr.bf16.mxu0 0
          %2231 = vmatpush1.bf16.msra.mxu0 0
          %2232 = vmatprep.subr.bf16.mxu0 0
          %2233 = vmatpush1.bf16.msra.mxu0 0
          %2234 = vmatprep.subr.bf16.mxu0 0
          %2235 = vmatpush1.bf16.msra.mxu0 0
          %2236 = vmatprep.subr.bf16.mxu0 0
          %2237 = vmatpush1.bf16.msra.mxu0 0
          %2238 = vmatprep.subr.bf16.mxu0 0
          %2239 = vmatpush1.bf16.msra.mxu0 0
          %2240 = vmatprep.subr.bf16.mxu0 0
          %2241 = vmatpush1.bf16.msra.mxu0 0
          %2242 = vmatprep.subr.bf16.mxu0 0
          %2243 = vmatpush1.bf16.msra.mxu0 0
          %2244 = vmatprep.subr.bf16.mxu0 0
          %2245 = vmatpush1.bf16.msra.mxu0 0
          %2246 = vmatprep.subr.bf16.mxu0 0
          %2247 = vmatpush1.bf16.msra.mxu0 0
          %2248 = vmatprep.subr.bf16.mxu0 0
          %2249 = vmatpush1.bf16.msra.mxu0 0
          %2250 = vmatprep.mubr.bf16.mxu0 0
          %2251 = vmatmul.mubr.bf16.gmra.mrb[0].mxu0 %v2216
          %v2252 = vpop.f32.mrb[0].mxu0
          %v2253 = vadd.f32 0.0, %v2252
          %v2254 = vpop.f32.mrb[0].mxu0
          %v2255 = vpop.f32.mrb[0].mxu0
          %v2256 = vadd.f32 0.0, %v2255
          %v2257 = vpop.f32.mrb[0].mxu0
          %2258 = vdwg.mxu0
          %v2260 = vsel %vm2034, %v2126, 0
          %2262 = vmatprep.subr.bf16.mxu0 0
          %2263 = vmatpush1.bf16.msra.mxu0 %v1835
          %2264 = vmatprep.subr.bf16.mxu0 0
          %2265 = vmatpush1.bf16.msra.mxu0 0
          %2266 = vmatprep.subr.bf16.mxu0 0
          %2267 = vmatpush1.bf16.msra.mxu0 0
          %2268 = vmatprep.subr.bf16.mxu0 0
          %2269 = vmatpush1.bf16.msra.mxu0 0
          %2270 = vmatprep.subr.bf16.mxu0 0
          %2271 = vmatpush1.bf16.msra.mxu0 0
          %2272 = vmatprep.subr.bf16.mxu0 0
          %2273 = vmatpush1.bf16.msra.mxu0 0
          %2274 = vmatprep.subr.bf16.mxu0 0
          %2275 = vmatpush1.bf16.msra.mxu0 0
          %2276 = vmatprep.subr.bf16.mxu0 0
          %2277 = vmatpush1.bf16.msra.mxu0 0
          %2278 = vmatprep.subr.bf16.mxu0 0
          %2279 = vmatpush1.bf16.msra.mxu0 0
          %2280 = vmatprep.subr.bf16.mxu0 0
          %2281 = vmatpush1.bf16.msra.mxu0 0
          %2282 = vmatprep.subr.bf16.mxu0 0
          %2283 = vmatpush1.bf16.msra.mxu0 0
          %2284 = vmatprep.subr.bf16.mxu0 0
          %2285 = vmatpush1.bf16.msra.mxu0 0
          %2286 = vmatprep.subr.bf16.mxu0 0
          %2287 = vmatpush1.bf16.msra.mxu0 0
          %2288 = vmatprep.subr.bf16.mxu0 0
          %2289 = vmatpush1.bf16.msra.mxu0 0
          %2290 = vmatprep.subr.bf16.mxu0 0
          %2291 = vmatpush1.bf16.msra.mxu0 0
          %2292 = vmatprep.subr.bf16.mxu0 0
          %2293 = vmatpush1.bf16.msra.mxu0 0
          %2294 = vmatprep.mubr.bf16.mxu0 0
          %2295 = vmatmul.mubr.bf16.gmra.mrb[0].mxu0 %v2260
          %v2296 = vpop.f32.mrb[0].mxu0
          %v2297 = vadd.f32 0.0, %v2296
          %v2298 = vpop.f32.mrb[0].mxu0
          %v2299 = vpop.f32.mrb[0].mxu0
          %v2300 = vadd.f32 0.0, %v2299
          %v2301 = vpop.f32.mrb[0].mxu0
          %2302 = vdwg.mxu0
          %v2303 = vcombine.low %v2165, %v2253
          %v2304 = vcombine.high %v2165, %v2253
          %v2306 = vunpack.c.l.s4 1983009808
          %v2307 = vunpack.c.0.s8 %v2306
          %v2308 = vlaneseq
          %v2309 = vshrl.u32 %v2308, 7
          %v2310 = vsub.s32 %v2307, %v2309
          %v2311 = vrot.slane %v2303, %v2310
          %v2313 = vunpack.c.l.s4 1983009808
          %v2314 = vunpack.c.0.s8 %v2313
          %v2315 = vlaneseq
          %v2316 = vshrl.u32 %v2315, 7
          %v2317 = vsub.s32 %v2314, %v2316
          %v2318 = vrot.slane %v2304, %v2317
          %v2319 = vcombine.low %v2209, %v2297
          %v2320 = vcombine.high %v2209, %v2297
          %v2322 = vunpack.c.l.s4 1983009808
          %v2323 = vunpack.c.0.s8 %v2322
          %v2324 = vlaneseq
          %v2325 = vshrl.u32 %v2324, 7
          %v2326 = vsub.s32 %v2323, %v2325
          %v2327 = vrot.slane %v2319, %v2326
          %v2329 = vunpack.c.l.s4 1983009808
          %v2330 = vunpack.c.0.s8 %v2329
          %v2331 = vlaneseq
          %v2332 = vshrl.u32 %v2331, 7
          %v2333 = vsub.s32 %v2330, %v2332
          %v2334 = vrot.slane %v2320, %v2333
          %v2335 = vcombine.low %v2311, %v2327
          %v2336 = vcombine.high %v2311, %v2327
          %v2338 = vunpack.c.l.s4 1934713408
          %v2339 = vunpack.c.0.s8 %v2338
          %v2340 = vlaneseq
          %v2341 = vshrl.u32 %v2340, 7
          %v2342 = vsub.s32 %v2339, %v2341
          %v2343 = vrot.slane %v2335, %v2342
          %v2345 = vunpack.c.l.s4 1934713408
          %v2346 = vunpack.c.0.s8 %v2345
          %v2347 = vlaneseq
          %v2348 = vshrl.u32 %v2347, 7
          %v2349 = vsub.s32 %v2346, %v2348
          %v2350 = vrot.slane %v2336, %v2349
          %v2351 = vcombine.low %v2318, %v2334
          %v2352 = vcombine.high %v2318, %v2334
          %v2354 = vunpack.c.l.s4 1934713408
          %v2355 = vunpack.c.0.s8 %v2354
          %v2356 = vlaneseq
          %v2357 = vshrl.u32 %v2356, 7
          %v2358 = vsub.s32 %v2355, %v2357
          %v2359 = vrot.slane %v2351, %v2358
          %v2361 = vunpack.c.l.s4 1934713408
          %v2362 = vunpack.c.0.s8 %v2361
          %v2363 = vlaneseq
          %v2364 = vshrl.u32 %v2363, 7
          %v2365 = vsub.s32 %v2362, %v2364
          %v2366 = vrot.slane %v2352, %v2365
          %v2367 = vcombine.high %v2343, 0.0
          %v2368 = vcombine.high %v2350, 0.0
          %v2369 = vcombine.high %v2359, 0.0
          %v2370 = vcombine.high %v2366, 0.0
          %v2371 = vcombine.low %v2168, %v2256
          %v2372 = vcombine.high %v2168, %v2256
          %v2374 = vunpack.c.l.s4 1983009808
          %v2375 = vunpack.c.0.s8 %v2374
          %v2376 = vlaneseq
          %v2377 = vshrl.u32 %v2376, 7
          %v2378 = vsub.s32 %v2375, %v2377
          %v2379 = vrot.slane %v2371, %v2378
          %v2381 = vunpack.c.l.s4 1983009808
          %v2382 = vunpack.c.0.s8 %v2381
          %v2383 = vlaneseq
          %v2384 = vshrl.u32 %v2383, 7
          %v2385 = vsub.s32 %v2382, %v2384
          %v2386 = vrot.slane %v2372, %v2385
          %v2387 = vcombine.low %v2212, %v2300
          %v2388 = vcombine.high %v2212, %v2300
          %v2390 = vunpack.c.l.s4 1983009808
          %v2391 = vunpack.c.0.s8 %v2390
          %v2392 = vlaneseq
          %v2393 = vshrl.u32 %v2392, 7
          %v2394 = vsub.s32 %v2391, %v2393
          %v2395 = vrot.slane %v2387, %v2394
          %v2397 = vunpack.c.l.s4 1983009808
          %v2398 = vunpack.c.0.s8 %v2397
          %v2399 = vlaneseq
          %v2400 = vshrl.u32 %v2399, 7
          %v2401 = vsub.s32 %v2398, %v2400
          %v2402 = vrot.slane %v2388, %v2401
          %v2403 = vcombine.low %v2379, %v2395
          %v2404 = vcombine.high %v2379, %v2395
          %v2406 = vunpack.c.l.s4 1934713408
          %v2407 = vunpack.c.0.s8 %v2406
          %v2408 = vlaneseq
          %v2409 = vshrl.u32 %v2408, 7
          %v2410 = vsub.s32 %v2407, %v2409
          %v2411 = vrot.slane %v2403, %v2410
          %v2413 = vunpack.c.l.s4 1934713408
          %v2414 = vunpack.c.0.s8 %v2413
          %v2415 = vlaneseq
          %v2416 = vshrl.u32 %v2415, 7
          %v2417 = vsub.s32 %v2414, %v2416
          %v2418 = vrot.slane %v2404, %v2417
          %v2419 = vcombine.low %v2386, %v2402
          %v2420 = vcombine.high %v2386, %v2402
          %v2422 = vunpack.c.l.s4 1934713408
          %v2423 = vunpack.c.0.s8 %v2422
          %v2424 = vlaneseq
          %v2425 = vshrl.u32 %v2424, 7
          %v2426 = vsub.s32 %v2423, %v2425
          %v2427 = vrot.slane %v2419, %v2426
          %v2429 = vunpack.c.l.s4 1934713408
          %v2430 = vunpack.c.0.s8 %v2429
          %v2431 = vlaneseq
          %v2432 = vshrl.u32 %v2431, 7
          %v2433 = vsub.s32 %v2430, %v2432
          %v2434 = vrot.slane %v2420, %v2433
          %v2435 = vcombine.high %v2411, 0.0
          %v2436 = vcombine.high %v2418, 0.0
          %v2437 = vcombine.high %v2427, 0.0
          %v2438 = vcombine.high %v2434, 0.0
          %v2439 = vcombine.low %v2343, %v2350
          %v2441 = vunpack.c.l.s4 1983009808
          %v2442 = vunpack.c.0.s8 %v2441
          %v2443 = vlaneseq
          %v2444 = vshrl.u32 %v2443, 7
          %v2445 = vsub.s32 %v2442, %v2444
          %v2446 = vrot.slane %v2439, %v2445
          %v2447 = vcombine.low %v2367, %v2368
          %v2449 = vunpack.c.l.s4 1983009808
          %v2450 = vunpack.c.0.s8 %v2449
          %v2451 = vlaneseq
          %v2452 = vshrl.u32 %v2451, 7
          %v2453 = vsub.s32 %v2450, %v2452
          %v2454 = vrot.slane %v2447, %v2453
          %v2455 = vcombine.low %v2359, %v2366
          %v2457 = vunpack.c.l.s4 1983009808
          %v2458 = vunpack.c.0.s8 %v2457
          %v2459 = vlaneseq
          %v2460 = vshrl.u32 %v2459, 7
          %v2461 = vsub.s32 %v2458, %v2460
          %v2462 = vrot.slane %v2455, %v2461
          %v2463 = vcombine.low %v2369, %v2370
          %v2465 = vunpack.c.l.s4 1983009808
          %v2466 = vunpack.c.0.s8 %v2465
          %v2467 = vlaneseq
          %v2468 = vshrl.u32 %v2467, 7
          %v2469 = vsub.s32 %v2466, %v2468
          %v2470 = vrot.slane %v2463, %v2469
          %v2471 = vcombine.low %v2446, %v2454
          %v2472 = vcombine.high %v2446, %v2454
          %v2474 = vunpack.c.l.s4 1934713408
          %v2475 = vunpack.c.0.s8 %v2474
          %v2476 = vlaneseq
          %v2477 = vshrl.u32 %v2476, 7
          %v2478 = vsub.s32 %v2475, %v2477
          %v2479 = vrot.slane %v2471, %v2478
          %v2481 = vunpack.c.l.s4 1934713408
          %v2482 = vunpack.c.0.s8 %v2481
          %v2483 = vlaneseq
          %v2484 = vshrl.u32 %v2483, 7
          %v2485 = vsub.s32 %v2482, %v2484
          %v2486 = vrot.slane %v2472, %v2485
          %v2487 = vcombine.low %v2462, %v2470
          %v2488 = vcombine.high %v2462, %v2470
          %v2490 = vunpack.c.l.s4 1934713408
          %v2491 = vunpack.c.0.s8 %v2490
          %v2492 = vlaneseq
          %v2493 = vshrl.u32 %v2492, 7
          %v2494 = vsub.s32 %v2491, %v2493
          %v2495 = vrot.slane %v2487, %v2494
          %v2497 = vunpack.c.l.s4 1934713408
          %v2498 = vunpack.c.0.s8 %v2497
          %v2499 = vlaneseq
          %v2500 = vshrl.u32 %v2499, 7
          %v2501 = vsub.s32 %v2498, %v2500
          %v2502 = vrot.slane %v2488, %v2501
          %v2503 = vcombine.low %v2479, %v2495
          %v2504 = vcombine.high %v2479, %v2495
          %v2505 = vcombine.low %v2486, %v2502
          %v2506 = vcombine.high %v2486, %v2502
          %v2507 = vcombine.low %v2411, %v2418
          %v2509 = vunpack.c.l.s4 1983009808
          %v2510 = vunpack.c.0.s8 %v2509
          %v2511 = vlaneseq
          %v2512 = vshrl.u32 %v2511, 7
          %v2513 = vsub.s32 %v2510, %v2512
          %v2514 = vrot.slane %v2507, %v2513
          %v2515 = vcombine.low %v2435, %v2436
          %v2517 = vunpack.c.l.s4 1983009808
          %v2518 = vunpack.c.0.s8 %v2517
          %v2519 = vlaneseq
          %v2520 = vshrl.u32 %v2519, 7
          %v2521 = vsub.s32 %v2518, %v2520
          %v2522 = vrot.slane %v2515, %v2521
          %v2523 = vcombine.low %v2427, %v2434
          %v2525 = vunpack.c.l.s4 1983009808
          %v2526 = vunpack.c.0.s8 %v2525
          %v2527 = vlaneseq
          %v2528 = vshrl.u32 %v2527, 7
          %v2529 = vsub.s32 %v2526, %v2528
          %v2530 = vrot.slane %v2523, %v2529
          %v2531 = vcombine.low %v2437, %v2438
          %v2533 = vunpack.c.l.s4 1983009808
          %v2534 = vunpack.c.0.s8 %v2533
          %v2535 = vlaneseq
          %v2536 = vshrl.u32 %v2535, 7
          %v2537 = vsub.s32 %v2534, %v2536
          %v2538 = vrot.slane %v2531, %v2537
          %v2539 = vcombine.low %v2514, %v2522
          %v2540 = vcombine.high %v2514, %v2522
          %v2542 = vunpack.c.l.s4 1934713408
          %v2543 = vunpack.c.0.s8 %v2542
          %v2544 = vlaneseq
          %v2545 = vshrl.u32 %v2544, 7
          %v2546 = vsub.s32 %v2543, %v2545
          %v2547 = vrot.slane %v2539, %v2546
          %v2549 = vunpack.c.l.s4 1934713408
          %v2550 = vunpack.c.0.s8 %v2549
          %v2551 = vlaneseq
          %v2552 = vshrl.u32 %v2551, 7
          %v2553 = vsub.s32 %v2550, %v2552
          %v2554 = vrot.slane %v2540, %v2553
          %v2555 = vcombine.low %v2530, %v2538
          %v2556 = vcombine.high %v2530, %v2538
          %v2558 = vunpack.c.l.s4 1934713408
          %v2559 = vunpack.c.0.s8 %v2558
          %v2560 = vlaneseq
          %v2561 = vshrl.u32 %v2560, 7
          %v2562 = vsub.s32 %v2559, %v2561
          %v2563 = vrot.slane %v2555, %v2562
          %v2565 = vunpack.c.l.s4 1934713408
          %v2566 = vunpack.c.0.s8 %v2565
          %v2567 = vlaneseq
          %v2568 = vshrl.u32 %v2567, 7
          %v2569 = vsub.s32 %v2566, %v2568
          %v2570 = vrot.slane %v2556, %v2569
          %v2571 = vcombine.low %v2547, %v2563
          %v2572 = vcombine.high %v2547, %v2563
          %v2573 = vcombine.low %v2554, %v2570
          %v2574 = vcombine.high %v2554, %v2570
          %2577 = vrot.lane.b32.xlu0 %v2504, 8
          %v2578 = vpop.permute.xlu0 %2577
          %2579 = vrot.lane.b32.xlu0 %v2572, 8
          %v2580 = vpop.permute.xlu0 %2579
          %2585 = vrot.lane.b32.xlu0 %v2505, 16
          %v2586 = vpop.permute.xlu0 %2585
          %2587 = vrot.lane.b32.xlu0 %v2573, 16
          %v2588 = vpop.permute.xlu0 %2587
          %2593 = vrot.lane.b32.xlu0 %v2506, 24
          %v2594 = vpop.permute.xlu0 %2593
          %2595 = vrot.lane.b32.xlu0 %v2574, 24
          %v2596 = vpop.permute.xlu0 %2595
          %v2599 = vsel %vm1837, %v2503, %v2578
          %v2600 = vsel %vm1837, %v2571, %v2580
          %v2601 = vsel %vm2034, %v2599, %v2586
          %v2602 = vsel %vm2034, %v2600, %v2588
          %vm2603 = vcmask 195584
          %v2604 = vsel %vm2603, %v2601, %v2594
          %v2605 = vsel %vm2603, %v2602, %v2596
          %v2606 = vpack.c.bf16 %v2605, %v2604
          %v2607 = vld [vmem:[%s12] sm:$0xf]
          %v2608 = vld [vmem:[%s12 + $0x4] sm:$0xf]
          %v2609 = vld [vmem:[%s12 + $0x8] sm:$0xf]
          %v2610 = vld [vmem:[%s12 + $0xc] sm:$0xf]
          %v2611 = vld [vmem:[%s13] sm:$0x1]
          %v2613 = vlaneseq
          %v2614 = vshrl.u32 %v2613, 7
          %v2615 = vsub.s32 0, %v2614
          %v2616 = vrot.slane %v2611, %v2615
          %v2622 = vunpack.c.l.b16 %v2607
          %v2623 = vunpack.c.l.b16 %v2608
          %v2624 = vunpack.c.l.b16 %v2609
          %v2625 = vunpack.c.l.b16 %v2610
          %v2626 = vpack.c.b16 %v2623, %v2622
          %v2627 = vpack.c.b16 %v2625, %v2624
          %v2631 = vsel %vm783, %v2606, 0
          %2633 = vmatprep.subr.bf16.mxu0 0
          %2634 = vmatpush1.bf16.msra.mxu0 %v2626
          %2635 = vmatprep.subr.bf16.mxu0 0
          %2636 = vmatpush1.bf16.msra.mxu0 %v2627
          %2637 = vmatprep.subr.bf16.mxu0 0
          %2638 = vmatpush1.bf16.msra.mxu0 0
          %2639 = vmatprep.subr.bf16.mxu0 0
          %2640 = vmatpush1.bf16.msra.mxu0 0
          %2641 = vmatprep.subr.bf16.mxu0 0
          %2642 = vmatpush1.bf16.msra.mxu0 0
          %2643 = vmatprep.subr.bf16.mxu0 0
          %2644 = vmatpush1.bf16.msra.mxu0 0
          %2645 = vmatprep.subr.bf16.mxu0 0
          %2646 = vmatpush1.bf16.msra.mxu0 0
          %2647 = vmatprep.subr.bf16.mxu0 0
          %2648 = vmatpush1.bf16.msra.mxu0 0
          %2649 = vmatprep.subr.bf16.mxu0 0
          %2650 = vmatpush1.bf16.msra.mxu0 0
          %2651 = vmatprep.subr.bf16.mxu0 0
          %2652 = vmatpush1.bf16.msra.mxu0 0
          %2653 = vmatprep.subr.bf16.mxu0 0
          %2654 = vmatpush1.bf16.msra.mxu0 0
          %2655 = vmatprep.subr.bf16.mxu0 0
          %2656 = vmatpush1.bf16.msra.mxu0 0
          %2657 = vmatprep.subr.bf16.mxu0 0
          %2658 = vmatpush1.bf16.msra.mxu0 0
          %2659 = vmatprep.subr.bf16.mxu0 0
          %2660 = vmatpush1.bf16.msra.mxu0 0
          %2661 = vmatprep.subr.bf16.mxu0 0
          %2662 = vmatpush1.bf16.msra.mxu0 0
          %2663 = vmatprep.subr.bf16.mxu0 0
          %2664 = vmatpush1.bf16.msra.mxu0 0
          %2665 = vmatprep.mubr.bf16.mxu0 0
          %2666 = vmatmul.mubr.bf16.gmra.mrb[0].mxu0 %v2631
          %v2667 = vpop.f32.mrb[0].mxu0
          %v2668 = vadd.f32 %v2616, %v2667
          %v2669 = vpop.f32.mrb[0].mxu0
          %v2670 = vpop.f32.mrb[0].mxu0
          %v2671 = vadd.f32 %v2616, %v2670
          %v2672 = vpop.f32.mrb[0].mxu0
          %2673 = vdwg.mxu0
          %v2674 = vadd.f32 %v779, %v2668
          %v2675 = vadd.f32 %v780, %v2671
          %v2676 = vld [vmem:[%s14] sm:$0x1]
          %v2677 = vld [vmem:[%s15] sm:$0x1]
          %v2678 = vsel %vm783, %v2674, 0.0
          %2679 = vadd.xlane.f32.xlu0 %v2678
          %v2680 = vpop.xlane.xlu0 %2679
          %v2681 = vsel %vm783, %v2675, 0.0
          %2682 = vadd.xlane.f32.xlu0 %v2681
          %v2683 = vpop.xlane.xlu0 %2682
          %v2684 = vmul.f32 %v2680, %v790
          %v2685 = vmul.f32 %v2683, %v790
          %v2686 = vsub.f32 %v2674, %v2684
          %v2687 = vsub.f32 %v2675, %v2685
          %v2688 = vmul.f32 %v2686, %v2686
          %v2689 = vmul.f32 %v2687, %v2687
          %v2690 = vsel %vm783, %v2688, 0.0
          %2691 = vadd.xlane.f32.xlu0 %v2690
          %v2692 = vpop.xlane.xlu0 %2691
          %v2693 = vsel %vm783, %v2689, 0.0
          %2694 = vadd.xlane.f32.xlu0 %v2693
          %v2695 = vpop.xlane.xlu0 %2694
          %v2696 = vmul.f32 %v2692, %v790
          %v2697 = vmul.f32 %v2695, %v790
          %v2698 = vadd.f32 %v2696, 1e-05
          %v2699 = vadd.f32 %v2697, 1e-05
          %v2700 = vrsqrt.pop %v2698
          %v2701 = vrsqrt.pop %v2699
          %v2702 = vmul.f32 %v2686, %v2700
          %v2703 = vmul.f32 %v2687, %v2701
          %v2705 = vlaneseq
          %v2706 = vshrl.u32 %v2705, 7
          %v2707 = vsub.s32 0, %v2706
          %v2708 = vrot.slane %v2676, %v2707
          %v2710 = vmul.f32 %v2702, %v2708
          %v2711 = vmul.f32 %v2703, %v2708
          %v2713 = vlaneseq
          %v2714 = vshrl.u32 %v2713, 7
          %v2715 = vsub.s32 0, %v2714
          %v2716 = vrot.slane %v2677, %v2715
          %v2718 = vadd.f32 %v2710, %v2716
          %v2719 = vadd.f32 %v2711, %v2716
          %v2720 = vpack.c.bf16 %v2719, %v2718
          %v2721 = vld [vmem:[%s16] sm:$0xf]
          %v2722 = vld [vmem:[%s16 + $0x4] sm:$0xf]
          %v2723 = vld [vmem:[%s16 + $0x8] sm:$0xf]
          %v2724 = vld [vmem:[%s16 + $0xc] sm:$0xf]
          %v2725 = vld [vmem:[%s17] sm:$0x1]
          %v2727 = vlaneseq
          %v2728 = vshrl.u32 %v2727, 7
          %v2729 = vsub.s32 0, %v2728
          %v2730 = vrot.slane %v2725, %v2729
          %v2736 = vunpack.c.l.b16 %v2721
          %v2737 = vunpack.c.l.b16 %v2722
          %v2738 = vunpack.c.l.b16 %v2723
          %v2739 = vunpack.c.l.b16 %v2724
          %v2740 = vpack.c.b16 %v2737, %v2736
          %v2741 = vpack.c.b16 %v2739, %v2738
          %v2745 = vsel %vm783, %v2720, 0
          %2747 = vmatprep.subr.bf16.mxu0 0
          %2748 = vmatpush1.bf16.msra.mxu0 %v2740
          %2749 = vmatprep.subr.bf16.mxu0 0
          %2750 = vmatpush1.bf16.msra.mxu0 %v2741
          %2751 = vmatprep.subr.bf16.mxu0 0
          %2752 = vmatpush1.bf16.msra.mxu0 0
          %2753 = vmatprep.subr.bf16.mxu0 0
          %2754 = vmatpush1.bf16.msra.mxu0 0
          %2755 = vmatprep.subr.bf16.mxu0 0
          %2756 = vmatpush1.bf16.msra.mxu0 0
          %2757 = vmatprep.subr.bf16.mxu0 0
          %2758 = vmatpush1.bf16.msra.mxu0 0
          %2759 = vmatprep.subr.bf16.mxu0 0
          %2760 = vmatpush1.bf16.msra.mxu0 0
          %2761 = vmatprep.subr.bf16.mxu0 0
          %2762 = vmatpush1.bf16.msra.mxu0 0
          %2763 = vmatprep.subr.bf16.mxu0 0
          %2764 = vmatpush1.bf16.msra.mxu0 0
          %2765 = vmatprep.subr.bf16.mxu0 0
          %2766 = vmatpush1.bf16.msra.mxu0 0
          %2767 = vmatprep.subr.bf16.mxu0 0
          %2768 = vmatpush1.bf16.msra.mxu0 0
          %2769 = vmatprep.subr.bf16.mxu0 0
          %2770 = vmatpush1.bf16.msra.mxu0 0
          %2771 = vmatprep.subr.bf16.mxu0 0
          %2772 = vmatpush1.bf16.msra.mxu0 0
          %2773 = vmatprep.subr.bf16.mxu0 0
          %2774 = vmatpush1.bf16.msra.mxu0 0
          %2775 = vmatprep.subr.bf16.mxu0 0
          %2776 = vmatpush1.bf16.msra.mxu0 0
          %2777 = vmatprep.subr.bf16.mxu0 0
          %2778 = vmatpush1.bf16.msra.mxu0 0
          %2779 = vmatprep.mubr.bf16.mxu0 0
          %2780 = vmatmul.mubr.bf16.gmra.mrb[0].mxu0 %v2745
          %v2781 = vpop.f32.mrb[0].mxu0
          %v2782 = vadd.f32 %v2730, %v2781
          %v2783 = vpop.f32.mrb[0].mxu0
          %v2784 = vpop.f32.mrb[0].mxu0
          %v2785 = vadd.f32 %v2730, %v2784
          %v2786 = vpop.f32.mrb[0].mxu0
          %2787 = vdwg.mxu0
          %v2788 = vmul.f32 %v2782, %v2782
          %v2789 = vmul.f32 %v2785, %v2785
          %v2790 = vmul.f32 %v2782, %v2788
          %v2791 = vmul.f32 %v2785, %v2789
          %v2792 = vmul.f32 %v2790, 0.044715
          %v2793 = vmul.f32 %v2791, 0.044715
          %v2794 = vadd.f32 %v2782, %v2792
          %v2795 = vadd.f32 %v2785, %v2793
          %v2796 = vmul.f32 %v2794, 0.7978846
          %v2797 = vmul.f32 %v2795, 0.7978846
          %v2798 = vtanh.pop %v2796
          %v2799 = vtanh.pop %v2797
          %v2800 = vadd.f32 %v2798, 1.0
          %v2801 = vadd.f32 %v2799, 1.0
          %v2802 = vmul.f32 %v2800, 0.5
          %v2803 = vmul.f32 %v2801, 0.5
          %v2804 = vmul.f32 %v2782, %v2802
          %v2805 = vmul.f32 %v2785, %v2803
          %v2806 = vpack.c.bf16 %v2805, %v2804
          %v2807 = vld [vmem:[%s18] sm:$0xf]
          %v2808 = vld [vmem:[%s18 + $0x4] sm:$0xf]
          %v2809 = vld [vmem:[%s18 + $0x8] sm:$0xf]
          %v2810 = vld [vmem:[%s18 + $0xc] sm:$0xf]
          %v2811 = vld [vmem:[%s18 + $0x10] sm:$0xf]
          %v2812 = vld [vmem:[%s18 + $0x14] sm:$0xf]
          %v2813 = vld [vmem:[%s18 + $0x18] sm:$0xf]
          %v2814 = vld [vmem:[%s18 + $0x1c] sm:$0xf]
          %v2815 = vld [vmem:[%s19] sm:$0x1]
          %v2817 = vlaneseq
          %v2818 = vshrl.u32 %v2817, 7
          %v2819 = vsub.s32 0, %v2818
          %v2820 = vrot.slane %v2815, %v2819
          %v2830 = vunpack.c.l.b16 %v2807
          %v2831 = vunpack.c.l.b16 %v2808
          %v2832 = vunpack.c.l.b16 %v2809
          %v2833 = vunpack.c.l.b16 %v2810
          %v2834 = vunpack.c.l.b16 %v2811
          %v2835 = vunpack.c.l.b16 %v2812
          %v2836 = vunpack.c.l.b16 %v2813
          %v2837 = vunpack.c.l.b16 %v2814
          %v2838 = vpack.c.b16 %v2831, %v2830
          %v2839 = vpack.c.b16 %v2833, %v2832
          %v2840 = vpack.c.b16 %v2835, %v2834
          %v2841 = vpack.c.b16 %v2837, %v2836
          %v2847 = vsel %vm724, %v2806, 0
          %2849 = vmatprep.subr.bf16.mxu0 0
          %2850 = vmatpush1.bf16.msra.mxu0 %v2838
          %2851 = vmatprep.subr.bf16.mxu0 0
          %2852 = vmatpush1.bf16.msra.mxu0 %v2839
          %2853 = vmatprep.subr.bf16.mxu0 0
          %2854 = vmatpush1.bf16.msra.mxu0 %v2840
          %2855 = vmatprep.subr.bf16.mxu0 0
          %2856 = vmatpush1.bf16.msra.mxu0 %v2841
          %2857 = vmatprep.subr.bf16.mxu0 0
          %2858 = vmatpush1.bf16.msra.mxu0 0
          %2859 = vmatprep.subr.bf16.mxu0 0
          %2860 = vmatpush1.bf16.msra.mxu0 0
          %2861 = vmatprep.subr.bf16.mxu0 0
          %2862 = vmatpush1.bf16.msra.mxu0 0
          %2863 = vmatprep.subr.bf16.mxu0 0
          %2864 = vmatpush1.bf16.msra.mxu0 0
          %2865 = vmatprep.subr.bf16.mxu0 0
          %2866 = vmatpush1.bf16.msra.mxu0 0
          %2867 = vmatprep.subr.bf16.mxu0 0
          %2868 = vmatpush1.bf16.msra.mxu0 0
          %2869 = vmatprep.subr.bf16.mxu0 0
          %2870 = vmatpush1.bf16.msra.mxu0 0
          %2871 = vmatprep.subr.bf16.mxu0 0
          %2872 = vmatpush1.bf16.msra.mxu0 0
          %2873 = vmatprep.subr.bf16.mxu0 0
          %2874 = vmatpush1.bf16.msra.mxu0 0
          %2875 = vmatprep.subr.bf16.mxu0 0
          %2876 = vmatpush1.bf16.msra.mxu0 0
          %2877 = vmatprep.subr.bf16.mxu0 0
          %2878 = vmatpush1.bf16.msra.mxu0 0
          %2879 = vmatprep.subr.bf16.mxu0 0
          %2880 = vmatpush1.bf16.msra.mxu0 0
          %2881 = vmatprep.mubr.bf16.mxu0 0
          %2882 = vmatmul.mubr.bf16.gmra.mrb[0].mxu0 %v2847
          %v2883 = vpop.f32.mrb[0].mxu0
          %v2884 = vadd.f32 %v2820, %v2883
          %v2885 = vpop.f32.mrb[0].mxu0
          %v2886 = vpop.f32.mrb[0].mxu0
          %v2887 = vadd.f32 %v2820, %v2886
          %v2888 = vpop.f32.mrb[0].mxu0
          %2889 = vdwg.mxu0
          %v2890 = vadd.f32 %v2674, %v2884
          %v2891 = vadd.f32 %v2675, %v2887
        $region113: #{vision_transformer_forward.1} parent=107 // loop_footer
          %s778 = sadd.s32 1, %s774
        $region114: #{vision_transformer_forward.1} parent=107 // loop_footer_branch
          %773 = sbr.rel target = $region110
        $region115: #{vision_transformer_forward.1} parent=107 // loop_exit
          _
        %vm2892 = vcmask 261120
        %v2893 = vsel %vm2892, %v779, 0.0
        %v2894 = vsel %vm2892, %v780, 0.0
        %v2895 = vadd.f32 %v2893, %v2894
        %v2896 = vrot.slane %v2895, 4
        %v2897 = vadd.f32 %v2895, %v2896
        %v2898 = vrot.slane %v2897, 2
        %v2899 = vadd.f32 %v2897, %v2898
        %v2900 = vrot.slane %v2899, 1
        %v2901 = vadd.f32 %v2899, %v2900
        %v2902 = vrcp.pop 16.0
        %v2903 = vmul.f32 %v2901, %v2902
        %v2904 = vpack.c.bf16 %v2903, %v2903
        %v2905 = vld [vmem:[%s20] sm:$0xf]
        %v2906 = vld [vmem:[%s20 + $0x4] sm:$0xf]
        %v2907 = vld [vmem:[%s20 + $0x8] sm:$0xf]
        %v2908 = vld [vmem:[%s20 + $0xc] sm:$0xf]
        %v2909 = vld [vmem:[%s21] sm:$0x1]
        %v2914 = vunpack.c.l.b16 %v2905
        %v2915 = vunpack.c.l.b16 %v2906
        %v2916 = vunpack.c.l.b16 %v2907
        %v2917 = vunpack.c.l.b16 %v2908
        %v2918 = vpack.c.b16 %v2915, %v2914
        %v2919 = vpack.c.b16 %v2917, %v2916
        %v2923 = vsel %vm2892, %v2904, 0
        %2925 = vmatprep.subr.bf16.mxu0 0
        %2926 = vmatpush1.bf16.msra.mxu0 %v2918
        %2927 = vmatprep.subr.bf16.mxu0 0
        %2928 = vmatpush1.bf16.msra.mxu0 %v2919
        %2929 = vmatprep.subr.bf16.mxu0 0
        %2930 = vmatpush1.bf16.msra.mxu0 0
        %2931 = vmatprep.subr.bf16.mxu0 0
        %2932 = vmatpush1.bf16.msra.mxu0 0
        %2933 = vmatprep.subr.bf16.mxu0 0
        %2934 = vmatpush1.bf16.msra.mxu0 0
        %2935 = vmatprep.subr.bf16.mxu0 0
        %2936 = vmatpush1.bf16.msra.mxu0 0
        %2937 = vmatprep.subr.bf16.mxu0 0
        %2938 = vmatpush1.bf16.msra.mxu0 0
        %2939 = vmatprep.subr.bf16.mxu0 0
        %2940 = vmatpush1.bf16.msra.mxu0 0
        %2941 = vmatprep.subr.bf16.mxu0 0
        %2942 = vmatpush1.bf16.msra.mxu0 0
        %2943 = vmatprep.subr.bf16.mxu0 0
        %2944 = vmatpush1.bf16.msra.mxu0 0
        %2945 = vmatprep.subr.bf16.mxu0 0
        %2946 = vmatpush1.bf16.msra.mxu0 0
        %2947 = vmatprep.subr.bf16.mxu0 0
        %2948 = vmatpush1.bf16.msra.mxu0 0
        %2949 = vmatprep.subr.bf16.mxu0 0
        %2950 = vmatpush1.bf16.msra.mxu0 0
        %2951 = vmatprep.subr.bf16.mxu0 0
        %2952 = vmatpush1.bf16.msra.mxu0 0
        %2953 = vmatprep.subr.bf16.mxu0 0
        %2954 = vmatpush1.bf16.msra.mxu0 0
        %2955 = vmatprep.subr.bf16.mxu0 0
        %2956 = vmatpush1.bf16.msra.mxu0 0
        %2957 = vmatprep.mubr.bf16.mxu0 0
        %2958 = vmatmul.mubr.bf16.gmra.mrb[0].mxu0 %v2923
        %v2959 = vpop.f32.mrb[0].mxu0
        %v2960 = vadd.f32 %v2909, %v2959
        %v2961 = vpop.f32.mrb[0].mxu0
        %v2962 = vpop.f32.mrb[0].mxu0
        %v2963 = vpop.f32.mrb[0].mxu0
        %2964 = vdwg.mxu0
        %2965 = vst [vmem:[%s675] sm:$0x1] %v2960
        %s2966 = sand.u32 %s511, 1
        %s2967 = scalar_lea.sflag [#allocation3], %s2966
        %s2968 = sand.u32 %s511, 1
        %s2969 = scalar_lea.vmem [#allocation2], %s2968
        // Predicated region
        $region116: #{vision_transformer_forward.1} parent=107 // pred_check
          %p2970 = pneg %p521
        $region117: #{vision_transformer_forward.1} parent=107 // pred_check_branch
          %2972 = sbr.rel (%p2970) target = $region119
        $region118: #{vision_transformer_forward.1} parent=107 // pred_region
          %s2974 = ssub.s32 16, 16
          %2975 = vsyncadd %s2967, %s2974
          %s2976 = smul.addr %s36, 16
          %s2977 = scalar_lea.hbm %s22, %s2976
          %s2979 = sshll.u32 %s2969, 4
          %s2980 = int_to_ptr.vmem [resolvable:$true] %s2979
          %2982 = dma.vmem_to_hbm [thread:$0]  %s2980, 16, %s2977, %s2967
        $region119: #{vision_transformer_forward.1} parent=107 // pred_fallthru
          _
      $region108: #{vision_transformer_forward.1} parent=5 // pred_fallthru
        _
      %p2983 = scmp.le.s32.totalorder 2, %s31
      // Predicated region
      $region120: #{vision_transformer_forward.1} parent=5 // pred_check
        %p2984 = pneg %p2983
      $region121: #{vision_transformer_forward.1} parent=5 // pred_check_branch
        %2986 = sbr.rel (%p2984) target = $region123
      $region122: #{vision_transformer_forward.1} parent=5 // pred_region
        %s2987 = ssub.s32 %s31, 2
        // Predicated region
        $region124: #{vision_transformer_forward.1} parent=122 // pred_check
          %p2988 = pneg %p527
        $region125: #{vision_transformer_forward.1} parent=122 // pred_check_branch
          %2990 = sbr.rel (%p2988) target = $region127
        $region126: #{vision_transformer_forward.1} parent=122 // pred_region
          %s2991 = sand.u32 %s512, 1
          %s2992 = scalar_lea.sflag [#allocation3], %s2991
          %s2993 = sand.u32 %s512, 1
          %s2994 = scalar_lea.vmem [#allocation2], %s2993
          %2995 = dma.done %s2992, 16
        $region127: #{vision_transformer_forward.1} parent=122 // pred_fallthru
          _
      $region123: #{vision_transformer_forward.1} parent=5 // pred_fallthru
        _
    $region6: #{vision_transformer_forward.1} parent=1 // loop_footer
      %s35 = sadd.s32 1, %s31
    $region7: #{vision_transformer_forward.1} parent=1 // loop_footer_branch
      %30 = sbr.rel target = $region3
    $region8: #{vision_transformer_forward.1} parent=1 // loop_exit
      _
    %2996 = vsyncpa [#allocation3], 1
    %s2997 = scalar_lea.sflag [#allocation3], 1
    %2998 = vsyncpa %s2997, 1

</llo_original>
